<compile_context>
chip_gen: v7x
topology: tpu7x:2x2x1
jax: 0.10.0
libtpu: 0.0.40
codegen_flags: <defaults>
</compile_context>

<pallas_src>
import functools
import math

import jax
import jax.numpy as jnp
from jax import lax
from jax.experimental import pallas as pl
from jax.experimental.pallas import tpu as pltpu


# -----------------------------------------------------------------------------
# Fused kernel.  One grid step == (batch element, q-tile).
# -----------------------------------------------------------------------------
def _mha_kernel(xq_ref, xk_ref, xv_ref,
                wq_ref, bq_ref, wk_ref, bk_ref, wv_ref, bv_ref, wo_ref, bo_ref,
                o_ref,
                qs, ks, vs, sc,
                *, n_heads, seq, q_tile, scale):
    H = n_heads
    S = seq
    Tq = q_tile
    D = xq_ref.shape[2]            # d_model
    dh = D // H
    L = H * S                      # key/value "sequence" length of the reference module
    Lq = H * Tq                    # stacked query rows handled by this grid step

    bf16 = jnp.bfloat16
    f32 = jnp.float32
    t = pl.program_id(1)

    # ---- K / V projections: once per batch element (q-tile == 0), kept VMEM-resident ----
    # Stacked layout: row r*S + s, column h*dh + d  <->  reference head tensor
    # x_h[l = s*H + r, d].  Every store below is a full-(S, D)-width, lane-dense chunk.
    @pl.when(t == 0)
    def _():
        xk = xk_ref[0].astype(bf16)                                   # (S, D)
        xv = xv_ref[0].astype(bf16)
        for r in range(H):
            kr = jnp.dot(xk, wk_ref[r], preferred_element_type=f32) + bk_ref[r]
            vr = jnp.dot(xv, wv_ref[r], preferred_element_type=f32) + bv_ref[r]
            ks[pl.ds(r * S, S), :] = kr.astype(bf16)
            vs[pl.ds(r * S, S), :] = vr.astype(bf16)

    # ---- Q projection for this q-tile, scale folded in (H*Tq*D mults, not H*Tq*L) -------
    xq = xq_ref[0].astype(bf16)                                       # (Tq, D)
    for r in range(H):
        qr = (jnp.dot(xq, wq_ref[r], preferred_element_type=f32) + bq_ref[r]) * scale
        qs[pl.ds(r * Tq, Tq), :] = qr                                 # f32, 8-row aligned

    # ---- per-head scores (Lq, L) into one f32 scratch ------------------------------------
    nt = (((1,), (1,)), ((), ()))                                     # q @ k^T (contract dh)
    for h in range(H):
        qh = qs[:, pl.ds(h * dh, dh)].astype(bf16)
        kh = ks[:, pl.ds(h * dh, dh)]
        sc[h] = lax.dot_general(qh, kh, nt, preferred_element_type=f32)

    # ---- softmax over the HEADS axis (torch softmax dim=1), f32, exp written in place ----
    m = sc[0]
    for h in range(1, H):
        m = jnp.maximum(m, sc[h])
    den = None
    for h in range(H):
        e = jnp.exp(sc[h] - m)
        den = e if den is None else den + e
        sc[h] = e                                                     # overwrite scores
    inv = pl.reciprocal(den, approx=True)                             # EUP slot

    # ---- P @ V per head; heads concatenated along lanes into an (Lq, D) slab -------------
    outs = []
    for h in range(H):
        p = (sc[h] * inv).astype(bf16)                                # (Lq, L)
        vh = vs[:, pl.ds(h * dh, dh)]                                 # (L, dh)
        outs.append(jnp.dot(p, vh, preferred_element_type=f32))       # (Lq, dh)
    o_stack = jnp.concatenate(outs, axis=-1).astype(bf16)             # (Lq, D)

    # ---- output projection: reference (S, H*D) merge folded into H accumulating matmuls --
    acc = jnp.dot(o_stack[0:Tq], wo_ref[0], preferred_element_type=f32)
    for r in range(1, H):
        acc = acc + jnp.dot(o_stack[r * Tq:(r + 1) * Tq], wo_ref[r],
                            preferred_element_type=f32)
    o_ref[0] = (acc + bo_ref[...]).astype(o_ref.dtype)                # one lane-dense store


# -----------------------------------------------------------------------------
# Wrapper: one pallas_call, grid = (batch, q-tiles).
# -----------------------------------------------------------------------------
def multi_head_attention(params, Q, K, V, *, d_model, n_heads, q_tile=None):
    """Forward pass of the reference MultiHeadAttention module (mask=None path)."""
    B, S, D = Q.shape
    assert D == d_model and D % n_heads == 0
    H = n_heads
    dh = D // H
    L = S * H

    if q_tile is None:
        q_tile = 128 if S % 128 == 0 else S
    assert S % q_tile == 0 and (q_tile == S or q_tile % 8 == 0)
    n_qt = S // q_tile
    Lq = H * q_tile

    bf16, f32 = jnp.bfloat16, jnp.float32

    # Host-side weight prep (one-time / constant-folded under jit):
    #   * bf16 weights: half the resident-weight VMEM, full-rate MXU on v5e/v6e/v7x
    #   * reshape to (H, D, D) so per-r slices inside the kernel are leading-axis blocks
    def prep_w_in(w):   # (D, H*D) -> (H, D, D):  w3[r] = w[:, r*D:(r+1)*D]
        return jnp.transpose(w.reshape(D, H, D), (1, 0, 2)).astype(bf16)

    def prep_b_in(b):   # (H*D,) -> (H, 1, D)
        return b.reshape(H, 1, D).astype(f32)

    wq3, bq3 = prep_w_in(params["wq"]), prep_b_in(params["bq"])
    wk3, bk3 = prep_w_in(params["wk"]), prep_b_in(params["bk"])
    wv3, bv3 = prep_w_in(params["wv"]), prep_b_in(params["bv"])
    wo3 = params["wo"].reshape(H, D, D).astype(bf16)   # wo3[r] = wo[r*D:(r+1)*D, :]
    bo2 = params["bo"].reshape(1, D).astype(f32)

    kernel = functools.partial(_mha_kernel, n_heads=H, seq=S, q_tile=q_tile,
                               scale=1.0 / math.sqrt(dh))

    def resident(shape):
        # full-array block + constant index_map -> fetched once, stays VMEM-resident
        return pl.BlockSpec(shape, lambda b, t, _n=len(shape): (0,) * _n)

    # Explicit scoped-VMEM limit from actual sizes (double-buffered specs + scratch).
    w_bytes = 4 * H * D * D * 2 + 3 * H * D * 4 + D * 4
    io_bytes = (2 * q_tile * D + 2 * S * D) * 4
    scr_bytes = Lq * D * 4 + 2 * L * D * 2 + H * Lq * L * 4
    vmem_limit = int(min(max(2 * (w_bytes + io_bytes) + scr_bytes + (8 << 20), 32 << 20),
                         100 << 20))

    return pl.pallas_call(
        kernel,
        out_shape=jax.ShapeDtypeStruct((B, S, D), Q.dtype),
        grid=(B, n_qt),
        in_specs=[
            pl.BlockSpec((1, q_tile, D), lambda b, t: (b, t, 0)),   # Q rows of this tile
            pl.BlockSpec((1, S, D), lambda b, t: (b, 0, 0)),        # K: full sequence
            pl.BlockSpec((1, S, D), lambda b, t: (b, 0, 0)),        # V: full sequence
            resident((H, D, D)), resident((H, 1, D)),               # wq, bq
            resident((H, D, D)), resident((H, 1, D)),               # wk, bk
            resident((H, D, D)), resident((H, 1, D)),               # wv, bv
            resident((H, D, D)), resident((1, D)),                  # wo, bo
        ],
        out_specs=pl.BlockSpec((1, q_tile, D), lambda b, t: (b, t, 0)),
        scratch_shapes=[
            pltpu.VMEM((Lq, D), f32),     # q, stacked layout (rows r*Tq + s)
            pltpu.VMEM((L, D), bf16),     # k, stacked layout (rows r*S + s)
            pltpu.VMEM((L, D), bf16),     # v
            pltpu.VMEM((H, Lq, L), f32),  # scores -> exp(scores) in place
        ],
        compiler_params=pltpu.CompilerParams(
            dimension_semantics=("parallel", "arbitrary"),
            vmem_limit_bytes=vmem_limit),
    )(Q, K, V, wq3, bq3, wk3, bk3, wv3, bv3, wo3, bo2)


# -----------------------------------------------------------------------------
# Pure-JAX reference (mirrors the PyTorch module literally, all f32).
# -----------------------------------------------------------------------------
def multi_head_attention_ref(params, Q, K, V, *, d_model, n_heads):
    B, S, D = Q.shape
    H = n_heads
    dh = d_model // n_heads

    def split_heads(x, w, b):
        proj = x.reshape(B * S, D) @ w + b
        proj = proj.reshape(B, S * H, H, dh)
        return jnp.transpose(proj, (0, 2, 1, 3))

    q = split_heads(Q, params["wq"], params["bq"])
    k = split_heads(K, params["wk"], params["bk"])
    v = split_heads(V, params["wv"], params["bv"])

    s = jnp.einsum("bhqd,bhkd->bhqk", q, k) / math.sqrt(dh)
    p = jax.nn.softmax(s, axis=1)                       # dim=1 (heads), as in the module
    out = jnp.einsum("bhqk,bhkd->bhqd", p, v)
    out = jnp.transpose(out, (0, 2, 1, 3)).reshape(B, S, H * D)
    out = out.reshape(B * S, H * D) @ params["wo"] + params["bo"]
    return out.reshape(B, S, D)


def init_params(key, d_model, n_heads):
    D, H = d_model, n_heads
    ks = jax.random.split(key, 8)

    def lin(kw, kb, fan_in, fan_out):
        bound = 1.0 / math.sqrt(fan_in)
        w = jax.random.uniform(kw, (fan_in, fan_out), jnp.float32, -bound, bound)
        b = jax.random.uniform(kb, (fan_out,), jnp.float32, -bound, bound)
        return w, b

    wq, bq = lin(ks[0], ks[1], D, D * H)
    wk, bk = lin(ks[2], ks[3], D, D * H)
    wv, bv = lin(ks[4], ks[5], D, D * H)
    wo, bo = lin(ks[6], ks[7], H * D, D)
    return dict(wq=wq, bq=bq, wk=wk, bk=bk, wv=wv, bv=bv, wo=wo, bo=bo)


if __name__ == "__main__":
    d_model, n_heads = 32, 4
    B, S = 2, 16          # q_tile=8 -> grid (2, 2): exercises both the batch and q-tile axes

    key = jax.random.PRNGKey(0)
    kp, kq, kk, kv = jax.random.split(key, 4)
    params = init_params(kp, d_model, n_heads)

    Q = jax.random.normal(kq, (B, S, d_model), jnp.float32)
    K = jax.random.normal(kk, (B, S, d_model), jnp.float32)
    V = jax.random.normal(kv, (B, S, d_model), jnp.float32)

    out = multi_head_attention(params, Q, K, V, d_model=d_model, n_heads=n_heads, q_tile=8)
    out = jax.block_until_ready(out)

    ref = multi_head_attention_ref(params, Q, K, V, d_model=d_model, n_heads=n_heads)
    assert out.shape == (B, S, d_model)
    # bf16 MXU operands + EUP approximate reciprocal -> ~1% relative error vs f32 reference.
    rel = jnp.linalg.norm((out - ref).ravel()) / jnp.linalg.norm(ref.ravel())
    assert rel < 2.5e-2, f"relative error too large: {rel}"
    assert jnp.max(jnp.abs(out - ref)) < 1e-1, "max abs error too large"

    print("KERNEL_OK")
</pallas_src>

<mosaic_0001>
module attributes {stable_mosaic.version = 11 : i64} {
  func.func @_mha_kernel(%arg0: i32, %arg1: i32, %arg2: memref<1x8x32xf32, #tpu.memory_space<vmem>>, %arg3: memref<1x16x32xf32, #tpu.memory_space<vmem>>, %arg4: memref<1x16x32xf32, #tpu.memory_space<vmem>>, %arg5: memref<4x32x32xbf16, #tpu.memory_space<vmem>>, %arg6: memref<4x1x32xf32, #tpu.memory_space<vmem>>, %arg7: memref<4x32x32xbf16, #tpu.memory_space<vmem>>, %arg8: memref<4x1x32xf32, #tpu.memory_space<vmem>>, %arg9: memref<4x32x32xbf16, #tpu.memory_space<vmem>>, %arg10: memref<4x1x32xf32, #tpu.memory_space<vmem>>, %arg11: memref<4x32x32xbf16, #tpu.memory_space<vmem>>, %arg12: memref<1x32xf32, #tpu.memory_space<vmem>>, %arg13: memref<1x8x32xf32, #tpu.memory_space<vmem>>, %arg14: memref<32x32xf32, #tpu.memory_space<vmem>>, %arg15: memref<64x32xbf16, #tpu.memory_space<vmem>>, %arg16: memref<64x32xbf16, #tpu.memory_space<vmem>>, %arg17: memref<4x32x64xf32, #tpu.memory_space<vmem>>) attributes {dimension_semantics = [#tpu.dimension_semantics<parallel>, #tpu.dimension_semantics<arbitrary>], iteration_bounds = array<i64: 2, 2>, scalar_prefetch = 0 : i64, scratch_operands = 4 : i64, tpu.core_type = #tpu.core_type<tc>, window_params = [{transform_indices = @transform_0, window_bounds = array<i64: 1, 8, 32>}, {transform_indices = @transform_1, window_bounds = array<i64: 1, 16, 32>}, {transform_indices = @transform_2, window_bounds = array<i64: 1, 16, 32>}, {pipeline_mode = #tpu.pipeline_mode<synchronous>, transform_indices = @transform_3, window_bounds = array<i64: 4, 32, 32>}, {pipeline_mode = #tpu.pipeline_mode<synchronous>, transform_indices = @transform_4, window_bounds = array<i64: 4, 1, 32>}, {pipeline_mode = #tpu.pipeline_mode<synchronous>, transform_indices = @transform_5, window_bounds = array<i64: 4, 32, 32>}, {pipeline_mode = #tpu.pipeline_mode<synchronous>, transform_indices = @transform_6, window_bounds = array<i64: 4, 1, 32>}, {pipeline_mode = #tpu.pipeline_mode<synchronous>, transform_indices = @transform_7, window_bounds = array<i64: 4, 32, 32>}, {pipeline_mode = #tpu.pipeline_mode<synchronous>, transform_indices = @transform_8, window_bounds = array<i64: 4, 1, 32>}, {pipeline_mode = #tpu.pipeline_mode<synchronous>, transform_indices = @transform_9, window_bounds = array<i64: 4, 32, 32>}, {pipeline_mode = #tpu.pipeline_mode<synchronous>, transform_indices = @transform_10, window_bounds = array<i64: 1, 32>}, {transform_indices = @transform_11, window_bounds = array<i64: 1, 8, 32>}]} {
    %c0_i32 = arith.constant 0 : i32
    %0 = arith.cmpi eq, %arg1, %c0_i32 : i32
    %1 = arith.extui %0 : i1 to i32
    %c0_i32_0 = arith.constant 0 : i32
    %2 = arith.cmpi ne, %1, %c0_i32_0 : i32
    scf.if %2 {
      %c0_149 = arith.constant 0 : index
      %c0_150 = arith.constant 0 : index
      %c0_151 = arith.constant 0 : index
      %168 = vector.load %arg3[%c0_149, %c0_150, %c0_151] : memref<1x16x32xf32, #tpu.memory_space<vmem>>, vector<1x16x32xf32>
      %169 = vector.shape_cast %168 : vector<1x16x32xf32> to vector<16x32xf32>
      %170 = arith.truncf %169 : vector<16x32xf32> to vector<16x32xbf16>
      %c0_152 = arith.constant 0 : index
      %c0_153 = arith.constant 0 : index
      %c0_154 = arith.constant 0 : index
      %171 = vector.load %arg4[%c0_152, %c0_153, %c0_154] : memref<1x16x32xf32, #tpu.memory_space<vmem>>, vector<1x16x32xf32>
      %172 = vector.shape_cast %171 : vector<1x16x32xf32> to vector<16x32xf32>
      %173 = arith.truncf %172 : vector<16x32xf32> to vector<16x32xbf16>
      %c0_155 = arith.constant 0 : index
      %c0_156 = arith.constant 0 : index
      %c0_157 = arith.constant 0 : index
      %174 = vector.load %arg7[%c0_155, %c0_156, %c0_157] : memref<4x32x32xbf16, #tpu.memory_space<vmem>>, vector<1x32x32xbf16>
      %175 = vector.shape_cast %174 : vector<1x32x32xbf16> to vector<32x32xbf16>
      %cst_158 = arith.constant dense<0.000000e+00> : vector<16x32xf32>
      %176 = tpu.matmul %170, %175, %cst_158 {dimension_numbers = #tpu.dot_dimension_numbers<[1], [0], [0], [1], [0, 0, 1, 1], [], []>} : vector<16x32xbf16>, vector<32x32xbf16>, vector<16x32xf32> -> vector<16x32xf32>
      %c0_159 = arith.constant 0 : index
      %c0_160 = arith.constant 0 : index
      %c0_161 = arith.constant 0 : index
      %177 = vector.load %arg8[%c0_159, %c0_160, %c0_161] : memref<4x1x32xf32, #tpu.memory_space<vmem>>, vector<1x1x32xf32>
      %178 = vector.shape_cast %177 : vector<1x1x32xf32> to vector<1x32xf32>
      %179 = vector.broadcast %178 : vector<1x32xf32> to vector<16x32xf32>
      %180 = arith.addf %176, %179 : vector<16x32xf32>
      %c0_162 = arith.constant 0 : index
      %c0_163 = arith.constant 0 : index
      %c0_164 = arith.constant 0 : index
      %181 = vector.load %arg9[%c0_162, %c0_163, %c0_164] : memref<4x32x32xbf16, #tpu.memory_space<vmem>>, vector<1x32x32xbf16>
      %182 = vector.shape_cast %181 : vector<1x32x32xbf16> to vector<32x32xbf16>
      %cst_165 = arith.constant dense<0.000000e+00> : vector<16x32xf32>
      %183 = tpu.matmul %173, %182, %cst_165 {dimension_numbers = #tpu.dot_dimension_numbers<[1], [0], [0], [1], [0, 0, 1, 1], [], []>} : vector<16x32xbf16>, vector<32x32xbf16>, vector<16x32xf32> -> vector<16x32xf32>
      %c0_166 = arith.constant 0 : index
      %c0_167 = arith.constant 0 : index
      %c0_168 = arith.constant 0 : index
      %184 = vector.load %arg10[%c0_166, %c0_167, %c0_168] : memref<4x1x32xf32, #tpu.memory_space<vmem>>, vector<1x1x32xf32>
      %185 = vector.shape_cast %184 : vector<1x1x32xf32> to vector<1x32xf32>
      %186 = vector.broadcast %185 : vector<1x32xf32> to vector<16x32xf32>
      %187 = arith.addf %183, %186 : vector<16x32xf32>
      %188 = arith.truncf %180 : vector<16x32xf32> to vector<16x32xbf16>
      %c0_169 = arith.constant 0 : index
      %c0_170 = arith.constant 0 : index
      %189 = vector.load %arg15[%c0_169, %c0_170] : memref<64x32xbf16, #tpu.memory_space<vmem>>, vector<16x32xbf16>
      tpu.vector_store %arg15[%c0_169, %c0_170], %188 {strides = array<i32>} : memref<64x32xbf16, #tpu.memory_space<vmem>>, vector<16x32xbf16>,
      %190 = arith.truncf %187 : vector<16x32xf32> to vector<16x32xbf16>
      %c0_171 = arith.constant 0 : index
      %c0_172 = arith.constant 0 : index
      %191 = vector.load %arg16[%c0_171, %c0_172] : memref<64x32xbf16, #tpu.memory_space<vmem>>, vector<16x32xbf16>
      tpu.vector_store %arg16[%c0_171, %c0_172], %190 {strides = array<i32>} : memref<64x32xbf16, #tpu.memory_space<vmem>>, vector<16x32xbf16>,
      %c1_173 = arith.constant 1 : index
      %c0_174 = arith.constant 0 : index
      %c0_175 = arith.constant 0 : index
      %192 = vector.load %arg7[%c1_173, %c0_174, %c0_175] : memref<4x32x32xbf16, #tpu.memory_space<vmem>>, vector<1x32x32xbf16>
      %193 = vector.shape_cast %192 : vector<1x32x32xbf16> to vector<32x32xbf16>
      %cst_176 = arith.constant dense<0.000000e+00> : vector<16x32xf32>
      %194 = tpu.matmul %170, %193, %cst_176 {dimension_numbers = #tpu.dot_dimension_numbers<[1], [0], [0], [1], [0, 0, 1, 1], [], []>} : vector<16x32xbf16>, vector<32x32xbf16>, vector<16x32xf32> -> vector<16x32xf32>
      %c1_177 = arith.constant 1 : index
      %c0_178 = arith.constant 0 : index
      %c0_179 = arith.constant 0 : index
      %195 = vector.load %arg8[%c1_177, %c0_178, %c0_179] : memref<4x1x32xf32, #tpu.memory_space<vmem>>, vector<1x1x32xf32>
      %196 = vector.shape_cast %195 : vector<1x1x32xf32> to vector<1x32xf32>
      %197 = vector.broadcast %196 : vector<1x32xf32> to vector<16x32xf32>
      %198 = arith.addf %194, %197 : vector<16x32xf32>
      %c1_180 = arith.constant 1 : index
      %c0_181 = arith.constant 0 : index
      %c0_182 = arith.constant 0 : index
      %199 = vector.load %arg9[%c1_180, %c0_181, %c0_182] : memref<4x32x32xbf16, #tpu.memory_space<vmem>>, vector<1x32x32xbf16>
      %200 = vector.shape_cast %199 : vector<1x32x32xbf16> to vector<32x32xbf16>
      %cst_183 = arith.constant dense<0.000000e+00> : vector<16x32xf32>
      %201 = tpu.matmul %173, %200, %cst_183 {dimension_numbers = #tpu.dot_dimension_numbers<[1], [0], [0], [1], [0, 0, 1, 1], [], []>} : vector<16x32xbf16>, vector<32x32xbf16>, vector<16x32xf32> -> vector<16x32xf32>
      %c1_184 = arith.constant 1 : index
      %c0_185 = arith.constant 0 : index
      %c0_186 = arith.constant 0 : index
      %202 = vector.load %arg10[%c1_184, %c0_185, %c0_186] : memref<4x1x32xf32, #tpu.memory_space<vmem>>, vector<1x1x32xf32>
      %203 = vector.shape_cast %202 : vector<1x1x32xf32> to vector<1x32xf32>
      %204 = vector.broadcast %203 : vector<1x32xf32> to vector<16x32xf32>
      %205 = arith.addf %201, %204 : vector<16x32xf32>
      %206 = arith.truncf %198 : vector<16x32xf32> to vector<16x32xbf16>
      %c16_187 = arith.constant 16 : index
      %c0_188 = arith.constant 0 : index
      %207 = vector.load %arg15[%c16_187, %c0_188] : memref<64x32xbf16, #tpu.memory_space<vmem>>, vector<16x32xbf16>
      tpu.vector_store %arg15[%c16_187, %c0_188], %206 {strides = array<i32>} : memref<64x32xbf16, #tpu.memory_space<vmem>>, vector<16x32xbf16>,
      %208 = arith.truncf %205 : vector<16x32xf32> to vector<16x32xbf16>
      %c16_189 = arith.constant 16 : index
      %c0_190 = arith.constant 0 : index
      %209 = vector.load %arg16[%c16_189, %c0_190] : memref<64x32xbf16, #tpu.memory_space<vmem>>, vector<16x32xbf16>
      tpu.vector_store %arg16[%c16_189, %c0_190], %208 {strides = array<i32>} : memref<64x32xbf16, #tpu.memory_space<vmem>>, vector<16x32xbf16>,
      %c2_191 = arith.constant 2 : index
      %c0_192 = arith.constant 0 : index
      %c0_193 = arith.constant 0 : index
      %210 = vector.load %arg7[%c2_191, %c0_192, %c0_193] : memref<4x32x32xbf16, #tpu.memory_space<vmem>>, vector<1x32x32xbf16>
      %211 = vector.shape_cast %210 : vector<1x32x32xbf16> to vector<32x32xbf16>
      %cst_194 = arith.constant dense<0.000000e+00> : vector<16x32xf32>
      %212 = tpu.matmul %170, %211, %cst_194 {dimension_numbers = #tpu.dot_dimension_numbers<[1], [0], [0], [1], [0, 0, 1, 1], [], []>} : vector<16x32xbf16>, vector<32x32xbf16>, vector<16x32xf32> -> vector<16x32xf32>
      %c2_195 = arith.constant 2 : index
      %c0_196 = arith.constant 0 : index
      %c0_197 = arith.constant 0 : index
      %213 = vector.load %arg8[%c2_195, %c0_196, %c0_197] : memref<4x1x32xf32, #tpu.memory_space<vmem>>, vector<1x1x32xf32>
      %214 = vector.shape_cast %213 : vector<1x1x32xf32> to vector<1x32xf32>
      %215 = vector.broadcast %214 : vector<1x32xf32> to vector<16x32xf32>
      %216 = arith.addf %212, %215 : vector<16x32xf32>
      %c2_198 = arith.constant 2 : index
      %c0_199 = arith.constant 0 : index
      %c0_200 = arith.constant 0 : index
      %217 = vector.load %arg9[%c2_198, %c0_199, %c0_200] : memref<4x32x32xbf16, #tpu.memory_space<vmem>>, vector<1x32x32xbf16>
      %218 = vector.shape_cast %217 : vector<1x32x32xbf16> to vector<32x32xbf16>
      %cst_201 = arith.constant dense<0.000000e+00> : vector<16x32xf32>
      %219 = tpu.matmul %173, %218, %cst_201 {dimension_numbers = #tpu.dot_dimension_numbers<[1], [0], [0], [1], [0, 0, 1, 1], [], []>} : vector<16x32xbf16>, vector<32x32xbf16>, vector<16x32xf32> -> vector<16x32xf32>
      %c2_202 = arith.constant 2 : index
      %c0_203 = arith.constant 0 : index
      %c0_204 = arith.constant 0 : index
      %220 = vector.load %arg10[%c2_202, %c0_203, %c0_204] : memref<4x1x32xf32, #tpu.memory_space<vmem>>, vector<1x1x32xf32>
      %221 = vector.shape_cast %220 : vector<1x1x32xf32> to vector<1x32xf32>
      %222 = vector.broadcast %221 : vector<1x32xf32> to vector<16x32xf32>
      %223 = arith.addf %219, %222 : vector<16x32xf32>
      %224 = arith.truncf %216 : vector<16x32xf32> to vector<16x32xbf16>
      %c32 = arith.constant 32 : index
      %c0_205 = arith.constant 0 : index
      %225 = vector.load %arg15[%c32, %c0_205] : memref<64x32xbf16, #tpu.memory_space<vmem>>, vector<16x32xbf16>
      tpu.vector_store %arg15[%c32, %c0_205], %224 {strides = array<i32>} : memref<64x32xbf16, #tpu.memory_space<vmem>>, vector<16x32xbf16>,
      %226 = arith.truncf %223 : vector<16x32xf32> to vector<16x32xbf16>
      %c32_206 = arith.constant 32 : index
      %c0_207 = arith.constant 0 : index
      %227 = vector.load %arg16[%c32_206, %c0_207] : memref<64x32xbf16, #tpu.memory_space<vmem>>, vector<16x32xbf16>
      tpu.vector_store %arg16[%c32_206, %c0_207], %226 {strides = array<i32>} : memref<64x32xbf16, #tpu.memory_space<vmem>>, vector<16x32xbf16>,
      %c3_208 = arith.constant 3 : index
      %c0_209 = arith.constant 0 : index
      %c0_210 = arith.constant 0 : index
      %228 = vector.load %arg7[%c3_208, %c0_209, %c0_210] : memref<4x32x32xbf16, #tpu.memory_space<vmem>>, vector<1x32x32xbf16>
      %229 = vector.shape_cast %228 : vector<1x32x32xbf16> to vector<32x32xbf16>
      %cst_211 = arith.constant dense<0.000000e+00> : vector<16x32xf32>
      %230 = tpu.matmul %170, %229, %cst_211 {dimension_numbers = #tpu.dot_dimension_numbers<[1], [0], [0], [1], [0, 0, 1, 1], [], []>} : vector<16x32xbf16>, vector<32x32xbf16>, vector<16x32xf32> -> vector<16x32xf32>
      %c3_212 = arith.constant 3 : index
      %c0_213 = arith.constant 0 : index
      %c0_214 = arith.constant 0 : index
      %231 = vector.load %arg8[%c3_212, %c0_213, %c0_214] : memref<4x1x32xf32, #tpu.memory_space<vmem>>, vector<1x1x32xf32>
      %232 = vector.shape_cast %231 : vector<1x1x32xf32> to vector<1x32xf32>
      %233 = vector.broadcast %232 : vector<1x32xf32> to vector<16x32xf32>
      %234 = arith.addf %230, %233 : vector<16x32xf32>
      %c3_215 = arith.constant 3 : index
      %c0_216 = arith.constant 0 : index
      %c0_217 = arith.constant 0 : index
      %235 = vector.load %arg9[%c3_215, %c0_216, %c0_217] : memref<4x32x32xbf16, #tpu.memory_space<vmem>>, vector<1x32x32xbf16>
      %236 = vector.shape_cast %235 : vector<1x32x32xbf16> to vector<32x32xbf16>
      %cst_218 = arith.constant dense<0.000000e+00> : vector<16x32xf32>
      %237 = tpu.matmul %173, %236, %cst_218 {dimension_numbers = #tpu.dot_dimension_numbers<[1], [0], [0], [1], [0, 0, 1, 1], [], []>} : vector<16x32xbf16>, vector<32x32xbf16>, vector<16x32xf32> -> vector<16x32xf32>
      %c3_219 = arith.constant 3 : index
      %c0_220 = arith.constant 0 : index
      %c0_221 = arith.constant 0 : index
      %238 = vector.load %arg10[%c3_219, %c0_220, %c0_221] : memref<4x1x32xf32, #tpu.memory_space<vmem>>, vector<1x1x32xf32>
      %239 = vector.shape_cast %238 : vector<1x1x32xf32> to vector<1x32xf32>
      %240 = vector.broadcast %239 : vector<1x32xf32> to vector<16x32xf32>
      %241 = arith.addf %237, %240 : vector<16x32xf32>
      %242 = arith.truncf %234 : vector<16x32xf32> to vector<16x32xbf16>
      %c48 = arith.constant 48 : index
      %c0_222 = arith.constant 0 : index
      %243 = vector.load %arg15[%c48, %c0_222] : memref<64x32xbf16, #tpu.memory_space<vmem>>, vector<16x32xbf16>
      tpu.vector_store %arg15[%c48, %c0_222], %242 {strides = array<i32>} : memref<64x32xbf16, #tpu.memory_space<vmem>>, vector<16x32xbf16>,
      %244 = arith.truncf %241 : vector<16x32xf32> to vector<16x32xbf16>
      %c48_223 = arith.constant 48 : index
      %c0_224 = arith.constant 0 : index
      %245 = vector.load %arg16[%c48_223, %c0_224] : memref<64x32xbf16, #tpu.memory_space<vmem>>, vector<16x32xbf16>
      tpu.vector_store %arg16[%c48_223, %c0_224], %244 {strides = array<i32>} : memref<64x32xbf16, #tpu.memory_space<vmem>>, vector<16x32xbf16>,
    } else {
    }
    %c0 = arith.constant 0 : index
    %c0_1 = arith.constant 0 : index
    %c0_2 = arith.constant 0 : index
    %3 = vector.load %arg2[%c0, %c0_1, %c0_2] : memref<1x8x32xf32, #tpu.memory_space<vmem>>, vector<1x8x32xf32>
    %4 = vector.shape_cast %3 : vector<1x8x32xf32> to vector<8x32xf32>
    %5 = arith.truncf %4 : vector<8x32xf32> to vector<8x32xbf16>
    %c0_3 = arith.constant 0 : index
    %c0_4 = arith.constant 0 : index
    %c0_5 = arith.constant 0 : index
    %6 = vector.load %arg5[%c0_3, %c0_4, %c0_5] : memref<4x32x32xbf16, #tpu.memory_space<vmem>>, vector<1x32x32xbf16>
    %7 = vector.shape_cast %6 : vector<1x32x32xbf16> to vector<32x32xbf16>
    %cst = arith.constant dense<0.000000e+00> : vector<8x32xf32>
    %8 = tpu.matmul %5, %7, %cst {dimension_numbers = #tpu.dot_dimension_numbers<[1], [0], [0], [1], [0, 0, 1, 1], [], []>} : vector<8x32xbf16>, vector<32x32xbf16>, vector<8x32xf32> -> vector<8x32xf32>
    %c0_6 = arith.constant 0 : index
    %c0_7 = arith.constant 0 : index
    %c0_8 = arith.constant 0 : index
    %9 = vector.load %arg6[%c0_6, %c0_7, %c0_8] : memref<4x1x32xf32, #tpu.memory_space<vmem>>, vector<1x1x32xf32>
    %10 = vector.shape_cast %9 : vector<1x1x32xf32> to vector<1x32xf32>
    %11 = vector.broadcast %10 : vector<1x32xf32> to vector<8x32xf32>
    %12 = arith.addf %8, %11 : vector<8x32xf32>
    %cst_9 = arith.constant 0.353553385 : f32
    %13 = vector.broadcast %cst_9 : f32 to vector<8x32xf32>
    %14 = arith.mulf %12, %13 : vector<8x32xf32>
    %c0_10 = arith.constant 0 : index
    %c0_11 = arith.constant 0 : index
    %15 = vector.load %arg14[%c0_10, %c0_11] : memref<32x32xf32, #tpu.memory_space<vmem>>, vector<8x32xf32>
    tpu.vector_store %arg14[%c0_10, %c0_11], %14 {strides = array<i32>} : memref<32x32xf32, #tpu.memory_space<vmem>>, vector<8x32xf32>,
    %c1 = arith.constant 1 : index
    %c0_12 = arith.constant 0 : index
    %c0_13 = arith.constant 0 : index
    %16 = vector.load %arg5[%c1, %c0_12, %c0_13] : memref<4x32x32xbf16, #tpu.memory_space<vmem>>, vector<1x32x32xbf16>
    %17 = vector.shape_cast %16 : vector<1x32x32xbf16> to vector<32x32xbf16>
    %cst_14 = arith.constant dense<0.000000e+00> : vector<8x32xf32>
    %18 = tpu.matmul %5, %17, %cst_14 {dimension_numbers = #tpu.dot_dimension_numbers<[1], [0], [0], [1], [0, 0, 1, 1], [], []>} : vector<8x32xbf16>, vector<32x32xbf16>, vector<8x32xf32> -> vector<8x32xf32>
    %c1_15 = arith.constant 1 : index
    %c0_16 = arith.constant 0 : index
    %c0_17 = arith.constant 0 : index
    %19 = vector.load %arg6[%c1_15, %c0_16, %c0_17] : memref<4x1x32xf32, #tpu.memory_space<vmem>>, vector<1x1x32xf32>
    %20 = vector.shape_cast %19 : vector<1x1x32xf32> to vector<1x32xf32>
    %21 = vector.broadcast %20 : vector<1x32xf32> to vector<8x32xf32>
    %22 = arith.addf %18, %21 : vector<8x32xf32>
    %cst_18 = arith.constant 0.353553385 : f32
    %23 = vector.broadcast %cst_18 : f32 to vector<8x32xf32>
    %24 = arith.mulf %22, %23 : vector<8x32xf32>
    %c8 = arith.constant 8 : index
    %c0_19 = arith.constant 0 : index
    %25 = vector.load %arg14[%c8, %c0_19] : memref<32x32xf32, #tpu.memory_space<vmem>>, vector<8x32xf32>
    tpu.vector_store %arg14[%c8, %c0_19], %24 {strides = array<i32>} : memref<32x32xf32, #tpu.memory_space<vmem>>, vector<8x32xf32>,
    %c2 = arith.constant 2 : index
    %c0_20 = arith.constant 0 : index
    %c0_21 = arith.constant 0 : index
    %26 = vector.load %arg5[%c2, %c0_20, %c0_21] : memref<4x32x32xbf16, #tpu.memory_space<vmem>>, vector<1x32x32xbf16>
    %27 = vector.shape_cast %26 : vector<1x32x32xbf16> to vector<32x32xbf16>
    %cst_22 = arith.constant dense<0.000000e+00> : vector<8x32xf32>
    %28 = tpu.matmul %5, %27, %cst_22 {dimension_numbers = #tpu.dot_dimension_numbers<[1], [0], [0], [1], [0, 0, 1, 1], [], []>} : vector<8x32xbf16>, vector<32x32xbf16>, vector<8x32xf32> -> vector<8x32xf32>
    %c2_23 = arith.constant 2 : index
    %c0_24 = arith.constant 0 : index
    %c0_25 = arith.constant 0 : index
    %29 = vector.load %arg6[%c2_23, %c0_24, %c0_25] : memref<4x1x32xf32, #tpu.memory_space<vmem>>, vector<1x1x32xf32>
    %30 = vector.shape_cast %29 : vector<1x1x32xf32> to vector<1x32xf32>
    %31 = vector.broadcast %30 : vector<1x32xf32> to vector<8x32xf32>
    %32 = arith.addf %28, %31 : vector<8x32xf32>
    %cst_26 = arith.constant 0.353553385 : f32
    %33 = vector.broadcast %cst_26 : f32 to vector<8x32xf32>
    %34 = arith.mulf %32, %33 : vector<8x32xf32>
    %c16 = arith.constant 16 : index
    %c0_27 = arith.constant 0 : index
    %35 = vector.load %arg14[%c16, %c0_27] : memref<32x32xf32, #tpu.memory_space<vmem>>, vector<8x32xf32>
    tpu.vector_store %arg14[%c16, %c0_27], %34 {strides = array<i32>} : memref<32x32xf32, #tpu.memory_space<vmem>>, vector<8x32xf32>,
    %c3 = arith.constant 3 : index
    %c0_28 = arith.constant 0 : index
    %c0_29 = arith.constant 0 : index
    %36 = vector.load %arg5[%c3, %c0_28, %c0_29] : memref<4x32x32xbf16, #tpu.memory_space<vmem>>, vector<1x32x32xbf16>
    %37 = vector.shape_cast %36 : vector<1x32x32xbf16> to vector<32x32xbf16>
    %cst_30 = arith.constant dense<0.000000e+00> : vector<8x32xf32>
    %38 = tpu.matmul %5, %37, %cst_30 {dimension_numbers = #tpu.dot_dimension_numbers<[1], [0], [0], [1], [0, 0, 1, 1], [], []>} : vector<8x32xbf16>, vector<32x32xbf16>, vector<8x32xf32> -> vector<8x32xf32>
    %c3_31 = arith.constant 3 : index
    %c0_32 = arith.constant 0 : index
    %c0_33 = arith.constant 0 : index
    %39 = vector.load %arg6[%c3_31, %c0_32, %c0_33] : memref<4x1x32xf32, #tpu.memory_space<vmem>>, vector<1x1x32xf32>
    %40 = vector.shape_cast %39 : vector<1x1x32xf32> to vector<1x32xf32>
    %41 = vector.broadcast %40 : vector<1x32xf32> to vector<8x32xf32>
    %42 = arith.addf %38, %41 : vector<8x32xf32>
    %cst_34 = arith.constant 0.353553385 : f32
    %43 = vector.broadcast %cst_34 : f32 to vector<8x32xf32>
    %44 = arith.mulf %42, %43 : vector<8x32xf32>
    %c24 = arith.constant 24 : index
    %c0_35 = arith.constant 0 : index
    %45 = vector.load %arg14[%c24, %c0_35] : memref<32x32xf32, #tpu.memory_space<vmem>>, vector<8x32xf32>
    tpu.vector_store %arg14[%c24, %c0_35], %44 {strides = array<i32>} : memref<32x32xf32, #tpu.memory_space<vmem>>, vector<8x32xf32>,
    %c0_36 = arith.constant 0 : index
    %c0_37 = arith.constant 0 : index
    %46 = vector.load %arg14[%c0_36, %c0_37] : memref<32x32xf32, #tpu.memory_space<vmem>>, vector<32x8xf32>
    %47 = arith.truncf %46 : vector<32x8xf32> to vector<32x8xbf16>
    %c0_38 = arith.constant 0 : index
    %c0_39 = arith.constant 0 : index
    %48 = vector.load %arg15[%c0_38, %c0_39] : memref<64x32xbf16, #tpu.memory_space<vmem>>, vector<64x8xbf16>
    %cst_40 = arith.constant dense<0.000000e+00> : vector<32x64xf32>
    %49 = tpu.matmul %47, %48, %cst_40 {dimension_numbers = #tpu.dot_dimension_numbers<[1], [1], [0], [0], [0, 0, 1, 0], [], []>} : vector<32x8xbf16>, vector<64x8xbf16>, vector<32x64xf32> -> vector<32x64xf32>
    %c0_41 = arith.constant 0 : index
    %c0_42 = arith.constant 0 : index
    %c0_43 = arith.constant 0 : index
    %50 = vector.load %arg17[%c0_41, %c0_42, %c0_43] : memref<4x32x64xf32, #tpu.memory_space<vmem>>, vector<1x32x64xf32>
    %51 = vector.shape_cast %50 : vector<1x32x64xf32> to vector<32x64xf32>
    %52 = vector.shape_cast %49 : vector<32x64xf32> to vector<1x32x64xf32>
    tpu.vector_store %arg17[%c0_41, %c0_42, %c0_43], %52 {strides = array<i32>} : memref<4x32x64xf32, #tpu.memory_space<vmem>>, vector<1x32x64xf32>,
    %c0_44 = arith.constant 0 : index
    %c8_45 = arith.constant 8 : index
    %53 = vector.load %arg14[%c0_44, %c8_45] : memref<32x32xf32, #tpu.memory_space<vmem>>, vector<32x8xf32>
    %54 = arith.truncf %53 : vector<32x8xf32> to vector<32x8xbf16>
    %c0_46 = arith.constant 0 : index
    %c8_47 = arith.constant 8 : index
    %55 = vector.load %arg15[%c0_46, %c8_47] : memref<64x32xbf16, #tpu.memory_space<vmem>>, vector<64x8xbf16>
    %cst_48 = arith.constant dense<0.000000e+00> : vector<32x64xf32>
    %56 = tpu.matmul %54, %55, %cst_48 {dimension_numbers = #tpu.dot_dimension_numbers<[1], [1], [0], [0], [0, 0, 1, 0], [], []>} : vector<32x8xbf16>, vector<64x8xbf16>, vector<32x64xf32> -> vector<32x64xf32>
    %c1_49 = arith.constant 1 : index
    %c0_50 = arith.constant 0 : index
    %c0_51 = arith.constant 0 : index
    %57 = vector.load %arg17[%c1_49, %c0_50, %c0_51] : memref<4x32x64xf32, #tpu.memory_space<vmem>>, vector<1x32x64xf32>
    %58 = vector.shape_cast %57 : vector<1x32x64xf32> to vector<32x64xf32>
    %59 = vector.shape_cast %56 : vector<32x64xf32> to vector<1x32x64xf32>
    tpu.vector_store %arg17[%c1_49, %c0_50, %c0_51], %59 {strides = array<i32>} : memref<4x32x64xf32, #tpu.memory_space<vmem>>, vector<1x32x64xf32>,
    %c0_52 = arith.constant 0 : index
    %c16_53 = arith.constant 16 : index
    %60 = vector.load %arg14[%c0_52, %c16_53] : memref<32x32xf32, #tpu.memory_space<vmem>>, vector<32x8xf32>
    %61 = arith.truncf %60 : vector<32x8xf32> to vector<32x8xbf16>
    %c0_54 = arith.constant 0 : index
    %c16_55 = arith.constant 16 : index
    %62 = vector.load %arg15[%c0_54, %c16_55] : memref<64x32xbf16, #tpu.memory_space<vmem>>, vector<64x8xbf16>
    %cst_56 = arith.constant dense<0.000000e+00> : vector<32x64xf32>
    %63 = tpu.matmul %61, %62, %cst_56 {dimension_numbers = #tpu.dot_dimension_numbers<[1], [1], [0], [0], [0, 0, 1, 0], [], []>} : vector<32x8xbf16>, vector<64x8xbf16>, vector<32x64xf32> -> vector<32x64xf32>
    %c2_57 = arith.constant 2 : index
    %c0_58 = arith.constant 0 : index
    %c0_59 = arith.constant 0 : index
    %64 = vector.load %arg17[%c2_57, %c0_58, %c0_59] : memref<4x32x64xf32, #tpu.memory_space<vmem>>, vector<1x32x64xf32>
    %65 = vector.shape_cast %64 : vector<1x32x64xf32> to vector<32x64xf32>
    %66 = vector.shape_cast %63 : vector<32x64xf32> to vector<1x32x64xf32>
    tpu.vector_store %arg17[%c2_57, %c0_58, %c0_59], %66 {strides = array<i32>} : memref<4x32x64xf32, #tpu.memory_space<vmem>>, vector<1x32x64xf32>,
    %c0_60 = arith.constant 0 : index
    %c24_61 = arith.constant 24 : index
    %67 = vector.load %arg14[%c0_60, %c24_61] : memref<32x32xf32, #tpu.memory_space<vmem>>, vector<32x8xf32>
    %68 = arith.truncf %67 : vector<32x8xf32> to vector<32x8xbf16>
    %c0_62 = arith.constant 0 : index
    %c24_63 = arith.constant 24 : index
    %69 = vector.load %arg15[%c0_62, %c24_63] : memref<64x32xbf16, #tpu.memory_space<vmem>>, vector<64x8xbf16>
    %cst_64 = arith.constant dense<0.000000e+00> : vector<32x64xf32>
    %70 = tpu.matmul %68, %69, %cst_64 {dimension_numbers = #tpu.dot_dimension_numbers<[1], [1], [0], [0], [0, 0, 1, 0], [], []>} : vector<32x8xbf16>, vector<64x8xbf16>, vector<32x64xf32> -> vector<32x64xf32>
    %c3_65 = arith.constant 3 : index
    %c0_66 = arith.constant 0 : index
    %c0_67 = arith.constant 0 : index
    %71 = vector.load %arg17[%c3_65, %c0_66, %c0_67] : memref<4x32x64xf32, #tpu.memory_space<vmem>>, vector<1x32x64xf32>
    %72 = vector.shape_cast %71 : vector<1x32x64xf32> to vector<32x64xf32>
    %73 = vector.shape_cast %70 : vector<32x64xf32> to vector<1x32x64xf32>
    tpu.vector_store %arg17[%c3_65, %c0_66, %c0_67], %73 {strides = array<i32>} : memref<4x32x64xf32, #tpu.memory_space<vmem>>, vector<1x32x64xf32>,
    %c0_68 = arith.constant 0 : index
    %c0_69 = arith.constant 0 : index
    %c0_70 = arith.constant 0 : index
    %74 = vector.load %arg17[%c0_68, %c0_69, %c0_70] : memref<4x32x64xf32, #tpu.memory_space<vmem>>, vector<1x32x64xf32>
    %75 = vector.shape_cast %74 : vector<1x32x64xf32> to vector<32x64xf32>
    %c1_71 = arith.constant 1 : index
    %c0_72 = arith.constant 0 : index
    %c0_73 = arith.constant 0 : index
    %76 = vector.load %arg17[%c1_71, %c0_72, %c0_73] : memref<4x32x64xf32, #tpu.memory_space<vmem>>, vector<1x32x64xf32>
    %77 = vector.shape_cast %76 : vector<1x32x64xf32> to vector<32x64xf32>
    %78 = arith.maximumf %75, %77 : vector<32x64xf32>
    %c2_74 = arith.constant 2 : index
    %c0_75 = arith.constant 0 : index
    %c0_76 = arith.constant 0 : index
    %79 = vector.load %arg17[%c2_74, %c0_75, %c0_76] : memref<4x32x64xf32, #tpu.memory_space<vmem>>, vector<1x32x64xf32>
    %80 = vector.shape_cast %79 : vector<1x32x64xf32> to vector<32x64xf32>
    %81 = arith.maximumf %78, %80 : vector<32x64xf32>
    %c3_77 = arith.constant 3 : index
    %c0_78 = arith.constant 0 : index
    %c0_79 = arith.constant 0 : index
    %82 = vector.load %arg17[%c3_77, %c0_78, %c0_79] : memref<4x32x64xf32, #tpu.memory_space<vmem>>, vector<1x32x64xf32>
    %83 = vector.shape_cast %82 : vector<1x32x64xf32> to vector<32x64xf32>
    %84 = arith.maximumf %81, %83 : vector<32x64xf32>
    %c0_80 = arith.constant 0 : index
    %c0_81 = arith.constant 0 : index
    %c0_82 = arith.constant 0 : index
    %85 = vector.load %arg17[%c0_80, %c0_81, %c0_82] : memref<4x32x64xf32, #tpu.memory_space<vmem>>, vector<1x32x64xf32>
    %86 = vector.shape_cast %85 : vector<1x32x64xf32> to vector<32x64xf32>
    %87 = arith.subf %86, %84 : vector<32x64xf32>
    %88 = math.exp %87 : vector<32x64xf32>
    %c0_83 = arith.constant 0 : index
    %c0_84 = arith.constant 0 : index
    %c0_85 = arith.constant 0 : index
    %89 = vector.load %arg17[%c0_83, %c0_84, %c0_85] : memref<4x32x64xf32, #tpu.memory_space<vmem>>, vector<1x32x64xf32>
    %90 = vector.shape_cast %89 : vector<1x32x64xf32> to vector<32x64xf32>
    %91 = vector.shape_cast %88 : vector<32x64xf32> to vector<1x32x64xf32>
    tpu.vector_store %arg17[%c0_83, %c0_84, %c0_85], %91 {strides = array<i32>} : memref<4x32x64xf32, #tpu.memory_space<vmem>>, vector<1x32x64xf32>,
    %c1_86 = arith.constant 1 : index
    %c0_87 = arith.constant 0 : index
    %c0_88 = arith.constant 0 : index
    %92 = vector.load %arg17[%c1_86, %c0_87, %c0_88] : memref<4x32x64xf32, #tpu.memory_space<vmem>>, vector<1x32x64xf32>
    %93 = vector.shape_cast %92 : vector<1x32x64xf32> to vector<32x64xf32>
    %94 = arith.subf %93, %84 : vector<32x64xf32>
    %95 = math.exp %94 : vector<32x64xf32>
    %96 = arith.addf %88, %95 : vector<32x64xf32>
    %c1_89 = arith.constant 1 : index
    %c0_90 = arith.constant 0 : index
    %c0_91 = arith.constant 0 : index
    %97 = vector.load %arg17[%c1_89, %c0_90, %c0_91] : memref<4x32x64xf32, #tpu.memory_space<vmem>>, vector<1x32x64xf32>
    %98 = vector.shape_cast %97 : vector<1x32x64xf32> to vector<32x64xf32>
    %99 = vector.shape_cast %95 : vector<32x64xf32> to vector<1x32x64xf32>
    tpu.vector_store %arg17[%c1_89, %c0_90, %c0_91], %99 {strides = array<i32>} : memref<4x32x64xf32, #tpu.memory_space<vmem>>, vector<1x32x64xf32>,
    %c2_92 = arith.constant 2 : index
    %c0_93 = arith.constant 0 : index
    %c0_94 = arith.constant 0 : index
    %100 = vector.load %arg17[%c2_92, %c0_93, %c0_94] : memref<4x32x64xf32, #tpu.memory_space<vmem>>, vector<1x32x64xf32>
    %101 = vector.shape_cast %100 : vector<1x32x64xf32> to vector<32x64xf32>
    %102 = arith.subf %101, %84 : vector<32x64xf32>
    %103 = math.exp %102 : vector<32x64xf32>
    %104 = arith.addf %96, %103 : vector<32x64xf32>
    %c2_95 = arith.constant 2 : index
    %c0_96 = arith.constant 0 : index
    %c0_97 = arith.constant 0 : index
    %105 = vector.load %arg17[%c2_95, %c0_96, %c0_97] : memref<4x32x64xf32, #tpu.memory_space<vmem>>, vector<1x32x64xf32>
    %106 = vector.shape_cast %105 : vector<1x32x64xf32> to vector<32x64xf32>
    %107 = vector.shape_cast %103 : vector<32x64xf32> to vector<1x32x64xf32>
    tpu.vector_store %arg17[%c2_95, %c0_96, %c0_97], %107 {strides = array<i32>} : memref<4x32x64xf32, #tpu.memory_space<vmem>>, vector<1x32x64xf32>,
    %c3_98 = arith.constant 3 : index
    %c0_99 = arith.constant 0 : index
    %c0_100 = arith.constant 0 : index
    %108 = vector.load %arg17[%c3_98, %c0_99, %c0_100] : memref<4x32x64xf32, #tpu.memory_space<vmem>>, vector<1x32x64xf32>
    %109 = vector.shape_cast %108 : vector<1x32x64xf32> to vector<32x64xf32>
    %110 = arith.subf %109, %84 : vector<32x64xf32>
    %111 = math.exp %110 : vector<32x64xf32>
    %112 = arith.addf %104, %111 : vector<32x64xf32>
    %c3_101 = arith.constant 3 : index
    %c0_102 = arith.constant 0 : index
    %c0_103 = arith.constant 0 : index
    %113 = vector.load %arg17[%c3_101, %c0_102, %c0_103] : memref<4x32x64xf32, #tpu.memory_space<vmem>>, vector<1x32x64xf32>
    %114 = vector.shape_cast %113 : vector<1x32x64xf32> to vector<32x64xf32>
    %115 = vector.shape_cast %111 : vector<32x64xf32> to vector<1x32x64xf32>
    tpu.vector_store %arg17[%c3_101, %c0_102, %c0_103], %115 {strides = array<i32>} : memref<4x32x64xf32, #tpu.memory_space<vmem>>, vector<1x32x64xf32>,
    %116 = tpu.reciprocal %112 {approx = true} : vector<32x64xf32> -> vector<32x64xf32>
    %c0_104 = arith.constant 0 : index
    %c0_105 = arith.constant 0 : index
    %c0_106 = arith.constant 0 : index
    %117 = vector.load %arg17[%c0_104, %c0_105, %c0_106] : memref<4x32x64xf32, #tpu.memory_space<vmem>>, vector<1x32x64xf32>
    %118 = vector.shape_cast %117 : vector<1x32x64xf32> to vector<32x64xf32>
    %119 = arith.mulf %118, %116 : vector<32x64xf32>
    %120 = arith.truncf %119 : vector<32x64xf32> to vector<32x64xbf16>
    %c0_107 = arith.constant 0 : index
    %c0_108 = arith.constant 0 : index
    %121 = vector.load %arg16[%c0_107, %c0_108] : memref<64x32xbf16, #tpu.memory_space<vmem>>, vector<64x8xbf16>
    %cst_109 = arith.constant dense<0.000000e+00> : vector<32x8xf32>
    %122 = tpu.matmul %120, %121, %cst_109 {dimension_numbers = #tpu.dot_dimension_numbers<[1], [0], [0], [1], [0, 0, 1, 1], [], []>} : vector<32x64xbf16>, vector<64x8xbf16>, vector<32x8xf32> -> vector<32x8xf32>
    %c1_110 = arith.constant 1 : index
    %c0_111 = arith.constant 0 : index
    %c0_112 = arith.constant 0 : index
    %123 = vector.load %arg17[%c1_110, %c0_111, %c0_112] : memref<4x32x64xf32, #tpu.memory_space<vmem>>, vector<1x32x64xf32>
    %124 = vector.shape_cast %123 : vector<1x32x64xf32> to vector<32x64xf32>
    %125 = arith.mulf %124, %116 : vector<32x64xf32>
    %126 = arith.truncf %125 : vector<32x64xf32> to vector<32x64xbf16>
    %c0_113 = arith.constant 0 : index
    %c8_114 = arith.constant 8 : index
    %127 = vector.load %arg16[%c0_113, %c8_114] : memref<64x32xbf16, #tpu.memory_space<vmem>>, vector<64x8xbf16>
    %cst_115 = arith.constant dense<0.000000e+00> : vector<32x8xf32>
    %128 = tpu.matmul %126, %127, %cst_115 {dimension_numbers = #tpu.dot_dimension_numbers<[1], [0], [0], [1], [0, 0, 1, 1], [], []>} : vector<32x64xbf16>, vector<64x8xbf16>, vector<32x8xf32> -> vector<32x8xf32>
    %c2_116 = arith.constant 2 : index
    %c0_117 = arith.constant 0 : index
    %c0_118 = arith.constant 0 : index
    %129 = vector.load %arg17[%c2_116, %c0_117, %c0_118] : memref<4x32x64xf32, #tpu.memory_space<vmem>>, vector<1x32x64xf32>
    %130 = vector.shape_cast %129 : vector<1x32x64xf32> to vector<32x64xf32>
    %131 = arith.mulf %130, %116 : vector<32x64xf32>
    %132 = arith.truncf %131 : vector<32x64xf32> to vector<32x64xbf16>
    %c0_119 = arith.constant 0 : index
    %c16_120 = arith.constant 16 : index
    %133 = vector.load %arg16[%c0_119, %c16_120] : memref<64x32xbf16, #tpu.memory_space<vmem>>, vector<64x8xbf16>
    %cst_121 = arith.constant dense<0.000000e+00> : vector<32x8xf32>
    %134 = tpu.matmul %132, %133, %cst_121 {dimension_numbers = #tpu.dot_dimension_numbers<[1], [0], [0], [1], [0, 0, 1, 1], [], []>} : vector<32x64xbf16>, vector<64x8xbf16>, vector<32x8xf32> -> vector<32x8xf32>
    %c3_122 = arith.constant 3 : index
    %c0_123 = arith.constant 0 : index
    %c0_124 = arith.constant 0 : index
    %135 = vector.load %arg17[%c3_122, %c0_123, %c0_124] : memref<4x32x64xf32, #tpu.memory_space<vmem>>, vector<1x32x64xf32>
    %136 = vector.shape_cast %135 : vector<1x32x64xf32> to vector<32x64xf32>
    %137 = arith.mulf %136, %116 : vector<32x64xf32>
    %138 = arith.truncf %137 : vector<32x64xf32> to vector<32x64xbf16>
    %c0_125 = arith.constant 0 : index
    %c24_126 = arith.constant 24 : index
    %139 = vector.load %arg16[%c0_125, %c24_126] : memref<64x32xbf16, #tpu.memory_space<vmem>>, vector<64x8xbf16>
    %cst_127 = arith.constant dense<0.000000e+00> : vector<32x8xf32>
    %140 = tpu.matmul %138, %139, %cst_127 {dimension_numbers = #tpu.dot_dimension_numbers<[1], [0], [0], [1], [0, 0, 1, 1], [], []>} : vector<32x64xbf16>, vector<64x8xbf16>, vector<32x8xf32> -> vector<32x8xf32>
    %141 = tpu.concatenate %122, %128, %134, %140 in 1 : vector<32x8xf32>, vector<32x8xf32>, vector<32x8xf32>, vector<32x8xf32> -> vector<32x32xf32>
    %142 = arith.truncf %141 : vector<32x32xf32> to vector<32x32xbf16>
    %143 = vector.extract_strided_slice %142 {offsets = [0, 0], sizes = [8, 32], strides = [1, 1]} : vector<32x32xbf16> to vector<8x32xbf16>
    %c0_128 = arith.constant 0 : index
    %c0_129 = arith.constant 0 : index
    %c0_130 = arith.constant 0 : index
    %144 = vector.load %arg11[%c0_128, %c0_129, %c0_130] : memref<4x32x32xbf16, #tpu.memory_space<vmem>>, vector<1x32x32xbf16>
    %145 = vector.shape_cast %144 : vector<1x32x32xbf16> to vector<32x32xbf16>
    %cst_131 = arith.constant dense<0.000000e+00> : vector<8x32xf32>
    %146 = tpu.matmul %143, %145, %cst_131 {dimension_numbers = #tpu.dot_dimension_numbers<[1], [0], [0], [1], [0, 0, 1, 1], [], []>} : vector<8x32xbf16>, vector<32x32xbf16>, vector<8x32xf32> -> vector<8x32xf32>
    %147 = vector.extract_strided_slice %142 {offsets = [8, 0], sizes = [8, 32], strides = [1, 1]} : vector<32x32xbf16> to vector<8x32xbf16>
    %c1_132 = arith.constant 1 : index
    %c0_133 = arith.constant 0 : index
    %c0_134 = arith.constant 0 : index
    %148 = vector.load %arg11[%c1_132, %c0_133, %c0_134] : memref<4x32x32xbf16, #tpu.memory_space<vmem>>, vector<1x32x32xbf16>
    %149 = vector.shape_cast %148 : vector<1x32x32xbf16> to vector<32x32xbf16>
    %cst_135 = arith.constant dense<0.000000e+00> : vector<8x32xf32>
    %150 = tpu.matmul %147, %149, %cst_135 {dimension_numbers = #tpu.dot_dimension_numbers<[1], [0], [0], [1], [0, 0, 1, 1], [], []>} : vector<8x32xbf16>, vector<32x32xbf16>, vector<8x32xf32> -> vector<8x32xf32>
    %151 = arith.addf %146, %150 : vector<8x32xf32>
    %152 = vector.extract_strided_slice %142 {offsets = [16, 0], sizes = [8, 32], strides = [1, 1]} : vector<32x32xbf16> to vector<8x32xbf16>
    %c2_136 = arith.constant 2 : index
    %c0_137 = arith.constant 0 : index
    %c0_138 = arith.constant 0 : index
    %153 = vector.load %arg11[%c2_136, %c0_137, %c0_138] : memref<4x32x32xbf16, #tpu.memory_space<vmem>>, vector<1x32x32xbf16>
    %154 = vector.shape_cast %153 : vector<1x32x32xbf16> to vector<32x32xbf16>
    %cst_139 = arith.constant dense<0.000000e+00> : vector<8x32xf32>
    %155 = tpu.matmul %152, %154, %cst_139 {dimension_numbers = #tpu.dot_dimension_numbers<[1], [0], [0], [1], [0, 0, 1, 1], [], []>} : vector<8x32xbf16>, vector<32x32xbf16>, vector<8x32xf32> -> vector<8x32xf32>
    %156 = arith.addf %151, %155 : vector<8x32xf32>
    %157 = vector.extract_strided_slice %142 {offsets = [24, 0], sizes = [8, 32], strides = [1, 1]} : vector<32x32xbf16> to vector<8x32xbf16>
    %c3_140 = arith.constant 3 : index
    %c0_141 = arith.constant 0 : index
    %c0_142 = arith.constant 0 : index
    %158 = vector.load %arg11[%c3_140, %c0_141, %c0_142] : memref<4x32x32xbf16, #tpu.memory_space<vmem>>, vector<1x32x32xbf16>
    %159 = vector.shape_cast %158 : vector<1x32x32xbf16> to vector<32x32xbf16>
    %cst_143 = arith.constant dense<0.000000e+00> : vector<8x32xf32>
    %160 = tpu.matmul %157, %159, %cst_143 {dimension_numbers = #tpu.dot_dimension_numbers<[1], [0], [0], [1], [0, 0, 1, 1], [], []>} : vector<8x32xbf16>, vector<32x32xbf16>, vector<8x32xf32> -> vector<8x32xf32>
    %161 = arith.addf %156, %160 : vector<8x32xf32>
    %c0_144 = arith.constant 0 : index
    %c0_145 = arith.constant 0 : index
    %162 = vector.load %arg12[%c0_144, %c0_145] : memref<1x32xf32, #tpu.memory_space<vmem>>, vector<1x32xf32>
    %163 = vector.broadcast %162 : vector<1x32xf32> to vector<8x32xf32>
    %164 = arith.addf %161, %163 : vector<8x32xf32>
    %c0_146 = arith.constant 0 : index
    %c0_147 = arith.constant 0 : index
    %c0_148 = arith.constant 0 : index
    %165 = vector.load %arg13[%c0_146, %c0_147, %c0_148] : memref<1x8x32xf32, #tpu.memory_space<vmem>>, vector<1x8x32xf32>
    %166 = vector.shape_cast %165 : vector<1x8x32xf32> to vector<8x32xf32>
    %167 = vector.shape_cast %164 : vector<8x32xf32> to vector<1x8x32xf32>
    tpu.vector_store %arg13[%c0_146, %c0_147, %c0_148], %167 {strides = array<i32>} : memref<1x8x32xf32, #tpu.memory_space<vmem>>, vector<1x8x32xf32>,
    return
  }
  func.func @transform_0(%arg0: i32, %arg1: i32) -> (i32, i32, i32) {
    %c0_i32 = arith.constant 0 : i32
    %c0_i32_0 = arith.constant 0 : i32
    return %arg0, %arg1, %c0_i32 : i32, i32, i32
  }
  func.func @transform_1(%arg0: i32, %arg1: i32) -> (i32, i32, i32) {
    %c0_i32 = arith.constant 0 : i32
    %c0_i32_0 = arith.constant 0 : i32
    %c0_i32_1 = arith.constant 0 : i32
    return %arg0, %c0_i32, %c0_i32_0 : i32, i32, i32
  }
  func.func @transform_2(%arg0: i32, %arg1: i32) -> (i32, i32, i32) {
    %c0_i32 = arith.constant 0 : i32
    %c0_i32_0 = arith.constant 0 : i32
    %c0_i32_1 = arith.constant 0 : i32
    return %arg0, %c0_i32, %c0_i32_0 : i32, i32, i32
  }
  func.func @transform_3(%arg0: i32, %arg1: i32) -> (i32, i32, i32) {
    %c0_i32 = arith.constant 0 : i32
    %c0_i32_0 = arith.constant 0 : i32
    %c0_i32_1 = arith.constant 0 : i32
    %c0_i32_2 = arith.constant 0 : i32
    return %c0_i32, %c0_i32_0, %c0_i32_1 : i32, i32, i32
  }
  func.func @transform_4(%arg0: i32, %arg1: i32) -> (i32, i32, i32) {
    %c0_i32 = arith.constant 0 : i32
    %c0_i32_0 = arith.constant 0 : i32
    %c0_i32_1 = arith.constant 0 : i32
    %c0_i32_2 = arith.constant 0 : i32
    return %c0_i32, %c0_i32_0, %c0_i32_1 : i32, i32, i32
  }
  func.func @transform_5(%arg0: i32, %arg1: i32) -> (i32, i32, i32) {
    %c0_i32 = arith.constant 0 : i32
    %c0_i32_0 = arith.constant 0 : i32
    %c0_i32_1 = arith.constant 0 : i32
    %c0_i32_2 = arith.constant 0 : i32
    return %c0_i32, %c0_i32_0, %c0_i32_1 : i32, i32, i32
  }
  func.func @transform_6(%arg0: i32, %arg1: i32) -> (i32, i32, i32) {
    %c0_i32 = arith.constant 0 : i32
    %c0_i32_0 = arith.constant 0 : i32
    %c0_i32_1 = arith.constant 0 : i32
    %c0_i32_2 = arith.constant 0 : i32
    return %c0_i32, %c0_i32_0, %c0_i32_1 : i32, i32, i32
  }
  func.func @transform_7(%arg0: i32, %arg1: i32) -> (i32, i32, i32) {
    %c0_i32 = arith.constant 0 : i32
    %c0_i32_0 = arith.constant 0 : i32
    %c0_i32_1 = arith.constant 0 : i32
    %c0_i32_2 = arith.constant 0 : i32
    return %c0_i32, %c0_i32_0, %c0_i32_1 : i32, i32, i32
  }
  func.func @transform_8(%arg0: i32, %arg1: i32) -> (i32, i32, i32) {
    %c0_i32 = arith.constant 0 : i32
    %c0_i32_0 = arith.constant 0 : i32
    %c0_i32_1 = arith.constant 0 : i32
    %c0_i32_2 = arith.constant 0 : i32
    return %c0_i32, %c0_i32_0, %c0_i32_1 : i32, i32, i32
  }
  func.func @transform_9(%arg0: i32, %arg1: i32) -> (i32, i32, i32) {
    %c0_i32 = arith.constant 0 : i32
    %c0_i32_0 = arith.constant 0 : i32
    %c0_i32_1 = arith.constant 0 : i32
    %c0_i32_2 = arith.constant 0 : i32
    return %c0_i32, %c0_i32_0, %c0_i32_1 : i32, i32, i32
  }
  func.func @transform_10(%arg0: i32, %arg1: i32) -> (i32, i32) {
    %c0_i32 = arith.constant 0 : i32
    %c0_i32_0 = arith.constant 0 : i32
    %c0_i32_1 = arith.constant 0 : i32
    return %c0_i32, %c0_i32_0 : i32, i32
  }
  func.func @transform_11(%arg0: i32, %arg1: i32) -> (i32, i32, i32) {
    %c0_i32 = arith.constant 0 : i32
    %c0_i32_0 = arith.constant 0 : i32
    return %arg0, %arg1, %c0_i32 : i32, i32, i32
  }
}

</mosaic_0001>

<llo_original>
// kernel: tpu_custom_call.1
$region0: #{tpu_custom_call.1}
  #allocation0 [shape = 'u32[]', space=smem, size = 0x4, offset = 0x4, fixed_abs, tag = 'smem constant byte address 0x4 - core index']
  #allocation1 [shape = 'u32[144,128]{1,0:T(1,128)}', space=vmem, size = 0x12000, scoped, tag = 'internal scratch']
  #allocation2 [shape = 'f32[32,32]{1,0:T(8,128)}', space=vmem, size = 0x4000, scoped, tag = 'scratch operand']
  #allocation3 [shape = 'bf16[64,32]{1,0:T(16,128)(2,1)}', space=vmem, size = 0x4000, scoped, tag = 'scratch operand']
  #allocation4 [shape = 'bf16[64,32]{1,0:T(16,128)(2,1)}', space=vmem, size = 0x4000, scoped, tag = 'scratch operand']
  #allocation5 [shape = 'f32[4,32,64]{2,1,0:T(8,128)}', space=vmem, size = 0x10000, scoped, tag = 'scratch operand']
  %s0 = inlined_call_operand.hbm [shape: f32[2,16,32], index: 0, kind: input, shape index: {}]
  %s1 = inlined_call_operand.hbm [shape: f32[2,16,32], index: 1, kind: input, shape index: {}]
  %s2 = inlined_call_operand.hbm [shape: f32[2,16,32], index: 2, kind: input, shape index: {}]
  %s3 = inlined_call_operand.hbm [shape: bf16[4,32,32], index: 3, kind: input, shape index: {}]
  %s4 = inlined_call_operand.vmem [shape: f32[4,1,32], index: 4, kind: input, shape index: {}]
  %s5 = inlined_call_operand.hbm [shape: bf16[4,32,32], index: 5, kind: input, shape index: {}]
  %s6 = inlined_call_operand.vmem [shape: f32[4,1,32], index: 6, kind: input, shape index: {}]
  %s7 = inlined_call_operand.hbm [shape: bf16[4,32,32], index: 7, kind: input, shape index: {}]
  %s8 = inlined_call_operand.vmem [shape: f32[4,1,32], index: 8, kind: input, shape index: {}]
  %s9 = inlined_call_operand.hbm [shape: bf16[4,32,32], index: 9, kind: input, shape index: {}]
  %s10 = inlined_call_operand.vmem [shape: f32[1,32], index: 10, kind: input, shape index: {}]
  %s11 = inlined_call_operand.hbm [shape: f32[2,16,32], index: 11, kind: output, shape index: {}]
  %s12 = sld [smem:[#allocation0]]
  $region109: #{tpu_custom_call.1} parent=0
    _
  %s14 = ssub.s32 1, %s12
  %s15 = scalar_select 0, %s14, %s12
  $region1: #{tpu_custom_call.1} parent=0
    #allocation6 [shape = 'u8[8192]{0}', space=vmem, size = 0x2000, scoped, tag = 'input window, operand 0']
    #allocation7 [shape = 's32[2]{0}', space=sflag, size = 0x8, scoped, tag = 'scoped memory for tpu_custom_call.1']
    #allocation8 [shape = 's32[2]{0}', space=sflag, size = 0x8, scoped, tag = 'scoped memory for tpu_custom_call.1']
    #allocation9 [shape = 'u8[16384]{0}', space=vmem, size = 0x4000, scoped, tag = 'input window, operand 1']
    #allocation10 [shape = 's32[2]{0}', space=sflag, size = 0x8, scoped, tag = 'scoped memory for tpu_custom_call.1']
    #allocation11 [shape = 'u8[16384]{0}', space=vmem, size = 0x4000, scoped, tag = 'input window, operand 2']
    #allocation12 [shape = 'u8[32768]{0}', space=vmem, size = 0x8000, scoped, tag = 'input window, operand 3, single buffered']
    #allocation13 [shape = 's32[1]{0}', space=sflag, size = 0x4, scoped, tag = 'scoped memory for tpu_custom_call.1']
    #allocation14 [shape = 'u8[32768]{0}', space=vmem, size = 0x8000, scoped, tag = 'input window, operand 5, single buffered']
    #allocation15 [shape = 'u8[32768]{0}', space=vmem, size = 0x8000, scoped, tag = 'input window, operand 7, single buffered']
    #allocation16 [shape = 's32[1]{0}', space=sflag, size = 0x4, scoped, tag = 'scoped memory for tpu_custom_call.1']
    #allocation17 [shape = 'u8[32768]{0}', space=vmem, size = 0x8000, scoped, tag = 'input window, operand 9, single buffered']
    #allocation18 [shape = 'u8[8192]{0}', space=vmem, size = 0x2000, scoped, tag = 'output window, operand 0']
    %16 = vsyncpa [#allocation7], 0
    %s17 = scalar_lea.sflag [#allocation7], 1
    %18 = vsyncpa %s17, 0
    %19 = vsyncpa [#allocation10], 0
    %s20 = scalar_lea.sflag [#allocation10], 1
    %21 = vsyncpa %s20, 0
    %22 = vsyncpa [#allocation13], 0
    %23 = vsyncpa [#allocation16], 0
    %24 = vsyncpa [#allocation8], 0
    %s25 = scalar_lea.sflag [#allocation8], 1
    %26 = vsyncpa %s25, 0
    loop: start=0, step=1, limit=6
    $region2: #{tpu_custom_call.1} parent=1 // loop_pre_header
      _
    $region3: #{tpu_custom_call.1} parent=1 // loop_header
      %s28 = sphi 0, %s32
      %p29 = scmp.ge.s32.totalorder %s28, 6
      %s35 = sphi 0, %s47
      %s36 = sphi 0, %s43
      %s37 = sphi 0, %s35
      %s38 = sphi 0, %s36
      %s39 = sphi 0, %s37
      %s40 = sphi 0, %s38
      %s52 = sphi 0, %s54
      %s55 = sphi 0, %s52
      %s56 = sphi 0, %s55
      %s72 = sphi 0, %s56
      %s78 = sphi 0, %s80
      %s81 = sphi 0, %s78
      %s82 = sphi 0, %s81
      %s98 = sphi 0, %s82
      %s104 = sphi 0, %s106
      %s107 = sphi 0, %s104
      %s108 = sphi 0, %s107
      %s124 = sphi 0, %s108
      %s128 = sphi 0, %s128
      %s130 = sphi 0, %s128
      %s131 = sphi 0, %s130
      %s145 = sphi 0, %s131
      %s149 = sphi 0, %s149
      %s151 = sphi 0, %s149
      %s152 = sphi 0, %s151
      %s166 = sphi 0, %s152
      %s170 = sphi 0, %s170
      %s172 = sphi 0, %s170
      %s173 = sphi 0, %s172
      %s187 = sphi 0, %s173
      %s191 = sphi 0, %s191
      %s193 = sphi 0, %s191
      %s194 = sphi 0, %s193
      %s208 = sphi 0, %s194
      %s212 = sphi 0, %s212
      %s214 = sphi 0, %s212
      %s215 = sphi 0, %s214
      %s229 = sphi 0, %s215
      %s233 = sphi 0, %s233
      %s235 = sphi 0, %s233
      %s236 = sphi 0, %s235
      %s250 = sphi 0, %s236
      %s254 = sphi 0, %s254
      %s256 = sphi 0, %s254
      %s257 = sphi 0, %s256
      %s271 = sphi 0, %s257
      %s275 = sphi 0, %s275
      %s277 = sphi 0, %s275
      %s278 = sphi 0, %s277
      %s292 = sphi 0, %s278
      %s300 = sphi 0, %s302
      %s303 = sphi 0, %s300
      %s304 = sphi 0, %s303
      %s320 = sphi 0, %s304
    $region4: #{tpu_custom_call.1} parent=1 // loop_header_branch
      %31 = sbr.rel (%p29) target = $region8
    $region5: #{tpu_custom_call.1} parent=1 // loop_body
      %s33 = ssub.s32 %s28, 1
      %s34 = ssub.s32 %s28, 2
      %s41 = sadd.s32 1, %s36
      %p42 = scmp.ge.s32.totalorder %s41, 2
      %s43 = scalar_select %p42, 0, %s41
      %s44 = sadd.s32 1, %s35
      %s45 = scalar_select %p42, %s44, %s35
      %p46 = scmp.ge.s32.totalorder %s45, 2
      %s47 = scalar_select %p46, 0, %s45
      %s48 = ssub.s32 %s35, %s47
      %s49 = ssub.s32 %s36, %s43
      %s50 = sor.u32 %s48, %s49
      %p51 = scmp.eq.s32.totalorder %s50, 0
      %s53 = sadd.s32 %s52, 1
      %s54 = scalar_select %p51, %s52, %s53
      %p57 = pneg %p51
      %p58 = scmp.eq.s32.totalorder %s28, 3
      %p59 = por %p57, %p58
      %p60 = scmp.ne.s32.totalorder %s52, %s55
      %p61 = scmp.eq.s32.totalorder %s28, 0
      %p62 = por %p60, %p61
      %p63 = scmp.ne.s32.totalorder %s52, %s55
      %p64 = scmp.eq.s32.totalorder %s33, 3
      %p65 = por %p63, %p64
      %p66 = scmp.ne.s32.totalorder %s55, %s56
      %p67 = scmp.eq.s32.totalorder %s33, 0
      %p68 = por %p66, %p67
      %p69 = scmp.ne.s32.totalorder %s55, %s56
      %p70 = scmp.eq.s32.totalorder %s34, 3
      %p71 = por %p69, %p70
      %p73 = scmp.ne.s32.totalorder %s56, %s72
      %p74 = scmp.eq.s32.totalorder %s34, 0
      %p75 = por %p73, %p74
      %s76 = ssub.s32 %s35, %s47
      %p77 = scmp.eq.s32.totalorder %s76, 0
      %s79 = sadd.s32 %s78, 1
      %s80 = scalar_select %p77, %s78, %s79
      %p83 = pneg %p77
      %p84 = scmp.eq.s32.totalorder %s28, 3
      %p85 = por %p83, %p84
      %p86 = scmp.ne.s32.totalorder %s78, %s81
      %p87 = scmp.eq.s32.totalorder %s28, 0
      %p88 = por %p86, %p87
      %p89 = scmp.ne.s32.totalorder %s78, %s81
      %p90 = scmp.eq.s32.totalorder %s33, 3
      %p91 = por %p89, %p90
      %p92 = scmp.ne.s32.totalorder %s81, %s82
      %p93 = scmp.eq.s32.totalorder %s33, 0
      %p94 = por %p92, %p93
      %p95 = scmp.ne.s32.totalorder %s81, %s82
      %p96 = scmp.eq.s32.totalorder %s34, 3
      %p97 = por %p95, %p96
      %p99 = scmp.ne.s32.totalorder %s82, %s98
      %p100 = scmp.eq.s32.totalorder %s34, 0
      %p101 = por %p99, %p100
      %s102 = ssub.s32 %s35, %s47
      %p103 = scmp.eq.s32.totalorder %s102, 0
      %s105 = sadd.s32 %s104, 1
      %s106 = scalar_select %p103, %s104, %s105
      %p109 = pneg %p103
      %p110 = scmp.eq.s32.totalorder %s28, 3
      %p111 = por %p109, %p110
      %p112 = scmp.ne.s32.totalorder %s104, %s107
      %p113 = scmp.eq.s32.totalorder %s28, 0
      %p114 = por %p112, %p113
      %p115 = scmp.ne.s32.totalorder %s104, %s107
      %p116 = scmp.eq.s32.totalorder %s33, 3
      %p117 = por %p115, %p116
      %p118 = scmp.ne.s32.totalorder %s107, %s108
      %p119 = scmp.eq.s32.totalorder %s33, 0
      %p120 = por %p118, %p119
      %p121 = scmp.ne.s32.totalorder %s107, %s108
      %p122 = scmp.eq.s32.totalorder %s34, 3
      %p123 = por %p121, %p122
      %p125 = scmp.ne.s32.totalorder %s108, %s124
      %p126 = scmp.eq.s32.totalorder %s34, 0
      %p127 = por %p125, %p126
      %s129 = sadd.s32 %s128, 1
      %p132 = scmp.eq.s32.totalorder %s28, 3
      %p133 = scmp.ne.s32.totalorder %s128, %s130
      %p134 = scmp.eq.s32.totalorder %s28, 0
      %p135 = por %p133, %p134
      %p136 = scmp.ne.s32.totalorder %s128, %s130
      %p137 = scmp.eq.s32.totalorder %s33, 3
      %p138 = por %p136, %p137
      %p139 = scmp.ne.s32.totalorder %s130, %s131
      %p140 = scmp.eq.s32.totalorder %s33, 0
      %p141 = por %p139, %p140
      %p142 = scmp.ne.s32.totalorder %s130, %s131
      %p143 = scmp.eq.s32.totalorder %s34, 3
      %p144 = por %p142, %p143
      %p146 = scmp.ne.s32.totalorder %s131, %s145
      %p147 = scmp.eq.s32.totalorder %s34, 0
      %p148 = por %p146, %p147
      %s150 = sadd.s32 %s149, 1
      %p153 = scmp.eq.s32.totalorder %s28, 3
      %p154 = scmp.ne.s32.totalorder %s149, %s151
      %p155 = scmp.eq.s32.totalorder %s28, 0
      %p156 = por %p154, %p155
      %p157 = scmp.ne.s32.totalorder %s149, %s151
      %p158 = scmp.eq.s32.totalorder %s33, 3
      %p159 = por %p157, %p158
      %p160 = scmp.ne.s32.totalorder %s151, %s152
      %p161 = scmp.eq.s32.totalorder %s33, 0
      %p162 = por %p160, %p161
      %p163 = scmp.ne.s32.totalorder %s151, %s152
      %p164 = scmp.eq.s32.totalorder %s34, 3
      %p165 = por %p163, %p164
      %p167 = scmp.ne.s32.totalorder %s152, %s166
      %p168 = scmp.eq.s32.totalorder %s34, 0
      %p169 = por %p167, %p168
      %s171 = sadd.s32 %s170, 1
      %p174 = scmp.eq.s32.totalorder %s28, 3
      %p175 = scmp.ne.s32.totalorder %s170, %s172
      %p176 = scmp.eq.s32.totalorder %s28, 0
      %p177 = por %p175, %p176
      %p178 = scmp.ne.s32.totalorder %s170, %s172
      %p179 = scmp.eq.s32.totalorder %s33, 3
      %p180 = por %p178, %p179
      %p181 = scmp.ne.s32.totalorder %s172, %s173
      %p182 = scmp.eq.s32.totalorder %s33, 0
      %p183 = por %p181, %p182
      %p184 = scmp.ne.s32.totalorder %s172, %s173
      %p185 = scmp.eq.s32.totalorder %s34, 3
      %p186 = por %p184, %p185
      %p188 = scmp.ne.s32.totalorder %s173, %s187
      %p189 = scmp.eq.s32.totalorder %s34, 0
      %p190 = por %p188, %p189
      %s192 = sadd.s32 %s191, 1
      %p195 = scmp.eq.s32.totalorder %s28, 3
      %p196 = scmp.ne.s32.totalorder %s191, %s193
      %p197 = scmp.eq.s32.totalorder %s28, 0
      %p198 = por %p196, %p197
      %p199 = scmp.ne.s32.totalorder %s191, %s193
      %p200 = scmp.eq.s32.totalorder %s33, 3
      %p201 = por %p199, %p200
      %p202 = scmp.ne.s32.totalorder %s193, %s194
      %p203 = scmp.eq.s32.totalorder %s33, 0
      %p204 = por %p202, %p203
      %p205 = scmp.ne.s32.totalorder %s193, %s194
      %p206 = scmp.eq.s32.totalorder %s34, 3
      %p207 = por %p205, %p206
      %p209 = scmp.ne.s32.totalorder %s194, %s208
      %p210 = scmp.eq.s32.totalorder %s34, 0
      %p211 = por %p209, %p210
      %s213 = sadd.s32 %s212, 1
      %p216 = scmp.eq.s32.totalorder %s28, 3
      %p217 = scmp.ne.s32.totalorder %s212, %s214
      %p218 = scmp.eq.s32.totalorder %s28, 0
      %p219 = por %p217, %p218
      %p220 = scmp.ne.s32.totalorder %s212, %s214
      %p221 = scmp.eq.s32.totalorder %s33, 3
      %p222 = por %p220, %p221
      %p223 = scmp.ne.s32.totalorder %s214, %s215
      %p224 = scmp.eq.s32.totalorder %s33, 0
      %p225 = por %p223, %p224
      %p226 = scmp.ne.s32.totalorder %s214, %s215
      %p227 = scmp.eq.s32.totalorder %s34, 3
      %p228 = por %p226, %p227
      %p230 = scmp.ne.s32.totalorder %s215, %s229
      %p231 = scmp.eq.s32.totalorder %s34, 0
      %p232 = por %p230, %p231
      %s234 = sadd.s32 %s233, 1
      %p237 = scmp.eq.s32.totalorder %s28, 3
      %p238 = scmp.ne.s32.totalorder %s233, %s235
      %p239 = scmp.eq.s32.totalorder %s28, 0
      %p240 = por %p238, %p239
      %p241 = scmp.ne.s32.totalorder %s233, %s235
      %p242 = scmp.eq.s32.totalorder %s33, 3
      %p243 = por %p241, %p242
      %p244 = scmp.ne.s32.totalorder %s235, %s236
      %p245 = scmp.eq.s32.totalorder %s33, 0
      %p246 = por %p244, %p245
      %p247 = scmp.ne.s32.totalorder %s235, %s236
      %p248 = scmp.eq.s32.totalorder %s34, 3
      %p249 = por %p247, %p248
      %p251 = scmp.ne.s32.totalorder %s236, %s250
      %p252 = scmp.eq.s32.totalorder %s34, 0
      %p253 = por %p251, %p252
      %s255 = sadd.s32 %s254, 1
      %p258 = scmp.eq.s32.totalorder %s28, 3
      %p259 = scmp.ne.s32.totalorder %s254, %s256
      %p260 = scmp.eq.s32.totalorder %s28, 0
      %p261 = por %p259, %p260
      %p262 = scmp.ne.s32.totalorder %s254, %s256
      %p263 = scmp.eq.s32.totalorder %s33, 3
      %p264 = por %p262, %p263
      %p265 = scmp.ne.s32.totalorder %s256, %s257
      %p266 = scmp.eq.s32.totalorder %s33, 0
      %p267 = por %p265, %p266
      %p268 = scmp.ne.s32.totalorder %s256, %s257
      %p269 = scmp.eq.s32.totalorder %s34, 3
      %p270 = por %p268, %p269
      %p272 = scmp.ne.s32.totalorder %s257, %s271
      %p273 = scmp.eq.s32.totalorder %s34, 0
      %p274 = por %p272, %p273
      %s276 = sadd.s32 %s275, 1
      %p279 = scmp.eq.s32.totalorder %s28, 3
      %p280 = scmp.ne.s32.totalorder %s275, %s277
      %p281 = scmp.eq.s32.totalorder %s28, 0
      %p282 = por %p280, %p281
      %p283 = scmp.ne.s32.totalorder %s275, %s277
      %p284 = scmp.eq.s32.totalorder %s33, 3
      %p285 = por %p283, %p284
      %p286 = scmp.ne.s32.totalorder %s277, %s278
      %p287 = scmp.eq.s32.totalorder %s33, 0
      %p288 = por %p286, %p287
      %p289 = scmp.ne.s32.totalorder %s277, %s278
      %p290 = scmp.eq.s32.totalorder %s34, 3
      %p291 = por %p289, %p290
      %p293 = scmp.ne.s32.totalorder %s278, %s292
      %p294 = scmp.eq.s32.totalorder %s34, 0
      %p295 = por %p293, %p294
      %s296 = ssub.s32 %s35, %s47
      %s297 = ssub.s32 %s36, %s43
      %s298 = sor.u32 %s296, %s297
      %p299 = scmp.eq.s32.totalorder %s298, 0
      %s301 = sadd.s32 %s300, 1
      %s302 = scalar_select %p299, %s300, %s301
      %p305 = pneg %p299
      %p306 = scmp.eq.s32.totalorder %s28, 3
      %p307 = por %p305, %p306
      %p308 = scmp.ne.s32.totalorder %s300, %s303
      %p309 = scmp.eq.s32.totalorder %s28, 0
      %p310 = por %p308, %p309
      %p311 = scmp.ne.s32.totalorder %s300, %s303
      %p312 = scmp.eq.s32.totalorder %s33, 3
      %p313 = por %p311, %p312
      %p314 = scmp.ne.s32.totalorder %s303, %s304
      %p315 = scmp.eq.s32.totalorder %s33, 0
      %p316 = por %p314, %p315
      %p317 = scmp.ne.s32.totalorder %s303, %s304
      %p318 = scmp.eq.s32.totalorder %s34, 3
      %p319 = por %p317, %p318
      %p321 = scmp.ne.s32.totalorder %s304, %s320
      %p322 = scmp.eq.s32.totalorder %s34, 0
      %p323 = por %p321, %p322
      %p324 = scmp.le.s32.totalorder 1, %s28
      %p325 = scmp.lt.s32.totalorder %s28, 5
      %p326 = pnand %p324, %p325
      %p327 = pneg %p326
      // Predicated region
      $region9: #{tpu_custom_call.1} parent=5 // pred_check
        _
      $region10: #{tpu_custom_call.1} parent=5 // pred_check_branch
        %329 = sbr.rel (%p326) target = $region12
      $region11: #{tpu_custom_call.1} parent=5 // pred_region
        %s330 = ssub.s32 %s28, 1
        // Predicated region
        $region13: #{tpu_custom_call.1} parent=11 // pred_check
          %p331 = pneg %p141
        $region14: #{tpu_custom_call.1} parent=11 // pred_check_branch
          %333 = sbr.rel (%p331) target = $region16
        $region15: #{tpu_custom_call.1} parent=11 // pred_region
          %s335 = ssub.s32 1024, 1024
          %336 = vsyncadd [#allocation13], %s335
          %s337 = sshll.u32 [#allocation12], 4
          %s338 = int_to_ptr.vmem [resolvable:$true] %s337
          %343 = dma.hbm_to_vmem [thread:$0]  %s3, 1024, %s338, [#allocation13], 64, 64, 4
        $region16: #{tpu_custom_call.1} parent=11 // pred_fallthru
          _
        // Predicated region
        $region17: #{tpu_custom_call.1} parent=11 // pred_check
          %p344 = pneg %p162
        $region18: #{tpu_custom_call.1} parent=11 // pred_check_branch
          %346 = sbr.rel (%p344) target = $region20
        $region19: #{tpu_custom_call.1} parent=11 // pred_region
          _
        $region20: #{tpu_custom_call.1} parent=11 // pred_fallthru
          _
        // Predicated region
        $region21: #{tpu_custom_call.1} parent=11 // pred_check
          %p347 = pneg %p183
        $region22: #{tpu_custom_call.1} parent=11 // pred_check_branch
          %349 = sbr.rel (%p347) target = $region24
        $region23: #{tpu_custom_call.1} parent=11 // pred_region
          %s351 = ssub.s32 1024, 1024
          %352 = vsyncadd [#allocation13], %s351
          %s353 = sshll.u32 [#allocation14], 4
          %s354 = int_to_ptr.vmem [resolvable:$true] %s353
          %359 = dma.hbm_to_vmem [thread:$0]  %s5, 1024, %s354, [#allocation13], 64, 64, 4
        $region24: #{tpu_custom_call.1} parent=11 // pred_fallthru
          _
        // Predicated region
        $region25: #{tpu_custom_call.1} parent=11 // pred_check
          %p360 = pneg %p204
        $region26: #{tpu_custom_call.1} parent=11 // pred_check_branch
          %362 = sbr.rel (%p360) target = $region28
        $region27: #{tpu_custom_call.1} parent=11 // pred_region
          _
        $region28: #{tpu_custom_call.1} parent=11 // pred_fallthru
          _
        // Predicated region
        $region29: #{tpu_custom_call.1} parent=11 // pred_check
          %p363 = pneg %p225
        $region30: #{tpu_custom_call.1} parent=11 // pred_check_branch
          %365 = sbr.rel (%p363) target = $region32
        $region31: #{tpu_custom_call.1} parent=11 // pred_region
          %s367 = ssub.s32 1024, 1024
          %368 = vsyncadd [#allocation16], %s367
          %s369 = sshll.u32 [#allocation15], 4
          %s370 = int_to_ptr.vmem [resolvable:$true] %s369
          %375 = dma.hbm_to_vmem [thread:$0]  %s7, 1024, %s370, [#allocation16], 64, 64, 4
        $region32: #{tpu_custom_call.1} parent=11 // pred_fallthru
          _
        // Predicated region
        $region33: #{tpu_custom_call.1} parent=11 // pred_check
          %p376 = pneg %p246
        $region34: #{tpu_custom_call.1} parent=11 // pred_check_branch
          %378 = sbr.rel (%p376) target = $region36
        $region35: #{tpu_custom_call.1} parent=11 // pred_region
          _
        $region36: #{tpu_custom_call.1} parent=11 // pred_fallthru
          _
        // Predicated region
        $region37: #{tpu_custom_call.1} parent=11 // pred_check
          %p379 = pneg %p267
        $region38: #{tpu_custom_call.1} parent=11 // pred_check_branch
          %381 = sbr.rel (%p379) target = $region40
        $region39: #{tpu_custom_call.1} parent=11 // pred_region
          %s383 = ssub.s32 1024, 1024
          %384 = vsyncadd [#allocation16], %s383
          %s385 = sshll.u32 [#allocation17], 4
          %s386 = int_to_ptr.vmem [resolvable:$true] %s385
          %391 = dma.hbm_to_vmem [thread:$0]  %s9, 1024, %s386, [#allocation16], 64, 64, 4
        $region40: #{tpu_custom_call.1} parent=11 // pred_fallthru
          _
        // Predicated region
        $region41: #{tpu_custom_call.1} parent=11 // pred_check
          %p392 = pneg %p288
        $region42: #{tpu_custom_call.1} parent=11 // pred_check_branch
          %394 = sbr.rel (%p392) target = $region44
        $region43: #{tpu_custom_call.1} parent=11 // pred_region
          _
        $region44: #{tpu_custom_call.1} parent=11 // pred_fallthru
          _
      $region12: #{tpu_custom_call.1} parent=5 // pred_fallthru
        _
      %p395 = scmp.lt.s32.totalorder %s28, 4
      // Predicated region
      $region45: #{tpu_custom_call.1} parent=5 // pred_check
        %p396 = pneg %p395
      $region46: #{tpu_custom_call.1} parent=5 // pred_check_branch
        %398 = sbr.rel (%p396) target = $region48
      $region47: #{tpu_custom_call.1} parent=5 // pred_region
        // Predicated region
        $region49: #{tpu_custom_call.1} parent=47 // pred_check
          %p399 = pneg %p62
        $region50: #{tpu_custom_call.1} parent=47 // pred_check_branch
          %401 = sbr.rel (%p399) target = $region52
        $region51: #{tpu_custom_call.1} parent=47 // pred_region
          %s402 = sand.u32 %s52, 1
          %s403 = scalar_lea.sflag [#allocation7], %s402
          %s404 = sand.u32 %s52, 1
          %s405 = smul.addr %s404, 8
          %s406 = scalar_lea.vmem [#allocation6], %s405
          %s408 = ssub.s32 128, 128
          %409 = vsyncadd %s403, %s408
          %s410 = smul.addr %s35, 2
          %s411 = sadd.s32 %s36, %s410
          %s412 = smul.addr %s411, 128
          %s413 = scalar_lea.hbm %s0, %s412
          %s415 = sshll.u32 %s406, 4
          %s416 = int_to_ptr.vmem [resolvable:$true] %s415
          %418 = dma.hbm_to_vmem [thread:$0]  %s413, 128, %s416, %s403
        $region52: #{tpu_custom_call.1} parent=47 // pred_fallthru
          _
        // Predicated region
        $region53: #{tpu_custom_call.1} parent=47 // pred_check
          %p419 = pneg %p88
        $region54: #{tpu_custom_call.1} parent=47 // pred_check_branch
          %421 = sbr.rel (%p419) target = $region56
        $region55: #{tpu_custom_call.1} parent=47 // pred_region
          %s422 = sand.u32 %s28, 1
          %s423 = scalar_lea.sflag [#allocation10], %s422
          %s424 = sand.u32 %s78, 1
          %s425 = smul.addr %s424, 16
          %s426 = scalar_lea.vmem [#allocation9], %s425
          %s428 = ssub.s32 256, 256
          %429 = vsyncadd %s423, %s428
          %s430 = smul.addr %s35, 2
          %s431 = smul.addr %s430, 128
          %s432 = scalar_lea.hbm %s1, %s431
          %s433 = sshll.u32 %s426, 4
          %s434 = int_to_ptr.vmem [resolvable:$true] %s433
          %439 = dma.hbm_to_vmem [thread:$0]  %s432, 256, %s434, %s423, 128, 128, 8
        $region56: #{tpu_custom_call.1} parent=47 // pred_fallthru
          _
        // Predicated region
        $region57: #{tpu_custom_call.1} parent=47 // pred_check
          %p440 = pneg %p114
        $region58: #{tpu_custom_call.1} parent=47 // pred_check_branch
          %442 = sbr.rel (%p440) target = $region60
        $region59: #{tpu_custom_call.1} parent=47 // pred_region
          %s443 = sand.u32 %s28, 1
          %s444 = scalar_lea.sflag [#allocation10], %s443
          %s445 = sand.u32 %s104, 1
          %s446 = smul.addr %s445, 16
          %s447 = scalar_lea.vmem [#allocation11], %s446
          %s449 = ssub.s32 256, 256
          %450 = vsyncadd %s444, %s449
          %s451 = smul.addr %s35, 2
          %s452 = smul.addr %s451, 128
          %s453 = scalar_lea.hbm %s2, %s452
          %s454 = sshll.u32 %s447, 4
          %s455 = int_to_ptr.vmem [resolvable:$true] %s454
          %460 = dma.hbm_to_vmem [thread:$0]  %s453, 256, %s455, %s444, 128, 128, 8
        $region60: #{tpu_custom_call.1} parent=47 // pred_fallthru
          _
      $region48: #{tpu_custom_call.1} parent=5 // pred_fallthru
        _
      %p461 = scmp.le.s32.totalorder 1, %s28
      %p462 = scmp.lt.s32.totalorder %s28, 5
      %p463 = pnand %p461, %p462
      %p464 = pneg %p463
      // Predicated region
      $region61: #{tpu_custom_call.1} parent=5 // pred_check
        _
      $region62: #{tpu_custom_call.1} parent=5 // pred_check_branch
        %466 = sbr.rel (%p463) target = $region64
      $region63: #{tpu_custom_call.1} parent=5 // pred_region
        %s467 = ssub.s32 %s28, 1
        %s468 = sand.u32 %s55, 1
        %s469 = scalar_lea.sflag [#allocation7], %s468
        %s470 = sand.u32 %s55, 1
        %s471 = smul.addr %s470, 8
        %s472 = scalar_lea.vmem [#allocation6], %s471
        // Predicated region
        $region65: #{tpu_custom_call.1} parent=63 // pred_check
          %p473 = pneg %p68
        $region66: #{tpu_custom_call.1} parent=63 // pred_check_branch
          %475 = sbr.rel (%p473) target = $region68
        $region67: #{tpu_custom_call.1} parent=63 // pred_region
          %476 = dma.done %s469, 128
        $region68: #{tpu_custom_call.1} parent=63 // pred_fallthru
          _
        %s477 = sand.u32 %s33, 1
        %s478 = scalar_lea.sflag [#allocation10], %s477
        %s479 = sand.u32 %s81, 1
        %s480 = smul.addr %s479, 16
        %s481 = scalar_lea.vmem [#allocation9], %s480
        // Predicated region
        $region69: #{tpu_custom_call.1} parent=63 // pred_check
          %p482 = pneg %p94
        $region70: #{tpu_custom_call.1} parent=63 // pred_check_branch
          %484 = sbr.rel (%p482) target = $region72
        $region71: #{tpu_custom_call.1} parent=63 // pred_region
          %485 = dma.done %s478, 256
        $region72: #{tpu_custom_call.1} parent=63 // pred_fallthru
          _
        %s486 = sand.u32 %s33, 1
        %s487 = scalar_lea.sflag [#allocation10], %s486
        %s488 = sand.u32 %s107, 1
        %s489 = smul.addr %s488, 16
        %s490 = scalar_lea.vmem [#allocation11], %s489
        // Predicated region
        $region73: #{tpu_custom_call.1} parent=63 // pred_check
          %p491 = pneg %p120
        $region74: #{tpu_custom_call.1} parent=63 // pred_check_branch
          %493 = sbr.rel (%p491) target = $region76
        $region75: #{tpu_custom_call.1} parent=63 // pred_region
          %494 = dma.done %s487, 256
        $region76: #{tpu_custom_call.1} parent=63 // pred_fallthru
          _
        // Predicated region
        $region77: #{tpu_custom_call.1} parent=63 // pred_check
          %p495 = pneg %p141
        $region78: #{tpu_custom_call.1} parent=63 // pred_check_branch
          %497 = sbr.rel (%p495) target = $region80
        $region79: #{tpu_custom_call.1} parent=63 // pred_region
          %498 = dma.done [#allocation13], 1024
        $region80: #{tpu_custom_call.1} parent=63 // pred_fallthru
          _
        // Predicated region
        $region81: #{tpu_custom_call.1} parent=63 // pred_check
          %p499 = pneg %p183
        $region82: #{tpu_custom_call.1} parent=63 // pred_check_branch
          %501 = sbr.rel (%p499) target = $region84
        $region83: #{tpu_custom_call.1} parent=63 // pred_region
          %502 = dma.done [#allocation13], 1024
        $region84: #{tpu_custom_call.1} parent=63 // pred_fallthru
          _
        // Predicated region
        $region85: #{tpu_custom_call.1} parent=63 // pred_check
          %p503 = pneg %p225
        $region86: #{tpu_custom_call.1} parent=63 // pred_check_branch
          %505 = sbr.rel (%p503) target = $region88
        $region87: #{tpu_custom_call.1} parent=63 // pred_region
          %506 = dma.done [#allocation16], 1024
        $region88: #{tpu_custom_call.1} parent=63 // pred_fallthru
          _
        // Predicated region
        $region89: #{tpu_custom_call.1} parent=63 // pred_check
          %p507 = pneg %p267
        $region90: #{tpu_custom_call.1} parent=63 // pred_check_branch
          %509 = sbr.rel (%p507) target = $region92
        $region91: #{tpu_custom_call.1} parent=63 // pred_region
          %510 = dma.done [#allocation16], 1024
        $region92: #{tpu_custom_call.1} parent=63 // pred_fallthru
          _
        %s511 = sand.u32 %s55, 1
        %s512 = scalar_lea.sflag [#allocation7], %s511
        %s513 = sand.u32 %s55, 1
        %s514 = smul.addr %s513, 8
        %s515 = scalar_lea.vmem [#allocation6], %s514
        %p516 = pneg %p68
        %p517 = pneg %p65
        %s518 = sand.u32 %s33, 1
        %s519 = scalar_lea.sflag [#allocation10], %s518
        %s520 = sand.u32 %s81, 1
        %s521 = smul.addr %s520, 16
        %s522 = scalar_lea.vmem [#allocation9], %s521
        %p523 = pneg %p94
        %p524 = pneg %p91
        %s525 = sand.u32 %s33, 1
        %s526 = scalar_lea.sflag [#allocation10], %s525
        %s527 = sand.u32 %s107, 1
        %s528 = smul.addr %s527, 16
        %s529 = scalar_lea.vmem [#allocation11], %s528
        %p530 = pneg %p120
        %p531 = pneg %p117
        %p532 = pneg %p141
        %p533 = pneg %p138
        %p534 = pneg %p162
        %p535 = pneg %p159
        %p536 = pneg %p183
        %p537 = pneg %p180
        %p538 = pneg %p204
        %p539 = pneg %p201
        %p540 = pneg %p225
        %p541 = pneg %p222
        %p542 = pneg %p246
        %p543 = pneg %p243
        %p544 = pneg %p267
        %p545 = pneg %p264
        %p546 = pneg %p288
        %p547 = pneg %p285
        %p548 = pneg %p316
        %p549 = pneg %p313
        %s550 = sand.u32 %s303, 1
        %s551 = scalar_lea.sflag [#allocation8], %s550
        %s552 = sand.u32 %s303, 1
        %s553 = smul.addr %s552, 8
        %s554 = scalar_lea.vmem [#allocation18], %s553
        %p556 = scmp.eq.s32.totalorder %s38, 0
        // Predicated region
        $region93: #{tpu_custom_call.1} parent=63 // pred_check
          %p557 = pneg %p556
        $region94: #{tpu_custom_call.1} parent=63 // pred_check_branch
          %559 = sbr.rel (%p557) target = $region96
        $region95: #{tpu_custom_call.1} parent=63 // pred_region
          %v560 = vld [vmem:[%s481] sm:$0xff]
          %v561 = vld [vmem:[%s481 + $0x8] sm:$0xff]
          %v562 = vpack.c.bf16 %v561, %v560
          %v563 = vld [vmem:[%s490] sm:$0xff]
          %v564 = vld [vmem:[%s490 + $0x8] sm:$0xff]
          %v565 = vpack.c.bf16 %v564, %v563
          %v566 = vld [vmem:[#allocation14] sm:$0xf]
          %v567 = vld [vmem:[#allocation14 + $0x4] sm:$0xf]
          %v568 = vld [vmem:[#allocation14 + $0x8] sm:$0xf]
          %v569 = vld [vmem:[#allocation14 + $0xc] sm:$0xf]
          %v570 = vld [vmem:[%s6] sm:$0x1]
          %v572 = vlaneseq
          %v573 = vshrl.u32 %v572, 7
          %v574 = vsub.s32 0, %v573
          %v575 = vrot.slane %v570, %v574
          %v581 = vunpack.c.l.b16 %v566
          %v582 = vunpack.c.l.b16 %v567
          %v583 = vunpack.c.l.b16 %v568
          %v584 = vunpack.c.l.b16 %v569
          %v585 = vpack.c.b16 %v582, %v581
          %v586 = vpack.c.b16 %v584, %v583
          %vm589 = vcmask 261120
          %v591 = vsel %vm589, %v562, 0
          %593 = vmatprep.subr.bf16.mxu0 0
          %594 = vmatpush1.bf16.msra.mxu0 %v585
          %595 = vmatprep.subr.bf16.mxu0 0
          %596 = vmatpush1.bf16.msra.mxu0 %v586
          %597 = vmatprep.subr.bf16.mxu0 0
          %598 = vmatpush1.bf16.msra.mxu0 0
          %599 = vmatprep.subr.bf16.mxu0 0
          %600 = vmatpush1.bf16.msra.mxu0 0
          %601 = vmatprep.subr.bf16.mxu0 0
          %602 = vmatpush1.bf16.msra.mxu0 0
          %603 = vmatprep.subr.bf16.mxu0 0
          %604 = vmatpush1.bf16.msra.mxu0 0
          %605 = vmatprep.subr.bf16.mxu0 0
          %606 = vmatpush1.bf16.msra.mxu0 0
          %607 = vmatprep.subr.bf16.mxu0 0
          %608 = vmatpush1.bf16.msra.mxu0 0
          %609 = vmatprep.subr.bf16.mxu0 0
          %610 = vmatpush1.bf16.msra.mxu0 0
          %611 = vmatprep.subr.bf16.mxu0 0
          %612 = vmatpush1.bf16.msra.mxu0 0
          %613 = vmatprep.subr.bf16.mxu0 0
          %614 = vmatpush1.bf16.msra.mxu0 0
          %615 = vmatprep.subr.bf16.mxu0 0
          %616 = vmatpush1.bf16.msra.mxu0 0
          %617 = vmatprep.subr.bf16.mxu0 0
          %618 = vmatpush1.bf16.msra.mxu0 0
          %619 = vmatprep.subr.bf16.mxu0 0
          %620 = vmatpush1.bf16.msra.mxu0 0
          %621 = vmatprep.subr.bf16.mxu0 0
          %622 = vmatpush1.bf16.msra.mxu0 0
          %623 = vmatprep.subr.bf16.mxu0 0
          %624 = vmatpush1.bf16.msra.mxu0 0
          %625 = vmatprep.mubr.bf16.mxu0 0
          %626 = vmatmul.mubr.bf16.gmra.mrb[0].mxu0 %v591
          %v627 = vpop.f32.mrb[0].mxu0
          %v628 = vadd.f32 %v575, %v627
          %v629 = vpop.f32.mrb[0].mxu0
          %v630 = vpop.f32.mrb[0].mxu0
          %v631 = vadd.f32 %v575, %v630
          %v632 = vpop.f32.mrb[0].mxu0
          %633 = vdwg.mxu0
          %v634 = vld [vmem:[#allocation15] sm:$0xf]
          %v635 = vld [vmem:[#allocation15 + $0x4] sm:$0xf]
          %v636 = vld [vmem:[#allocation15 + $0x8] sm:$0xf]
          %v637 = vld [vmem:[#allocation15 + $0xc] sm:$0xf]
          %v638 = vld [vmem:[%s8] sm:$0x1]
          %v640 = vlaneseq
          %v641 = vshrl.u32 %v640, 7
          %v642 = vsub.s32 0, %v641
          %v643 = vrot.slane %v638, %v642
          %v649 = vunpack.c.l.b16 %v634
          %v650 = vunpack.c.l.b16 %v635
          %v651 = vunpack.c.l.b16 %v636
          %v652 = vunpack.c.l.b16 %v637
          %v653 = vpack.c.b16 %v650, %v649
          %v654 = vpack.c.b16 %v652, %v651
          %v658 = vsel %vm589, %v565, 0
          %660 = vmatprep.subr.bf16.mxu0 0
          %661 = vmatpush1.bf16.msra.mxu0 %v653
          %662 = vmatprep.subr.bf16.mxu0 0
          %663 = vmatpush1.bf16.msra.mxu0 %v654
          %664 = vmatprep.subr.bf16.mxu0 0
          %665 = vmatpush1.bf16.msra.mxu0 0
          %666 = vmatprep.subr.bf16.mxu0 0
          %667 = vmatpush1.bf16.msra.mxu0 0
          %668 = vmatprep.subr.bf16.mxu0 0
          %669 = vmatpush1.bf16.msra.mxu0 0
          %670 = vmatprep.subr.bf16.mxu0 0
          %671 = vmatpush1.bf16.msra.mxu0 0
          %672 = vmatprep.subr.bf16.mxu0 0
          %673 = vmatpush1.bf16.msra.mxu0 0
          %674 = vmatprep.subr.bf16.mxu0 0
          %675 = vmatpush1.bf16.msra.mxu0 0
          %676 = vmatprep.subr.bf16.mxu0 0
          %677 = vmatpush1.bf16.msra.mxu0 0
          %678 = vmatprep.subr.bf16.mxu0 0
          %679 = vmatpush1.bf16.msra.mxu0 0
          %680 = vmatprep.subr.bf16.mxu0 0
          %681 = vmatpush1.bf16.msra.mxu0 0
          %682 = vmatprep.subr.bf16.mxu0 0
          %683 = vmatpush1.bf16.msra.mxu0 0
          %684 = vmatprep.subr.bf16.mxu0 0
          %685 = vmatpush1.bf16.msra.mxu0 0
          %686 = vmatprep.subr.bf16.mxu0 0
          %687 = vmatpush1.bf16.msra.mxu0 0
          %688 = vmatprep.subr.bf16.mxu0 0
          %689 = vmatpush1.bf16.msra.mxu0 0
          %690 = vmatprep.subr.bf16.mxu0 0
          %691 = vmatpush1.bf16.msra.mxu0 0
          %692 = vmatprep.mubr.bf16.mxu0 0
          %693 = vmatmul.mubr.bf16.gmra.mrb[0].mxu0 %v658
          %v694 = vpop.f32.mrb[0].mxu0
          %v695 = vadd.f32 %v643, %v694
          %v696 = vpop.f32.mrb[0].mxu0
          %v697 = vpop.f32.mrb[0].mxu0
          %v698 = vadd.f32 %v643, %v697
          %v699 = vpop.f32.mrb[0].mxu0
          %700 = vdwg.mxu0
          %v701 = vpack.c.bf16 %v631, %v628
          %702 = vst.msk [vmem:[#allocation3] sm:$0xff] %vm589, %v701
          %v703 = vpack.c.bf16 %v698, %v695
          %704 = vst.msk [vmem:[#allocation4] sm:$0xff] %vm589, %v703
          %s705 = scalar_lea.vmem [#allocation14], 16
          %v706 = vld [vmem:[%s705] sm:$0xf]
          %v707 = vld [vmem:[%s705 + $0x4] sm:$0xf]
          %v708 = vld [vmem:[%s705 + $0x8] sm:$0xf]
          %v709 = vld [vmem:[%s705 + $0xc] sm:$0xf]
          %s710 = scalar_lea.vmem %s6, 1
          %v711 = vld [vmem:[%s710] sm:$0x1]
          %v713 = vlaneseq
          %v714 = vshrl.u32 %v713, 7
          %v715 = vsub.s32 0, %v714
          %v716 = vrot.slane %v711, %v715
          %v722 = vunpack.c.l.b16 %v706
          %v723 = vunpack.c.l.b16 %v707
          %v724 = vunpack.c.l.b16 %v708
          %v725 = vunpack.c.l.b16 %v709
          %v726 = vpack.c.b16 %v723, %v722
          %v727 = vpack.c.b16 %v725, %v724
          %730 = vmatprep.subr.bf16.mxu0 0
          %731 = vmatpush1.bf16.msra.mxu0 %v726
          %732 = vmatprep.subr.bf16.mxu0 0
          %733 = vmatpush1.bf16.msra.mxu0 %v727
          %734 = vmatprep.subr.bf16.mxu0 0
          %735 = vmatpush1.bf16.msra.mxu0 0
          %736 = vmatprep.subr.bf16.mxu0 0
          %737 = vmatpush1.bf16.msra.mxu0 0
          %738 = vmatprep.subr.bf16.mxu0 0
          %739 = vmatpush1.bf16.msra.mxu0 0
          %740 = vmatprep.subr.bf16.mxu0 0
          %741 = vmatpush1.bf16.msra.mxu0 0
          %742 = vmatprep.subr.bf16.mxu0 0
          %743 = vmatpush1.bf16.msra.mxu0 0
          %744 = vmatprep.subr.bf16.mxu0 0
          %745 = vmatpush1.bf16.msra.mxu0 0
          %746 = vmatprep.subr.bf16.mxu0 0
          %747 = vmatpush1.bf16.msra.mxu0 0
          %748 = vmatprep.subr.bf16.mxu0 0
          %749 = vmatpush1.bf16.msra.mxu0 0
          %750 = vmatprep.subr.bf16.mxu0 0
          %751 = vmatpush1.bf16.msra.mxu0 0
          %752 = vmatprep.subr.bf16.mxu0 0
          %753 = vmatpush1.bf16.msra.mxu0 0
          %754 = vmatprep.subr.bf16.mxu0 0
          %755 = vmatpush1.bf16.msra.mxu0 0
          %756 = vmatprep.subr.bf16.mxu0 0
          %757 = vmatpush1.bf16.msra.mxu0 0
          %758 = vmatprep.subr.bf16.mxu0 0
          %759 = vmatpush1.bf16.msra.mxu0 0
          %760 = vmatprep.subr.bf16.mxu0 0
          %761 = vmatpush1.bf16.msra.mxu0 0
          %762 = vmatprep.mubr.bf16.mxu0 0
          %763 = vmatmul.mubr.bf16.gmra.mrb[0].mxu0 %v591
          %v764 = vpop.f32.mrb[0].mxu0
          %v765 = vadd.f32 %v716, %v764
          %v766 = vpop.f32.mrb[0].mxu0
          %v767 = vpop.f32.mrb[0].mxu0
          %v768 = vadd.f32 %v716, %v767
          %v769 = vpop.f32.mrb[0].mxu0
          %770 = vdwg.mxu0
          %s771 = scalar_lea.vmem [#allocation15], 16
          %v772 = vld [vmem:[%s771] sm:$0xf]
          %v773 = vld [vmem:[%s771 + $0x4] sm:$0xf]
          %v774 = vld [vmem:[%s771 + $0x8] sm:$0xf]
          %v775 = vld [vmem:[%s771 + $0xc] sm:$0xf]
          %s776 = scalar_lea.vmem %s8, 1
          %v777 = vld [vmem:[%s776] sm:$0x1]
          %v779 = vlaneseq
          %v780 = vshrl.u32 %v779, 7
          %v781 = vsub.s32 0, %v780
          %v782 = vrot.slane %v777, %v781
          %v788 = vunpack.c.l.b16 %v772
          %v789 = vunpack.c.l.b16 %v773
          %v790 = vunpack.c.l.b16 %v774
          %v791 = vunpack.c.l.b16 %v775
          %v792 = vpack.c.b16 %v789, %v788
          %v793 = vpack.c.b16 %v791, %v790
          %796 = vmatprep.subr.bf16.mxu0 0
          %797 = vmatpush1.bf16.msra.mxu0 %v792
          %798 = vmatprep.subr.bf16.mxu0 0
          %799 = vmatpush1.bf16.msra.mxu0 %v793
          %800 = vmatprep.subr.bf16.mxu0 0
          %801 = vmatpush1.bf16.msra.mxu0 0
          %802 = vmatprep.subr.bf16.mxu0 0
          %803 = vmatpush1.bf16.msra.mxu0 0
          %804 = vmatprep.subr.bf16.mxu0 0
          %805 = vmatpush1.bf16.msra.mxu0 0
          %806 = vmatprep.subr.bf16.mxu0 0
          %807 = vmatpush1.bf16.msra.mxu0 0
          %808 = vmatprep.subr.bf16.mxu0 0
          %809 = vmatpush1.bf16.msra.mxu0 0
          %810 = vmatprep.subr.bf16.mxu0 0
          %811 = vmatpush1.bf16.msra.mxu0 0
          %812 = vmatprep.subr.bf16.mxu0 0
          %813 = vmatpush1.bf16.msra.mxu0 0
          %814 = vmatprep.subr.bf16.mxu0 0
          %815 = vmatpush1.bf16.msra.mxu0 0
          %816 = vmatprep.subr.bf16.mxu0 0
          %817 = vmatpush1.bf16.msra.mxu0 0
          %818 = vmatprep.subr.bf16.mxu0 0
          %819 = vmatpush1.bf16.msra.mxu0 0
          %820 = vmatprep.subr.bf16.mxu0 0
          %821 = vmatpush1.bf16.msra.mxu0 0
          %822 = vmatprep.subr.bf16.mxu0 0
          %823 = vmatpush1.bf16.msra.mxu0 0
          %824 = vmatprep.subr.bf16.mxu0 0
          %825 = vmatpush1.bf16.msra.mxu0 0
          %826 = vmatprep.subr.bf16.mxu0 0
          %827 = vmatpush1.bf16.msra.mxu0 0
          %828 = vmatprep.mubr.bf16.mxu0 0
          %829 = vmatmul.mubr.bf16.gmra.mrb[0].mxu0 %v658
          %v830 = vpop.f32.mrb[0].mxu0
          %v831 = vadd.f32 %v782, %v830
          %v832 = vpop.f32.mrb[0].mxu0
          %v833 = vpop.f32.mrb[0].mxu0
          %v834 = vadd.f32 %v782, %v833
          %v835 = vpop.f32.mrb[0].mxu0
          %836 = vdwg.mxu0
          %v837 = vpack.c.bf16 %v768, %v765
          %838 = vst.msk [vmem:[#allocation3 + $0x8] sm:$0xff] %vm589, %v837
          %v839 = vpack.c.bf16 %v834, %v831
          %840 = vst.msk [vmem:[#allocation4 + $0x8] sm:$0xff] %vm589, %v839
          %s841 = scalar_lea.vmem [#allocation14], 32
          %v842 = vld [vmem:[%s841] sm:$0xf]
          %v843 = vld [vmem:[%s841 + $0x4] sm:$0xf]
          %v844 = vld [vmem:[%s841 + $0x8] sm:$0xf]
          %v845 = vld [vmem:[%s841 + $0xc] sm:$0xf]
          %s846 = scalar_lea.vmem %s6, 2
          %v847 = vld [vmem:[%s846] sm:$0x1]
          %v849 = vlaneseq
          %v850 = vshrl.u32 %v849, 7
          %v851 = vsub.s32 0, %v850
          %v852 = vrot.slane %v847, %v851
          %v858 = vunpack.c.l.b16 %v842
          %v859 = vunpack.c.l.b16 %v843
          %v860 = vunpack.c.l.b16 %v844
          %v861 = vunpack.c.l.b16 %v845
          %v862 = vpack.c.b16 %v859, %v858
          %v863 = vpack.c.b16 %v861, %v860
          %866 = vmatprep.subr.bf16.mxu0 0
          %867 = vmatpush1.bf16.msra.mxu0 %v862
          %868 = vmatprep.subr.bf16.mxu0 0
          %869 = vmatpush1.bf16.msra.mxu0 %v863
          %870 = vmatprep.subr.bf16.mxu0 0
          %871 = vmatpush1.bf16.msra.mxu0 0
          %872 = vmatprep.subr.bf16.mxu0 0
          %873 = vmatpush1.bf16.msra.mxu0 0
          %874 = vmatprep.subr.bf16.mxu0 0
          %875 = vmatpush1.bf16.msra.mxu0 0
          %876 = vmatprep.subr.bf16.mxu0 0
          %877 = vmatpush1.bf16.msra.mxu0 0
          %878 = vmatprep.subr.bf16.mxu0 0
          %879 = vmatpush1.bf16.msra.mxu0 0
          %880 = vmatprep.subr.bf16.mxu0 0
          %881 = vmatpush1.bf16.msra.mxu0 0
          %882 = vmatprep.subr.bf16.mxu0 0
          %883 = vmatpush1.bf16.msra.mxu0 0
          %884 = vmatprep.subr.bf16.mxu0 0
          %885 = vmatpush1.bf16.msra.mxu0 0
          %886 = vmatprep.subr.bf16.mxu0 0
          %887 = vmatpush1.bf16.msra.mxu0 0
          %888 = vmatprep.subr.bf16.mxu0 0
          %889 = vmatpush1.bf16.msra.mxu0 0
          %890 = vmatprep.subr.bf16.mxu0 0
          %891 = vmatpush1.bf16.msra.mxu0 0
          %892 = vmatprep.subr.bf16.mxu0 0
          %893 = vmatpush1.bf16.msra.mxu0 0
          %894 = vmatprep.subr.bf16.mxu0 0
          %895 = vmatpush1.bf16.msra.mxu0 0
          %896 = vmatprep.subr.bf16.mxu0 0
          %897 = vmatpush1.bf16.msra.mxu0 0
          %898 = vmatprep.mubr.bf16.mxu0 0
          %899 = vmatmul.mubr.bf16.gmra.mrb[0].mxu0 %v591
          %v900 = vpop.f32.mrb[0].mxu0
          %v901 = vadd.f32 %v852, %v900
          %v902 = vpop.f32.mrb[0].mxu0
          %v903 = vpop.f32.mrb[0].mxu0
          %v904 = vadd.f32 %v852, %v903
          %v905 = vpop.f32.mrb[0].mxu0
          %906 = vdwg.mxu0
          %s907 = scalar_lea.vmem [#allocation15], 32
          %v908 = vld [vmem:[%s907] sm:$0xf]
          %v909 = vld [vmem:[%s907 + $0x4] sm:$0xf]
          %v910 = vld [vmem:[%s907 + $0x8] sm:$0xf]
          %v911 = vld [vmem:[%s907 + $0xc] sm:$0xf]
          %s912 = scalar_lea.vmem %s8, 2
          %v913 = vld [vmem:[%s912] sm:$0x1]
          %v915 = vlaneseq
          %v916 = vshrl.u32 %v915, 7
          %v917 = vsub.s32 0, %v916
          %v918 = vrot.slane %v913, %v917
          %v924 = vunpack.c.l.b16 %v908
          %v925 = vunpack.c.l.b16 %v909
          %v926 = vunpack.c.l.b16 %v910
          %v927 = vunpack.c.l.b16 %v911
          %v928 = vpack.c.b16 %v925, %v924
          %v929 = vpack.c.b16 %v927, %v926
          %932 = vmatprep.subr.bf16.mxu0 0
          %933 = vmatpush1.bf16.msra.mxu0 %v928
          %934 = vmatprep.subr.bf16.mxu0 0
          %935 = vmatpush1.bf16.msra.mxu0 %v929
          %936 = vmatprep.subr.bf16.mxu0 0
          %937 = vmatpush1.bf16.msra.mxu0 0
          %938 = vmatprep.subr.bf16.mxu0 0
          %939 = vmatpush1.bf16.msra.mxu0 0
          %940 = vmatprep.subr.bf16.mxu0 0
          %941 = vmatpush1.bf16.msra.mxu0 0
          %942 = vmatprep.subr.bf16.mxu0 0
          %943 = vmatpush1.bf16.msra.mxu0 0
          %944 = vmatprep.subr.bf16.mxu0 0
          %945 = vmatpush1.bf16.msra.mxu0 0
          %946 = vmatprep.subr.bf16.mxu0 0
          %947 = vmatpush1.bf16.msra.mxu0 0
          %948 = vmatprep.subr.bf16.mxu0 0
          %949 = vmatpush1.bf16.msra.mxu0 0
          %950 = vmatprep.subr.bf16.mxu0 0
          %951 = vmatpush1.bf16.msra.mxu0 0
          %952 = vmatprep.subr.bf16.mxu0 0
          %953 = vmatpush1.bf16.msra.mxu0 0
          %954 = vmatprep.subr.bf16.mxu0 0
          %955 = vmatpush1.bf16.msra.mxu0 0
          %956 = vmatprep.subr.bf16.mxu0 0
          %957 = vmatpush1.bf16.msra.mxu0 0
          %958 = vmatprep.subr.bf16.mxu0 0
          %959 = vmatpush1.bf16.msra.mxu0 0
          %960 = vmatprep.subr.bf16.mxu0 0
          %961 = vmatpush1.bf16.msra.mxu0 0
          %962 = vmatprep.subr.bf16.mxu0 0
          %963 = vmatpush1.bf16.msra.mxu0 0
          %964 = vmatprep.mubr.bf16.mxu0 0
          %965 = vmatmul.mubr.bf16.gmra.mrb[0].mxu0 %v658
          %v966 = vpop.f32.mrb[0].mxu0
          %v967 = vadd.f32 %v918, %v966
          %v968 = vpop.f32.mrb[0].mxu0
          %v969 = vpop.f32.mrb[0].mxu0
          %v970 = vadd.f32 %v918, %v969
          %v971 = vpop.f32.mrb[0].mxu0
          %972 = vdwg.mxu0
          %v973 = vpack.c.bf16 %v904, %v901
          %974 = vst.msk [vmem:[#allocation3 + $0x10] sm:$0xff] %vm589, %v973
          %v975 = vpack.c.bf16 %v970, %v967
          %976 = vst.msk [vmem:[#allocation4 + $0x10] sm:$0xff] %vm589, %v975
          %s977 = scalar_lea.vmem [#allocation14], 48
          %v978 = vld [vmem:[%s977] sm:$0xf]
          %v979 = vld [vmem:[%s977 + $0x4] sm:$0xf]
          %v980 = vld [vmem:[%s977 + $0x8] sm:$0xf]
          %v981 = vld [vmem:[%s977 + $0xc] sm:$0xf]
          %s982 = scalar_lea.vmem %s6, 3
          %v983 = vld [vmem:[%s982] sm:$0x1]
          %v985 = vlaneseq
          %v986 = vshrl.u32 %v985, 7
          %v987 = vsub.s32 0, %v986
          %v988 = vrot.slane %v983, %v987
          %v994 = vunpack.c.l.b16 %v978
          %v995 = vunpack.c.l.b16 %v979
          %v996 = vunpack.c.l.b16 %v980
          %v997 = vunpack.c.l.b16 %v981
          %v998 = vpack.c.b16 %v995, %v994
          %v999 = vpack.c.b16 %v997, %v996
          %1002 = vmatprep.subr.bf16.mxu0 0
          %1003 = vmatpush1.bf16.msra.mxu0 %v998
          %1004 = vmatprep.subr.bf16.mxu0 0
          %1005 = vmatpush1.bf16.msra.mxu0 %v999
          %1006 = vmatprep.subr.bf16.mxu0 0
          %1007 = vmatpush1.bf16.msra.mxu0 0
          %1008 = vmatprep.subr.bf16.mxu0 0
          %1009 = vmatpush1.bf16.msra.mxu0 0
          %1010 = vmatprep.subr.bf16.mxu0 0
          %1011 = vmatpush1.bf16.msra.mxu0 0
          %1012 = vmatprep.subr.bf16.mxu0 0
          %1013 = vmatpush1.bf16.msra.mxu0 0
          %1014 = vmatprep.subr.bf16.mxu0 0
          %1015 = vmatpush1.bf16.msra.mxu0 0
          %1016 = vmatprep.subr.bf16.mxu0 0
          %1017 = vmatpush1.bf16.msra.mxu0 0
          %1018 = vmatprep.subr.bf16.mxu0 0
          %1019 = vmatpush1.bf16.msra.mxu0 0
          %1020 = vmatprep.subr.bf16.mxu0 0
          %1021 = vmatpush1.bf16.msra.mxu0 0
          %1022 = vmatprep.subr.bf16.mxu0 0
          %1023 = vmatpush1.bf16.msra.mxu0 0
          %1024 = vmatprep.subr.bf16.mxu0 0
          %1025 = vmatpush1.bf16.msra.mxu0 0
          %1026 = vmatprep.subr.bf16.mxu0 0
          %1027 = vmatpush1.bf16.msra.mxu0 0
          %1028 = vmatprep.subr.bf16.mxu0 0
          %1029 = vmatpush1.bf16.msra.mxu0 0
          %1030 = vmatprep.subr.bf16.mxu0 0
          %1031 = vmatpush1.bf16.msra.mxu0 0
          %1032 = vmatprep.subr.bf16.mxu0 0
          %1033 = vmatpush1.bf16.msra.mxu0 0
          %1034 = vmatprep.mubr.bf16.mxu0 0
          %1035 = vmatmul.mubr.bf16.gmra.mrb[0].mxu0 %v591
          %v1036 = vpop.f32.mrb[0].mxu0
          %v1037 = vadd.f32 %v988, %v1036
          %v1038 = vpop.f32.mrb[0].mxu0
          %v1039 = vpop.f32.mrb[0].mxu0
          %v1040 = vadd.f32 %v988, %v1039
          %v1041 = vpop.f32.mrb[0].mxu0
          %1042 = vdwg.mxu0
          %s1043 = scalar_lea.vmem [#allocation15], 48
          %v1044 = vld [vmem:[%s1043] sm:$0xf]
          %v1045 = vld [vmem:[%s1043 + $0x4] sm:$0xf]
          %v1046 = vld [vmem:[%s1043 + $0x8] sm:$0xf]
          %v1047 = vld [vmem:[%s1043 + $0xc] sm:$0xf]
          %s1048 = scalar_lea.vmem %s8, 3
          %v1049 = vld [vmem:[%s1048] sm:$0x1]
          %v1051 = vlaneseq
          %v1052 = vshrl.u32 %v1051, 7
          %v1053 = vsub.s32 0, %v1052
          %v1054 = vrot.slane %v1049, %v1053
          %v1060 = vunpack.c.l.b16 %v1044
          %v1061 = vunpack.c.l.b16 %v1045
          %v1062 = vunpack.c.l.b16 %v1046
          %v1063 = vunpack.c.l.b16 %v1047
          %v1064 = vpack.c.b16 %v1061, %v1060
          %v1065 = vpack.c.b16 %v1063, %v1062
          %1068 = vmatprep.subr.bf16.mxu0 0
          %1069 = vmatpush1.bf16.msra.mxu0 %v1064
          %1070 = vmatprep.subr.bf16.mxu0 0
          %1071 = vmatpush1.bf16.msra.mxu0 %v1065
          %1072 = vmatprep.subr.bf16.mxu0 0
          %1073 = vmatpush1.bf16.msra.mxu0 0
          %1074 = vmatprep.subr.bf16.mxu0 0
          %1075 = vmatpush1.bf16.msra.mxu0 0
          %1076 = vmatprep.subr.bf16.mxu0 0
          %1077 = vmatpush1.bf16.msra.mxu0 0
          %1078 = vmatprep.subr.bf16.mxu0 0
          %1079 = vmatpush1.bf16.msra.mxu0 0
          %1080 = vmatprep.subr.bf16.mxu0 0
          %1081 = vmatpush1.bf16.msra.mxu0 0
          %1082 = vmatprep.subr.bf16.mxu0 0
          %1083 = vmatpush1.bf16.msra.mxu0 0
          %1084 = vmatprep.subr.bf16.mxu0 0
          %1085 = vmatpush1.bf16.msra.mxu0 0
          %1086 = vmatprep.subr.bf16.mxu0 0
          %1087 = vmatpush1.bf16.msra.mxu0 0
          %1088 = vmatprep.subr.bf16.mxu0 0
          %1089 = vmatpush1.bf16.msra.mxu0 0
          %1090 = vmatprep.subr.bf16.mxu0 0
          %1091 = vmatpush1.bf16.msra.mxu0 0
          %1092 = vmatprep.subr.bf16.mxu0 0
          %1093 = vmatpush1.bf16.msra.mxu0 0
          %1094 = vmatprep.subr.bf16.mxu0 0
          %1095 = vmatpush1.bf16.msra.mxu0 0
          %1096 = vmatprep.subr.bf16.mxu0 0
          %1097 = vmatpush1.bf16.msra.mxu0 0
          %1098 = vmatprep.subr.bf16.mxu0 0
          %1099 = vmatpush1.bf16.msra.mxu0 0
          %1100 = vmatprep.mubr.bf16.mxu0 0
          %1101 = vmatmul.mubr.bf16.gmra.mrb[0].mxu0 %v658
          %v1102 = vpop.f32.mrb[0].mxu0
          %v1103 = vadd.f32 %v1054, %v1102
          %v1104 = vpop.f32.mrb[0].mxu0
          %v1105 = vpop.f32.mrb[0].mxu0
          %v1106 = vadd.f32 %v1054, %v1105
          %v1107 = vpop.f32.mrb[0].mxu0
          %1108 = vdwg.mxu0
          %v1109 = vpack.c.bf16 %v1040, %v1037
          %1110 = vst.msk [vmem:[#allocation3 + $0x18] sm:$0xff] %vm589, %v1109
          %v1111 = vpack.c.bf16 %v1106, %v1103
          %1112 = vst.msk [vmem:[#allocation4 + $0x18] sm:$0xff] %vm589, %v1111
        $region96: #{tpu_custom_call.1} parent=63 // pred_fallthru
          _
        %v1113 = vld [vmem:[%s472] sm:$0xff]
        %v1114 = vpack.c.bf16 %v1113, %v1113
        %v1115 = vld [vmem:[#allocation12] sm:$0xf]
        %v1116 = vld [vmem:[#allocation12 + $0x4] sm:$0xf]
        %v1117 = vld [vmem:[#allocation12 + $0x8] sm:$0xf]
        %v1118 = vld [vmem:[#allocation12 + $0xc] sm:$0xf]
        %v1119 = vld [vmem:[%s4] sm:$0x1]
        %v1121 = vlaneseq
        %v1122 = vshrl.u32 %v1121, 7
        %v1123 = vsub.s32 0, %v1122
        %v1124 = vrot.slane %v1119, %v1123
        %v1130 = vunpack.c.l.b16 %v1115
        %v1131 = vunpack.c.l.b16 %v1116
        %v1132 = vunpack.c.l.b16 %v1117
        %v1133 = vunpack.c.l.b16 %v1118
        %v1134 = vpack.c.b16 %v1131, %v1130
        %v1135 = vpack.c.b16 %v1133, %v1132
        %vm1138 = vcmask 261120
        %v1140 = vsel %vm1138, %v1114, 0
        %1142 = vmatprep.subr.bf16.mxu0 0
        %1143 = vmatpush1.bf16.msra.mxu0 %v1134
        %1144 = vmatprep.subr.bf16.mxu0 0
        %1145 = vmatpush1.bf16.msra.mxu0 %v1135
        %1146 = vmatprep.subr.bf16.mxu0 0
        %1147 = vmatpush1.bf16.msra.mxu0 0
        %1148 = vmatprep.subr.bf16.mxu0 0
        %1149 = vmatpush1.bf16.msra.mxu0 0
        %1150 = vmatprep.subr.bf16.mxu0 0
        %1151 = vmatpush1.bf16.msra.mxu0 0
        %1152 = vmatprep.subr.bf16.mxu0 0
        %1153 = vmatpush1.bf16.msra.mxu0 0
        %1154 = vmatprep.subr.bf16.mxu0 0
        %1155 = vmatpush1.bf16.msra.mxu0 0
        %1156 = vmatprep.subr.bf16.mxu0 0
        %1157 = vmatpush1.bf16.msra.mxu0 0
        %1158 = vmatprep.subr.bf16.mxu0 0
        %1159 = vmatpush1.bf16.msra.mxu0 0
        %1160 = vmatprep.subr.bf16.mxu0 0
        %1161 = vmatpush1.bf16.msra.mxu0 0
        %1162 = vmatprep.subr.bf16.mxu0 0
        %1163 = vmatpush1.bf16.msra.mxu0 0
        %1164 = vmatprep.subr.bf16.mxu0 0
        %1165 = vmatpush1.bf16.msra.mxu0 0
        %1166 = vmatprep.subr.bf16.mxu0 0
        %1167 = vmatpush1.bf16.msra.mxu0 0
        %1168 = vmatprep.subr.bf16.mxu0 0
        %1169 = vmatpush1.bf16.msra.mxu0 0
        %1170 = vmatprep.subr.bf16.mxu0 0
        %1171 = vmatpush1.bf16.msra.mxu0 0
        %1172 = vmatprep.subr.bf16.mxu0 0
        %1173 = vmatpush1.bf16.msra.mxu0 0
        %1174 = vmatprep.mubr.bf16.mxu0 0
        %1175 = vmatmul.mubr.bf16.gmra.mrb[0].mxu0 %v1140
        %v1176 = vpop.f32.mrb[0].mxu0
        %v1177 = vadd.f32 %v1124, %v1176
        %v1178 = vpop.f32.mrb[0].mxu0
        %v1179 = vpop.f32.mrb[0].mxu0
        %v1180 = vpop.f32.mrb[0].mxu0
        %1181 = vdwg.mxu0
        %v1182 = vmul.f32 %v1177, 0.35355338
        %1183 = vst.msk [vmem:[#allocation2] sm:$0xff] %vm1138, %v1182
        %s1184 = scalar_lea.vmem [#allocation12], 16
        %v1185 = vld [vmem:[%s1184] sm:$0xf]
        %v1186 = vld [vmem:[%s1184 + $0x4] sm:$0xf]
        %v1187 = vld [vmem:[%s1184 + $0x8] sm:$0xf]
        %v1188 = vld [vmem:[%s1184 + $0xc] sm:$0xf]
        %s1189 = scalar_lea.vmem %s4, 1
        %v1190 = vld [vmem:[%s1189] sm:$0x1]
        %v1192 = vlaneseq
        %v1193 = vshrl.u32 %v1192, 7
        %v1194 = vsub.s32 0, %v1193
        %v1195 = vrot.slane %v1190, %v1194
        %v1201 = vunpack.c.l.b16 %v1185
        %v1202 = vunpack.c.l.b16 %v1186
        %v1203 = vunpack.c.l.b16 %v1187
        %v1204 = vunpack.c.l.b16 %v1188
        %v1205 = vpack.c.b16 %v1202, %v1201
        %v1206 = vpack.c.b16 %v1204, %v1203
        %1209 = vmatprep.subr.bf16.mxu0 0
        %1210 = vmatpush1.bf16.msra.mxu0 %v1205
        %1211 = vmatprep.subr.bf16.mxu0 0
        %1212 = vmatpush1.bf16.msra.mxu0 %v1206
        %1213 = vmatprep.subr.bf16.mxu0 0
        %1214 = vmatpush1.bf16.msra.mxu0 0
        %1215 = vmatprep.subr.bf16.mxu0 0
        %1216 = vmatpush1.bf16.msra.mxu0 0
        %1217 = vmatprep.subr.bf16.mxu0 0
        %1218 = vmatpush1.bf16.msra.mxu0 0
        %1219 = vmatprep.subr.bf16.mxu0 0
        %1220 = vmatpush1.bf16.msra.mxu0 0
        %1221 = vmatprep.subr.bf16.mxu0 0
        %1222 = vmatpush1.bf16.msra.mxu0 0
        %1223 = vmatprep.subr.bf16.mxu0 0
        %1224 = vmatpush1.bf16.msra.mxu0 0
        %1225 = vmatprep.subr.bf16.mxu0 0
        %1226 = vmatpush1.bf16.msra.mxu0 0
        %1227 = vmatprep.subr.bf16.mxu0 0
        %1228 = vmatpush1.bf16.msra.mxu0 0
        %1229 = vmatprep.subr.bf16.mxu0 0
        %1230 = vmatpush1.bf16.msra.mxu0 0
        %1231 = vmatprep.subr.bf16.mxu0 0
        %1232 = vmatpush1.bf16.msra.mxu0 0
        %1233 = vmatprep.subr.bf16.mxu0 0
        %1234 = vmatpush1.bf16.msra.mxu0 0
        %1235 = vmatprep.subr.bf16.mxu0 0
        %1236 = vmatpush1.bf16.msra.mxu0 0
        %1237 = vmatprep.subr.bf16.mxu0 0
        %1238 = vmatpush1.bf16.msra.mxu0 0
        %1239 = vmatprep.subr.bf16.mxu0 0
        %1240 = vmatpush1.bf16.msra.mxu0 0
        %1241 = vmatprep.mubr.bf16.mxu0 0
        %1242 = vmatmul.mubr.bf16.gmra.mrb[0].mxu0 %v1140
        %v1243 = vpop.f32.mrb[0].mxu0
        %v1244 = vadd.f32 %v1195, %v1243
        %v1245 = vpop.f32.mrb[0].mxu0
        %v1246 = vpop.f32.mrb[0].mxu0
        %v1247 = vpop.f32.mrb[0].mxu0
        %1248 = vdwg.mxu0
        %v1249 = vmul.f32 %v1244, 0.35355338
        %1250 = vst.msk [vmem:[#allocation2 + $0x8] sm:$0xff] %vm1138, %v1249
        %s1251 = scalar_lea.vmem [#allocation12], 32
        %v1252 = vld [vmem:[%s1251] sm:$0xf]
        %v1253 = vld [vmem:[%s1251 + $0x4] sm:$0xf]
        %v1254 = vld [vmem:[%s1251 + $0x8] sm:$0xf]
        %v1255 = vld [vmem:[%s1251 + $0xc] sm:$0xf]
        %s1256 = scalar_lea.vmem %s4, 2
        %v1257 = vld [vmem:[%s1256] sm:$0x1]
        %v1259 = vlaneseq
        %v1260 = vshrl.u32 %v1259, 7
        %v1261 = vsub.s32 0, %v1260
        %v1262 = vrot.slane %v1257, %v1261
        %v1268 = vunpack.c.l.b16 %v1252
        %v1269 = vunpack.c.l.b16 %v1253
        %v1270 = vunpack.c.l.b16 %v1254
        %v1271 = vunpack.c.l.b16 %v1255
        %v1272 = vpack.c.b16 %v1269, %v1268
        %v1273 = vpack.c.b16 %v1271, %v1270
        %1276 = vmatprep.subr.bf16.mxu0 0
        %1277 = vmatpush1.bf16.msra.mxu0 %v1272
        %1278 = vmatprep.subr.bf16.mxu0 0
        %1279 = vmatpush1.bf16.msra.mxu0 %v1273
        %1280 = vmatprep.subr.bf16.mxu0 0
        %1281 = vmatpush1.bf16.msra.mxu0 0
        %1282 = vmatprep.subr.bf16.mxu0 0
        %1283 = vmatpush1.bf16.msra.mxu0 0
        %1284 = vmatprep.subr.bf16.mxu0 0
        %1285 = vmatpush1.bf16.msra.mxu0 0
        %1286 = vmatprep.subr.bf16.mxu0 0
        %1287 = vmatpush1.bf16.msra.mxu0 0
        %1288 = vmatprep.subr.bf16.mxu0 0
        %1289 = vmatpush1.bf16.msra.mxu0 0
        %1290 = vmatprep.subr.bf16.mxu0 0
        %1291 = vmatpush1.bf16.msra.mxu0 0
        %1292 = vmatprep.subr.bf16.mxu0 0
        %1293 = vmatpush1.bf16.msra.mxu0 0
        %1294 = vmatprep.subr.bf16.mxu0 0
        %1295 = vmatpush1.bf16.msra.mxu0 0
        %1296 = vmatprep.subr.bf16.mxu0 0
        %1297 = vmatpush1.bf16.msra.mxu0 0
        %1298 = vmatprep.subr.bf16.mxu0 0
        %1299 = vmatpush1.bf16.msra.mxu0 0
        %1300 = vmatprep.subr.bf16.mxu0 0
        %1301 = vmatpush1.bf16.msra.mxu0 0
        %1302 = vmatprep.subr.bf16.mxu0 0
        %1303 = vmatpush1.bf16.msra.mxu0 0
        %1304 = vmatprep.subr.bf16.mxu0 0
        %1305 = vmatpush1.bf16.msra.mxu0 0
        %1306 = vmatprep.subr.bf16.mxu0 0
        %1307 = vmatpush1.bf16.msra.mxu0 0
        %1308 = vmatprep.mubr.bf16.mxu0 0
        %1309 = vmatmul.mubr.bf16.gmra.mrb[0].mxu0 %v1140
        %v1310 = vpop.f32.mrb[0].mxu0
        %v1311 = vadd.f32 %v1262, %v1310
        %v1312 = vpop.f32.mrb[0].mxu0
        %v1313 = vpop.f32.mrb[0].mxu0
        %v1314 = vpop.f32.mrb[0].mxu0
        %1315 = vdwg.mxu0
        %v1316 = vmul.f32 %v1311, 0.35355338
        %1317 = vst.msk [vmem:[#allocation2 + $0x10] sm:$0xff] %vm1138, %v1316
        %s1318 = scalar_lea.vmem [#allocation12], 48
        %v1319 = vld [vmem:[%s1318] sm:$0xf]
        %v1320 = vld [vmem:[%s1318 + $0x4] sm:$0xf]
        %v1321 = vld [vmem:[%s1318 + $0x8] sm:$0xf]
        %v1322 = vld [vmem:[%s1318 + $0xc] sm:$0xf]
        %s1323 = scalar_lea.vmem %s4, 3
        %v1324 = vld [vmem:[%s1323] sm:$0x1]
        %v1326 = vlaneseq
        %v1327 = vshrl.u32 %v1326, 7
        %v1328 = vsub.s32 0, %v1327
        %v1329 = vrot.slane %v1324, %v1328
        %v1335 = vunpack.c.l.b16 %v1319
        %v1336 = vunpack.c.l.b16 %v1320
        %v1337 = vunpack.c.l.b16 %v1321
        %v1338 = vunpack.c.l.b16 %v1322
        %v1339 = vpack.c.b16 %v1336, %v1335
        %v1340 = vpack.c.b16 %v1338, %v1337
        %1343 = vmatprep.subr.bf16.mxu0 0
        %1344 = vmatpush1.bf16.msra.mxu0 %v1339
        %1345 = vmatprep.subr.bf16.mxu0 0
        %1346 = vmatpush1.bf16.msra.mxu0 %v1340
        %1347 = vmatprep.subr.bf16.mxu0 0
        %1348 = vmatpush1.bf16.msra.mxu0 0
        %1349 = vmatprep.subr.bf16.mxu0 0
        %1350 = vmatpush1.bf16.msra.mxu0 0
        %1351 = vmatprep.subr.bf16.mxu0 0
        %1352 = vmatpush1.bf16.msra.mxu0 0
        %1353 = vmatprep.subr.bf16.mxu0 0
        %1354 = vmatpush1.bf16.msra.mxu0 0
        %1355 = vmatprep.subr.bf16.mxu0 0
        %1356 = vmatpush1.bf16.msra.mxu0 0
        %1357 = vmatprep.subr.bf16.mxu0 0
        %1358 = vmatpush1.bf16.msra.mxu0 0
        %1359 = vmatprep.subr.bf16.mxu0 0
        %1360 = vmatpush1.bf16.msra.mxu0 0
        %1361 = vmatprep.subr.bf16.mxu0 0
        %1362 = vmatpush1.bf16.msra.mxu0 0
        %1363 = vmatprep.subr.bf16.mxu0 0
        %1364 = vmatpush1.bf16.msra.mxu0 0
        %1365 = vmatprep.subr.bf16.mxu0 0
        %1366 = vmatpush1.bf16.msra.mxu0 0
        %1367 = vmatprep.subr.bf16.mxu0 0
        %1368 = vmatpush1.bf16.msra.mxu0 0
        %1369 = vmatprep.subr.bf16.mxu0 0
        %1370 = vmatpush1.bf16.msra.mxu0 0
        %1371 = vmatprep.subr.bf16.mxu0 0
        %1372 = vmatpush1.bf16.msra.mxu0 0
        %1373 = vmatprep.subr.bf16.mxu0 0
        %1374 = vmatpush1.bf16.msra.mxu0 0
        %1375 = vmatprep.mubr.bf16.mxu0 0
        %1376 = vmatmul.mubr.bf16.gmra.mrb[0].mxu0 %v1140
        %v1377 = vpop.f32.mrb[0].mxu0
        %v1378 = vadd.f32 %v1329, %v1377
        %v1379 = vpop.f32.mrb[0].mxu0
        %v1380 = vpop.f32.mrb[0].mxu0
        %v1381 = vpop.f32.mrb[0].mxu0
        %1382 = vdwg.mxu0
        %v1383 = vmul.f32 %v1378, 0.35355338
        %1384 = vst.msk [vmem:[#allocation2 + $0x18] sm:$0xff] %vm1138, %v1383
        %v1385 = vld [vmem:[#allocation2] sm:$0xff]
        %v1386 = vld [vmem:[#allocation2 + $0x8] sm:$0xff]
        %v1387 = vld [vmem:[#allocation2 + $0x10] sm:$0xff]
        %v1388 = vld [vmem:[#allocation2 + $0x18] sm:$0xff]
        %v1389 = vpack.c.bf16 %v1386, %v1385
        %v1390 = vpack.c.bf16 %v1388, %v1387
        %v1391 = vld [vmem:[#allocation3] sm:$0xff]
        %v1392 = vld [vmem:[#allocation3 + $0x8] sm:$0xff]
        %v1393 = vld [vmem:[#allocation3 + $0x10] sm:$0xff]
        %v1394 = vld [vmem:[#allocation3 + $0x18] sm:$0xff]
        %vm1395 = vcmask 64512
        %v1397 = vsel %vm1395, %v1389, 0
        %v1400 = vsel %vm1395, %v1390, 0
        %v1403 = vsel %vm1395, %v1391, 0
        %v1406 = vsel %vm1395, %v1392, 0
        %v1409 = vsel %vm1395, %v1393, 0
        %v1412 = vsel %vm1395, %v1394, 0
        %1414 = vmatprep.subr.bf16.mxu0 0
        %1415 = vmatpush1.bf16.xpose.msra.mxu0 %v1403
        %1416 = vmatprep.subr.bf16.mxu0 0
        %1417 = vmatpush1.bf16.xpose.msra.mxu0 %v1406
        %1418 = vmatprep.subr.bf16.mxu0 0
        %1419 = vmatpush1.bf16.xpose.msra.mxu0 %v1409
        %1420 = vmatprep.subr.bf16.mxu0 0
        %1421 = vmatpush1.bf16.xpose.msra.mxu0 %v1412
        %1422 = vmatprep.subr.bf16.mxu0 0
        %1423 = vmatpush1.bf16.xpose.msra.mxu0 0
        %1424 = vmatprep.subr.bf16.mxu0 0
        %1425 = vmatpush1.bf16.xpose.msra.mxu0 0
        %1426 = vmatprep.subr.bf16.mxu0 0
        %1427 = vmatpush1.bf16.xpose.msra.mxu0 0
        %1428 = vmatprep.subr.bf16.mxu0 0
        %1429 = vmatpush1.bf16.xpose.msra.mxu0 0
        %1430 = vmatprep.subr.bf16.mxu0 0
        %1431 = vmatpush1.bf16.xpose.msra.mxu0 0
        %1432 = vmatprep.subr.bf16.mxu0 0
        %1433 = vmatpush1.bf16.xpose.msra.mxu0 0
        %1434 = vmatprep.subr.bf16.mxu0 0
        %1435 = vmatpush1.bf16.xpose.msra.mxu0 0
        %1436 = vmatprep.subr.bf16.mxu0 0
        %1437 = vmatpush1.bf16.xpose.msra.mxu0 0
        %1438 = vmatprep.subr.bf16.mxu0 0
        %1439 = vmatpush1.bf16.xpose.msra.mxu0 0
        %1440 = vmatprep.subr.bf16.mxu0 0
        %1441 = vmatpush1.bf16.xpose.msra.mxu0 0
        %1442 = vmatprep.subr.bf16.mxu0 0
        %1443 = vmatpush1.bf16.xpose.msra.mxu0 0
        %1444 = vmatprep.subr.bf16.mxu0 0
        %1445 = vmatpush1.bf16.xpose.msra.mxu0 0
        %1446 = vmatprep.mubr.bf16.mxu0 0
        %1447 = vmatmul.mubr.bf16.gmra.mrb[0].mxu0 %v1397
        %v1448 = vpop.f32.mrb[0].mxu0
        %v1449 = vadd.f32 0.0, %v1448
        %v1450 = vpop.f32.mrb[0].mxu0
        %v1451 = vpop.f32.mrb[0].mxu0
        %v1452 = vadd.f32 0.0, %v1451
        %v1453 = vpop.f32.mrb[0].mxu0
        %1454 = vmatprep.mubr.bf16.mxu0 0
        %1455 = vmatmul.mubr.bf16.gmra.mrb[0].mxu0 %v1400
        %v1456 = vpop.f32.mrb[0].mxu0
        %v1457 = vadd.f32 0.0, %v1456
        %v1458 = vpop.f32.mrb[0].mxu0
        %v1459 = vpop.f32.mrb[0].mxu0
        %v1460 = vadd.f32 0.0, %v1459
        %v1461 = vpop.f32.mrb[0].mxu0
        %1462 = vdwg.mxu0
        %vm1463 = vcmask 523264
        %1464 = vst.msk [vmem:[#allocation5] sm:$0xff] %vm1463, %v1449
        %1465 = vst.msk [vmem:[#allocation5 + $0x8] sm:$0xff] %vm1463, %v1452
        %1466 = vst.msk [vmem:[#allocation5 + $0x10] sm:$0xff] %vm1463, %v1457
        %1467 = vst.msk [vmem:[#allocation5 + $0x18] sm:$0xff] %vm1463, %v1460
        %v1468 = vld [vmem:[#allocation2] sm:$0xff]
        %v1469 = vld [vmem:[#allocation2 + $0x8] sm:$0xff]
        %v1470 = vld [vmem:[#allocation2 + $0x10] sm:$0xff]
        %v1471 = vld [vmem:[#allocation2 + $0x18] sm:$0xff]
        %v1472 = vpack.c.bf16 %v1469, %v1468
        %v1473 = vpack.c.bf16 %v1471, %v1470
        %v1474 = vld [vmem:[#allocation3] sm:$0xff]
        %v1475 = vld [vmem:[#allocation3 + $0x8] sm:$0xff]
        %v1476 = vld [vmem:[#allocation3 + $0x10] sm:$0xff]
        %v1477 = vld [vmem:[#allocation3 + $0x18] sm:$0xff]
        %1480 = vrot.lane.b32.xlu0 %v1472, 120
        %v1481 = vpop.permute.xlu0 %1480
        %1482 = vrot.lane.b32.xlu0 %v1473, 120
        %v1483 = vpop.permute.xlu0 %1482
        %1488 = vrot.lane.b32.xlu0 %v1474, 120
        %v1489 = vpop.permute.xlu0 %1488
        %1490 = vrot.lane.b32.xlu0 %v1475, 120
        %v1491 = vpop.permute.xlu0 %1490
        %1492 = vrot.lane.b32.xlu0 %v1476, 120
        %v1493 = vpop.permute.xlu0 %1492
        %1494 = vrot.lane.b32.xlu0 %v1477, 120
        %v1495 = vpop.permute.xlu0 %1494
        %v1497 = vsel %vm1395, %v1481, 0
        %v1500 = vsel %vm1395, %v1483, 0
        %v1503 = vsel %vm1395, %v1489, 0
        %v1506 = vsel %vm1395, %v1491, 0
        %v1509 = vsel %vm1395, %v1493, 0
        %v1512 = vsel %vm1395, %v1495, 0
        %1514 = vmatprep.subr.bf16.mxu0 0
        %1515 = vmatpush1.bf16.xpose.msra.mxu0 %v1503
        %1516 = vmatprep.subr.bf16.mxu0 0
        %1517 = vmatpush1.bf16.xpose.msra.mxu0 %v1506
        %1518 = vmatprep.subr.bf16.mxu0 0
        %1519 = vmatpush1.bf16.xpose.msra.mxu0 %v1509
        %1520 = vmatprep.subr.bf16.mxu0 0
        %1521 = vmatpush1.bf16.xpose.msra.mxu0 %v1512
        %1522 = vmatprep.subr.bf16.mxu0 0
        %1523 = vmatpush1.bf16.xpose.msra.mxu0 0
        %1524 = vmatprep.subr.bf16.mxu0 0
        %1525 = vmatpush1.bf16.xpose.msra.mxu0 0
        %1526 = vmatprep.subr.bf16.mxu0 0
        %1527 = vmatpush1.bf16.xpose.msra.mxu0 0
        %1528 = vmatprep.subr.bf16.mxu0 0
        %1529 = vmatpush1.bf16.xpose.msra.mxu0 0
        %1530 = vmatprep.subr.bf16.mxu0 0
        %1531 = vmatpush1.bf16.xpose.msra.mxu0 0
        %1532 = vmatprep.subr.bf16.mxu0 0
        %1533 = vmatpush1.bf16.xpose.msra.mxu0 0
        %1534 = vmatprep.subr.bf16.mxu0 0
        %1535 = vmatpush1.bf16.xpose.msra.mxu0 0
        %1536 = vmatprep.subr.bf16.mxu0 0
        %1537 = vmatpush1.bf16.xpose.msra.mxu0 0
        %1538 = vmatprep.subr.bf16.mxu0 0
        %1539 = vmatpush1.bf16.xpose.msra.mxu0 0
        %1540 = vmatprep.subr.bf16.mxu0 0
        %1541 = vmatpush1.bf16.xpose.msra.mxu0 0
        %1542 = vmatprep.subr.bf16.mxu0 0
        %1543 = vmatpush1.bf16.xpose.msra.mxu0 0
        %1544 = vmatprep.subr.bf16.mxu0 0
        %1545 = vmatpush1.bf16.xpose.msra.mxu0 0
        %1546 = vmatprep.mubr.bf16.mxu0 0
        %1547 = vmatmul.mubr.bf16.gmra.mrb[0].mxu0 %v1497
        %v1548 = vpop.f32.mrb[0].mxu0
        %v1549 = vadd.f32 0.0, %v1548
        %v1550 = vpop.f32.mrb[0].mxu0
        %v1551 = vpop.f32.mrb[0].mxu0
        %v1552 = vadd.f32 0.0, %v1551
        %v1553 = vpop.f32.mrb[0].mxu0
        %1554 = vmatprep.mubr.bf16.mxu0 0
        %1555 = vmatmul.mubr.bf16.gmra.mrb[0].mxu0 %v1500
        %v1556 = vpop.f32.mrb[0].mxu0
        %v1557 = vadd.f32 0.0, %v1556
        %v1558 = vpop.f32.mrb[0].mxu0
        %v1559 = vpop.f32.mrb[0].mxu0
        %v1560 = vadd.f32 0.0, %v1559
        %v1561 = vpop.f32.mrb[0].mxu0
        %1562 = vdwg.mxu0
        %s1563 = scalar_lea.vmem [#allocation5], 32
        %1564 = vst.msk [vmem:[%s1563] sm:$0xff] %vm1463, %v1549
        %1565 = vst.msk [vmem:[%s1563 + $0x8] sm:$0xff] %vm1463, %v1552
        %1566 = vst.msk [vmem:[%s1563 + $0x10] sm:$0xff] %vm1463, %v1557
        %1567 = vst.msk [vmem:[%s1563 + $0x18] sm:$0xff] %vm1463, %v1560
        %v1568 = vld [vmem:[#allocation2] sm:$0xff]
        %v1569 = vld [vmem:[#allocation2 + $0x8] sm:$0xff]
        %v1570 = vld [vmem:[#allocation2 + $0x10] sm:$0xff]
        %v1571 = vld [vmem:[#allocation2 + $0x18] sm:$0xff]
        %v1572 = vpack.c.bf16 %v1569, %v1568
        %v1573 = vpack.c.bf16 %v1571, %v1570
        %v1574 = vld [vmem:[#allocation3] sm:$0xff]
        %v1575 = vld [vmem:[#allocation3 + $0x8] sm:$0xff]
        %v1576 = vld [vmem:[#allocation3 + $0x10] sm:$0xff]
        %v1577 = vld [vmem:[#allocation3 + $0x18] sm:$0xff]
        %1580 = vrot.lane.b32.xlu0 %v1572, 112
        %v1581 = vpop.permute.xlu0 %1580
        %1582 = vrot.lane.b32.xlu0 %v1573, 112
        %v1583 = vpop.permute.xlu0 %1582
        %1588 = vrot.lane.b32.xlu0 %v1574, 112
        %v1589 = vpop.permute.xlu0 %1588
        %1590 = vrot.lane.b32.xlu0 %v1575, 112
        %v1591 = vpop.permute.xlu0 %1590
        %1592 = vrot.lane.b32.xlu0 %v1576, 112
        %v1593 = vpop.permute.xlu0 %1592
        %1594 = vrot.lane.b32.xlu0 %v1577, 112
        %v1595 = vpop.permute.xlu0 %1594
        %v1597 = vsel %vm1395, %v1581, 0
        %v1600 = vsel %vm1395, %v1583, 0
        %v1603 = vsel %vm1395, %v1589, 0
        %v1606 = vsel %vm1395, %v1591, 0
        %v1609 = vsel %vm1395, %v1593, 0
        %v1612 = vsel %vm1395, %v1595, 0
        %1614 = vmatprep.subr.bf16.mxu0 0
        %1615 = vmatpush1.bf16.xpose.msra.mxu0 %v1603
        %1616 = vmatprep.subr.bf16.mxu0 0
        %1617 = vmatpush1.bf16.xpose.msra.mxu0 %v1606
        %1618 = vmatprep.subr.bf16.mxu0 0
        %1619 = vmatpush1.bf16.xpose.msra.mxu0 %v1609
        %1620 = vmatprep.subr.bf16.mxu0 0
        %1621 = vmatpush1.bf16.xpose.msra.mxu0 %v1612
        %1622 = vmatprep.subr.bf16.mxu0 0
        %1623 = vmatpush1.bf16.xpose.msra.mxu0 0
        %1624 = vmatprep.subr.bf16.mxu0 0
        %1625 = vmatpush1.bf16.xpose.msra.mxu0 0
        %1626 = vmatprep.subr.bf16.mxu0 0
        %1627 = vmatpush1.bf16.xpose.msra.mxu0 0
        %1628 = vmatprep.subr.bf16.mxu0 0
        %1629 = vmatpush1.bf16.xpose.msra.mxu0 0
        %1630 = vmatprep.subr.bf16.mxu0 0
        %1631 = vmatpush1.bf16.xpose.msra.mxu0 0
        %1632 = vmatprep.subr.bf16.mxu0 0
        %1633 = vmatpush1.bf16.xpose.msra.mxu0 0
        %1634 = vmatprep.subr.bf16.mxu0 0
        %1635 = vmatpush1.bf16.xpose.msra.mxu0 0
        %1636 = vmatprep.subr.bf16.mxu0 0
        %1637 = vmatpush1.bf16.xpose.msra.mxu0 0
        %1638 = vmatprep.subr.bf16.mxu0 0
        %1639 = vmatpush1.bf16.xpose.msra.mxu0 0
        %1640 = vmatprep.subr.bf16.mxu0 0
        %1641 = vmatpush1.bf16.xpose.msra.mxu0 0
        %1642 = vmatprep.subr.bf16.mxu0 0
        %1643 = vmatpush1.bf16.xpose.msra.mxu0 0
        %1644 = vmatprep.subr.bf16.mxu0 0
        %1645 = vmatpush1.bf16.xpose.msra.mxu0 0
        %1646 = vmatprep.mubr.bf16.mxu0 0
        %1647 = vmatmul.mubr.bf16.gmra.mrb[0].mxu0 %v1597
        %v1648 = vpop.f32.mrb[0].mxu0
        %v1649 = vadd.f32 0.0, %v1648
        %v1650 = vpop.f32.mrb[0].mxu0
        %v1651 = vpop.f32.mrb[0].mxu0
        %v1652 = vadd.f32 0.0, %v1651
        %v1653 = vpop.f32.mrb[0].mxu0
        %1654 = vmatprep.mubr.bf16.mxu0 0
        %1655 = vmatmul.mubr.bf16.gmra.mrb[0].mxu0 %v1600
        %v1656 = vpop.f32.mrb[0].mxu0
        %v1657 = vadd.f32 0.0, %v1656
        %v1658 = vpop.f32.mrb[0].mxu0
        %v1659 = vpop.f32.mrb[0].mxu0
        %v1660 = vadd.f32 0.0, %v1659
        %v1661 = vpop.f32.mrb[0].mxu0
        %1662 = vdwg.mxu0
        %s1663 = scalar_lea.vmem [#allocation5], 64
        %1664 = vst.msk [vmem:[%s1663] sm:$0xff] %vm1463, %v1649
        %1665 = vst.msk [vmem:[%s1663 + $0x8] sm:$0xff] %vm1463, %v1652
        %1666 = vst.msk [vmem:[%s1663 + $0x10] sm:$0xff] %vm1463, %v1657
        %1667 = vst.msk [vmem:[%s1663 + $0x18] sm:$0xff] %vm1463, %v1660
        %v1668 = vld [vmem:[#allocation2] sm:$0xff]
        %v1669 = vld [vmem:[#allocation2 + $0x8] sm:$0xff]
        %v1670 = vld [vmem:[#allocation2 + $0x10] sm:$0xff]
        %v1671 = vld [vmem:[#allocation2 + $0x18] sm:$0xff]
        %v1672 = vpack.c.bf16 %v1669, %v1668
        %v1673 = vpack.c.bf16 %v1671, %v1670
        %v1674 = vld [vmem:[#allocation3] sm:$0xff]
        %v1675 = vld [vmem:[#allocation3 + $0x8] sm:$0xff]
        %v1676 = vld [vmem:[#allocation3 + $0x10] sm:$0xff]
        %v1677 = vld [vmem:[#allocation3 + $0x18] sm:$0xff]
        %1680 = vrot.lane.b32.xlu0 %v1672, 104
        %v1681 = vpop.permute.xlu0 %1680
        %1682 = vrot.lane.b32.xlu0 %v1673, 104
        %v1683 = vpop.permute.xlu0 %1682
        %1688 = vrot.lane.b32.xlu0 %v1674, 104
        %v1689 = vpop.permute.xlu0 %1688
        %1690 = vrot.lane.b32.xlu0 %v1675, 104
        %v1691 = vpop.permute.xlu0 %1690
        %1692 = vrot.lane.b32.xlu0 %v1676, 104
        %v1693 = vpop.permute.xlu0 %1692
        %1694 = vrot.lane.b32.xlu0 %v1677, 104
        %v1695 = vpop.permute.xlu0 %1694
        %v1697 = vsel %vm1395, %v1681, 0
        %v1700 = vsel %vm1395, %v1683, 0
        %v1703 = vsel %vm1395, %v1689, 0
        %v1706 = vsel %vm1395, %v1691, 0
        %v1709 = vsel %vm1395, %v1693, 0
        %v1712 = vsel %vm1395, %v1695, 0
        %1714 = vmatprep.subr.bf16.mxu0 0
        %1715 = vmatpush1.bf16.xpose.msra.mxu0 %v1703
        %1716 = vmatprep.subr.bf16.mxu0 0
        %1717 = vmatpush1.bf16.xpose.msra.mxu0 %v1706
        %1718 = vmatprep.subr.bf16.mxu0 0
        %1719 = vmatpush1.bf16.xpose.msra.mxu0 %v1709
        %1720 = vmatprep.subr.bf16.mxu0 0
        %1721 = vmatpush1.bf16.xpose.msra.mxu0 %v1712
        %1722 = vmatprep.subr.bf16.mxu0 0
        %1723 = vmatpush1.bf16.xpose.msra.mxu0 0
        %1724 = vmatprep.subr.bf16.mxu0 0
        %1725 = vmatpush1.bf16.xpose.msra.mxu0 0
        %1726 = vmatprep.subr.bf16.mxu0 0
        %1727 = vmatpush1.bf16.xpose.msra.mxu0 0
        %1728 = vmatprep.subr.bf16.mxu0 0
        %1729 = vmatpush1.bf16.xpose.msra.mxu0 0
        %1730 = vmatprep.subr.bf16.mxu0 0
        %1731 = vmatpush1.bf16.xpose.msra.mxu0 0
        %1732 = vmatprep.subr.bf16.mxu0 0
        %1733 = vmatpush1.bf16.xpose.msra.mxu0 0
        %1734 = vmatprep.subr.bf16.mxu0 0
        %1735 = vmatpush1.bf16.xpose.msra.mxu0 0
        %1736 = vmatprep.subr.bf16.mxu0 0
        %1737 = vmatpush1.bf16.xpose.msra.mxu0 0
        %1738 = vmatprep.subr.bf16.mxu0 0
        %1739 = vmatpush1.bf16.xpose.msra.mxu0 0
        %1740 = vmatprep.subr.bf16.mxu0 0
        %1741 = vmatpush1.bf16.xpose.msra.mxu0 0
        %1742 = vmatprep.subr.bf16.mxu0 0
        %1743 = vmatpush1.bf16.xpose.msra.mxu0 0
        %1744 = vmatprep.subr.bf16.mxu0 0
        %1745 = vmatpush1.bf16.xpose.msra.mxu0 0
        %1746 = vmatprep.mubr.bf16.mxu0 0
        %1747 = vmatmul.mubr.bf16.gmra.mrb[0].mxu0 %v1697
        %v1748 = vpop.f32.mrb[0].mxu0
        %v1749 = vadd.f32 0.0, %v1748
        %v1750 = vpop.f32.mrb[0].mxu0
        %v1751 = vpop.f32.mrb[0].mxu0
        %v1752 = vadd.f32 0.0, %v1751
        %v1753 = vpop.f32.mrb[0].mxu0
        %1754 = vmatprep.mubr.bf16.mxu0 0
        %1755 = vmatmul.mubr.bf16.gmra.mrb[0].mxu0 %v1700
        %v1756 = vpop.f32.mrb[0].mxu0
        %v1757 = vadd.f32 0.0, %v1756
        %v1758 = vpop.f32.mrb[0].mxu0
        %v1759 = vpop.f32.mrb[0].mxu0
        %v1760 = vadd.f32 0.0, %v1759
        %v1761 = vpop.f32.mrb[0].mxu0
        %1762 = vdwg.mxu0
        %s1763 = scalar_lea.vmem [#allocation5], 96
        %1764 = vst.msk [vmem:[%s1763] sm:$0xff] %vm1463, %v1749
        %1765 = vst.msk [vmem:[%s1763 + $0x8] sm:$0xff] %vm1463, %v1752
        %1766 = vst.msk [vmem:[%s1763 + $0x10] sm:$0xff] %vm1463, %v1757
        %1767 = vst.msk [vmem:[%s1763 + $0x18] sm:$0xff] %vm1463, %v1760
        %v1768 = vld [vmem:[#allocation5] sm:$0xff]
        %v1769 = vld [vmem:[#allocation5 + $0x8] sm:$0xff]
        %v1770 = vld [vmem:[#allocation5 + $0x10] sm:$0xff]
        %v1771 = vld [vmem:[#allocation5 + $0x18] sm:$0xff]
        %v1772 = vld [vmem:[%s1563] sm:$0xff]
        %v1773 = vld [vmem:[%s1563 + $0x8] sm:$0xff]
        %v1774 = vld [vmem:[%s1563 + $0x10] sm:$0xff]
        %v1775 = vld [vmem:[%s1563 + $0x18] sm:$0xff]
        %v1776 = vmax.f32 %v1768, %v1772
        %v1777 = vmax.f32 %v1769, %v1773
        %v1778 = vmax.f32 %v1770, %v1774
        %v1779 = vmax.f32 %v1771, %v1775
        %v1780 = vld [vmem:[%s1663] sm:$0xff]
        %v1781 = vld [vmem:[%s1663 + $0x8] sm:$0xff]
        %v1782 = vld [vmem:[%s1663 + $0x10] sm:$0xff]
        %v1783 = vld [vmem:[%s1663 + $0x18] sm:$0xff]
        %v1784 = vmax.f32 %v1776, %v1780
        %v1785 = vmax.f32 %v1777, %v1781
        %v1786 = vmax.f32 %v1778, %v1782
        %v1787 = vmax.f32 %v1779, %v1783
        %v1788 = vld [vmem:[%s1763] sm:$0xff]
        %v1789 = vld [vmem:[%s1763 + $0x8] sm:$0xff]
        %v1790 = vld [vmem:[%s1763 + $0x10] sm:$0xff]
        %v1791 = vld [vmem:[%s1763 + $0x18] sm:$0xff]
        %v1792 = vmax.f32 %v1784, %v1788
        %v1793 = vmax.f32 %v1785, %v1789
        %v1794 = vmax.f32 %v1786, %v1790
        %v1795 = vmax.f32 %v1787, %v1791
        %v1796 = vsub.f32 %v1768, %v1792
        %v1797 = vsub.f32 %v1769, %v1793
        %v1798 = vsub.f32 %v1770, %v1794
        %v1799 = vsub.f32 %v1771, %v1795
        %v1800 = vmul.f32 %v1796, 1.442695
        %v1801 = vpow.pop %v1800
        %v1802 = vmul.f32 %v1797, 1.442695
        %v1803 = vpow.pop %v1802
        %v1804 = vmul.f32 %v1798, 1.442695
        %v1805 = vpow.pop %v1804
        %v1806 = vmul.f32 %v1799, 1.442695
        %v1807 = vpow.pop %v1806
        %1808 = vst.msk [vmem:[#allocation5] sm:$0xff] %vm1463, %v1801
        %1809 = vst.msk [vmem:[#allocation5 + $0x8] sm:$0xff] %vm1463, %v1803
        %1810 = vst.msk [vmem:[#allocation5 + $0x10] sm:$0xff] %vm1463, %v1805
        %1811 = vst.msk [vmem:[#allocation5 + $0x18] sm:$0xff] %vm1463, %v1807
        %v1812 = vld [vmem:[%s1563] sm:$0xff]
        %v1813 = vld [vmem:[%s1563 + $0x8] sm:$0xff]
        %v1814 = vld [vmem:[%s1563 + $0x10] sm:$0xff]
        %v1815 = vld [vmem:[%s1563 + $0x18] sm:$0xff]
        %v1816 = vsub.f32 %v1812, %v1792
        %v1817 = vsub.f32 %v1813, %v1793
        %v1818 = vsub.f32 %v1814, %v1794
        %v1819 = vsub.f32 %v1815, %v1795
        %v1820 = vmul.f32 %v1816, 1.442695
        %v1821 = vpow.pop %v1820
        %v1822 = vmul.f32 %v1817, 1.442695
        %v1823 = vpow.pop %v1822
        %v1824 = vmul.f32 %v1818, 1.442695
        %v1825 = vpow.pop %v1824
        %v1826 = vmul.f32 %v1819, 1.442695
        %v1827 = vpow.pop %v1826
        %v1828 = vadd.f32 %v1801, %v1821
        %v1829 = vadd.f32 %v1803, %v1823
        %v1830 = vadd.f32 %v1805, %v1825
        %v1831 = vadd.f32 %v1807, %v1827
        %1832 = vst.msk [vmem:[%s1563] sm:$0xff] %vm1463, %v1821
        %1833 = vst.msk [vmem:[%s1563 + $0x8] sm:$0xff] %vm1463, %v1823
        %1834 = vst.msk [vmem:[%s1563 + $0x10] sm:$0xff] %vm1463, %v1825
        %1835 = vst.msk [vmem:[%s1563 + $0x18] sm:$0xff] %vm1463, %v1827
        %v1836 = vld [vmem:[%s1663] sm:$0xff]
        %v1837 = vld [vmem:[%s1663 + $0x8] sm:$0xff]
        %v1838 = vld [vmem:[%s1663 + $0x10] sm:$0xff]
        %v1839 = vld [vmem:[%s1663 + $0x18] sm:$0xff]
        %v1840 = vsub.f32 %v1836, %v1792
        %v1841 = vsub.f32 %v1837, %v1793
        %v1842 = vsub.f32 %v1838, %v1794
        %v1843 = vsub.f32 %v1839, %v1795
        %v1844 = vmul.f32 %v1840, 1.442695
        %v1845 = vpow.pop %v1844
        %v1846 = vmul.f32 %v1841, 1.442695
        %v1847 = vpow.pop %v1846
        %v1848 = vmul.f32 %v1842, 1.442695
        %v1849 = vpow.pop %v1848
        %v1850 = vmul.f32 %v1843, 1.442695
        %v1851 = vpow.pop %v1850
        %v1852 = vadd.f32 %v1828, %v1845
        %v1853 = vadd.f32 %v1829, %v1847
        %v1854 = vadd.f32 %v1830, %v1849
        %v1855 = vadd.f32 %v1831, %v1851
        %1856 = vst.msk [vmem:[%s1663] sm:$0xff] %vm1463, %v1845
        %1857 = vst.msk [vmem:[%s1663 + $0x8] sm:$0xff] %vm1463, %v1847
        %1858 = vst.msk [vmem:[%s1663 + $0x10] sm:$0xff] %vm1463, %v1849
        %1859 = vst.msk [vmem:[%s1663 + $0x18] sm:$0xff] %vm1463, %v1851
        %v1860 = vld [vmem:[%s1763] sm:$0xff]
        %v1861 = vld [vmem:[%s1763 + $0x8] sm:$0xff]
        %v1862 = vld [vmem:[%s1763 + $0x10] sm:$0xff]
        %v1863 = vld [vmem:[%s1763 + $0x18] sm:$0xff]
        %v1864 = vsub.f32 %v1860, %v1792
        %v1865 = vsub.f32 %v1861, %v1793
        %v1866 = vsub.f32 %v1862, %v1794
        %v1867 = vsub.f32 %v1863, %v1795
        %v1868 = vmul.f32 %v1864, 1.442695
        %v1869 = vpow.pop %v1868
        %v1870 = vmul.f32 %v1865, 1.442695
        %v1871 = vpow.pop %v1870
        %v1872 = vmul.f32 %v1866, 1.442695
        %v1873 = vpow.pop %v1872
        %v1874 = vmul.f32 %v1867, 1.442695
        %v1875 = vpow.pop %v1874
        %v1876 = vadd.f32 %v1852, %v1869
        %v1877 = vadd.f32 %v1853, %v1871
        %v1878 = vadd.f32 %v1854, %v1873
        %v1879 = vadd.f32 %v1855, %v1875
        %1880 = vst.msk [vmem:[%s1763] sm:$0xff] %vm1463, %v1869
        %1881 = vst.msk [vmem:[%s1763 + $0x8] sm:$0xff] %vm1463, %v1871
        %1882 = vst.msk [vmem:[%s1763 + $0x10] sm:$0xff] %vm1463, %v1873
        %1883 = vst.msk [vmem:[%s1763 + $0x18] sm:$0xff] %vm1463, %v1875
        %v1884 = vrcp.pop %v1876
        %v1885 = vrcp.pop %v1877
        %v1886 = vrcp.pop %v1878
        %v1887 = vrcp.pop %v1879
        %v1888 = vld [vmem:[#allocation5] sm:$0xff]
        %v1889 = vld [vmem:[#allocation5 + $0x8] sm:$0xff]
        %v1890 = vld [vmem:[#allocation5 + $0x10] sm:$0xff]
        %v1891 = vld [vmem:[#allocation5 + $0x18] sm:$0xff]
        %v1892 = vmul.f32 %v1888, %v1884
        %v1893 = vmul.f32 %v1889, %v1885
        %v1894 = vmul.f32 %v1890, %v1886
        %v1895 = vmul.f32 %v1891, %v1887
        %v1896 = vpack.c.bf16 %v1893, %v1892
        %v1897 = vpack.c.bf16 %v1895, %v1894
        %v1898 = vld [vmem:[#allocation4] sm:$0xff]
        %v1899 = vld [vmem:[#allocation4 + $0x8] sm:$0xff]
        %v1900 = vld [vmem:[#allocation4 + $0x10] sm:$0xff]
        %v1901 = vld [vmem:[#allocation4 + $0x18] sm:$0xff]
        %v1903 = vsel %vm1463, %v1896, 0
        %v1906 = vsel %vm1463, %v1897, 0
        %1908 = vmatprep.subr.bf16.mxu0 0
        %1909 = vmatpush1.bf16.msra.mxu0 %v1898
        %1910 = vmatprep.subr.bf16.mxu0 0
        %1911 = vmatpush1.bf16.msra.mxu0 %v1899
        %1912 = vmatprep.subr.bf16.mxu0 0
        %1913 = vmatpush1.bf16.msra.mxu0 %v1900
        %1914 = vmatprep.subr.bf16.mxu0 0
        %1915 = vmatpush1.bf16.msra.mxu0 %v1901
        %1916 = vmatprep.subr.bf16.mxu0 0
        %1917 = vmatpush1.bf16.msra.mxu0 0
        %1918 = vmatprep.subr.bf16.mxu0 0
        %1919 = vmatpush1.bf16.msra.mxu0 0
        %1920 = vmatprep.subr.bf16.mxu0 0
        %1921 = vmatpush1.bf16.msra.mxu0 0
        %1922 = vmatprep.subr.bf16.mxu0 0
        %1923 = vmatpush1.bf16.msra.mxu0 0
        %1924 = vmatprep.subr.bf16.mxu0 0
        %1925 = vmatpush1.bf16.msra.mxu0 0
        %1926 = vmatprep.subr.bf16.mxu0 0
        %1927 = vmatpush1.bf16.msra.mxu0 0
        %1928 = vmatprep.subr.bf16.mxu0 0
        %1929 = vmatpush1.bf16.msra.mxu0 0
        %1930 = vmatprep.subr.bf16.mxu0 0
        %1931 = vmatpush1.bf16.msra.mxu0 0
        %1932 = vmatprep.subr.bf16.mxu0 0
        %1933 = vmatpush1.bf16.msra.mxu0 0
        %1934 = vmatprep.subr.bf16.mxu0 0
        %1935 = vmatpush1.bf16.msra.mxu0 0
        %1936 = vmatprep.subr.bf16.mxu0 0
        %1937 = vmatpush1.bf16.msra.mxu0 0
        %1938 = vmatprep.subr.bf16.mxu0 0
        %1939 = vmatpush1.bf16.msra.mxu0 0
        %1940 = vmatprep.mubr.bf16.mxu0 0
        %1941 = vmatmul.mubr.bf16.gmra.mrb[0].mxu0 %v1903
        %v1942 = vpop.f32.mrb[0].mxu0
        %v1943 = vadd.f32 0.0, %v1942
        %v1944 = vpop.f32.mrb[0].mxu0
        %v1945 = vpop.f32.mrb[0].mxu0
        %v1946 = vadd.f32 0.0, %v1945
        %v1947 = vpop.f32.mrb[0].mxu0
        %1948 = vmatprep.mubr.bf16.mxu0 0
        %1949 = vmatmul.mubr.bf16.gmra.mrb[0].mxu0 %v1906
        %v1950 = vpop.f32.mrb[0].mxu0
        %v1951 = vadd.f32 0.0, %v1950
        %v1952 = vpop.f32.mrb[0].mxu0
        %v1953 = vpop.f32.mrb[0].mxu0
        %v1954 = vadd.f32 0.0, %v1953
        %v1955 = vpop.f32.mrb[0].mxu0
        %1956 = vdwg.mxu0
        %v1957 = vld [vmem:[%s1563] sm:$0xff]
        %v1958 = vld [vmem:[%s1563 + $0x8] sm:$0xff]
        %v1959 = vld [vmem:[%s1563 + $0x10] sm:$0xff]
        %v1960 = vld [vmem:[%s1563 + $0x18] sm:$0xff]
        %v1961 = vmul.f32 %v1957, %v1884
        %v1962 = vmul.f32 %v1958, %v1885
        %v1963 = vmul.f32 %v1959, %v1886
        %v1964 = vmul.f32 %v1960, %v1887
        %v1965 = vpack.c.bf16 %v1962, %v1961
        %v1966 = vpack.c.bf16 %v1964, %v1963
        %1971 = vrot.lane.b32.xlu0 %v1898, 120
        %v1972 = vpop.permute.xlu0 %1971
        %1973 = vrot.lane.b32.xlu0 %v1899, 120
        %v1974 = vpop.permute.xlu0 %1973
        %1975 = vrot.lane.b32.xlu0 %v1900, 120
        %v1976 = vpop.permute.xlu0 %1975
        %1977 = vrot.lane.b32.xlu0 %v1901, 120
        %v1978 = vpop.permute.xlu0 %1977
        %v1984 = vsel %vm1463, %v1965, 0
        %v1987 = vsel %vm1463, %v1966, 0
        %1989 = vmatprep.subr.bf16.mxu0 0
        %1990 = vmatpush1.bf16.msra.mxu0 %v1972
        %1991 = vmatprep.subr.bf16.mxu0 0
        %1992 = vmatpush1.bf16.msra.mxu0 %v1974
        %1993 = vmatprep.subr.bf16.mxu0 0
        %1994 = vmatpush1.bf16.msra.mxu0 %v1976
        %1995 = vmatprep.subr.bf16.mxu0 0
        %1996 = vmatpush1.bf16.msra.mxu0 %v1978
        %1997 = vmatprep.subr.bf16.mxu0 0
        %1998 = vmatpush1.bf16.msra.mxu0 0
        %1999 = vmatprep.subr.bf16.mxu0 0
        %2000 = vmatpush1.bf16.msra.mxu0 0
        %2001 = vmatprep.subr.bf16.mxu0 0
        %2002 = vmatpush1.bf16.msra.mxu0 0
        %2003 = vmatprep.subr.bf16.mxu0 0
        %2004 = vmatpush1.bf16.msra.mxu0 0
        %2005 = vmatprep.subr.bf16.mxu0 0
        %2006 = vmatpush1.bf16.msra.mxu0 0
        %2007 = vmatprep.subr.bf16.mxu0 0
        %2008 = vmatpush1.bf16.msra.mxu0 0
        %2009 = vmatprep.subr.bf16.mxu0 0
        %2010 = vmatpush1.bf16.msra.mxu0 0
        %2011 = vmatprep.subr.bf16.mxu0 0
        %2012 = vmatpush1.bf16.msra.mxu0 0
        %2013 = vmatprep.subr.bf16.mxu0 0
        %2014 = vmatpush1.bf16.msra.mxu0 0
        %2015 = vmatprep.subr.bf16.mxu0 0
        %2016 = vmatpush1.bf16.msra.mxu0 0
        %2017 = vmatprep.subr.bf16.mxu0 0
        %2018 = vmatpush1.bf16.msra.mxu0 0
        %2019 = vmatprep.subr.bf16.mxu0 0
        %2020 = vmatpush1.bf16.msra.mxu0 0
        %2021 = vmatprep.mubr.bf16.mxu0 0
        %2022 = vmatmul.mubr.bf16.gmra.mrb[0].mxu0 %v1984
        %v2023 = vpop.f32.mrb[0].mxu0
        %v2024 = vadd.f32 0.0, %v2023
        %v2025 = vpop.f32.mrb[0].mxu0
        %v2026 = vpop.f32.mrb[0].mxu0
        %v2027 = vadd.f32 0.0, %v2026
        %v2028 = vpop.f32.mrb[0].mxu0
        %2029 = vmatprep.mubr.bf16.mxu0 0
        %2030 = vmatmul.mubr.bf16.gmra.mrb[0].mxu0 %v1987
        %v2031 = vpop.f32.mrb[0].mxu0
        %v2032 = vadd.f32 0.0, %v2031
        %v2033 = vpop.f32.mrb[0].mxu0
        %v2034 = vpop.f32.mrb[0].mxu0
        %v2035 = vadd.f32 0.0, %v2034
        %v2036 = vpop.f32.mrb[0].mxu0
        %2037 = vdwg.mxu0
        %v2038 = vld [vmem:[%s1663] sm:$0xff]
        %v2039 = vld [vmem:[%s1663 + $0x8] sm:$0xff]
        %v2040 = vld [vmem:[%s1663 + $0x10] sm:$0xff]
        %v2041 = vld [vmem:[%s1663 + $0x18] sm:$0xff]
        %v2042 = vmul.f32 %v2038, %v1884
        %v2043 = vmul.f32 %v2039, %v1885
        %v2044 = vmul.f32 %v2040, %v1886
        %v2045 = vmul.f32 %v2041, %v1887
        %v2046 = vpack.c.bf16 %v2043, %v2042
        %v2047 = vpack.c.bf16 %v2045, %v2044
        %2048 = vrot.lane.b32.xlu0 %v1898, 112
        %v2049 = vpop.permute.xlu0 %2048
        %2050 = vrot.lane.b32.xlu0 %v1899, 112
        %v2051 = vpop.permute.xlu0 %2050
        %2052 = vrot.lane.b32.xlu0 %v1900, 112
        %v2053 = vpop.permute.xlu0 %2052
        %2054 = vrot.lane.b32.xlu0 %v1901, 112
        %v2055 = vpop.permute.xlu0 %2054
        %v2061 = vsel %vm1463, %v2046, 0
        %v2064 = vsel %vm1463, %v2047, 0
        %2066 = vmatprep.subr.bf16.mxu0 0
        %2067 = vmatpush1.bf16.msra.mxu0 %v2049
        %2068 = vmatprep.subr.bf16.mxu0 0
        %2069 = vmatpush1.bf16.msra.mxu0 %v2051
        %2070 = vmatprep.subr.bf16.mxu0 0
        %2071 = vmatpush1.bf16.msra.mxu0 %v2053
        %2072 = vmatprep.subr.bf16.mxu0 0
        %2073 = vmatpush1.bf16.msra.mxu0 %v2055
        %2074 = vmatprep.subr.bf16.mxu0 0
        %2075 = vmatpush1.bf16.msra.mxu0 0
        %2076 = vmatprep.subr.bf16.mxu0 0
        %2077 = vmatpush1.bf16.msra.mxu0 0
        %2078 = vmatprep.subr.bf16.mxu0 0
        %2079 = vmatpush1.bf16.msra.mxu0 0
        %2080 = vmatprep.subr.bf16.mxu0 0
        %2081 = vmatpush1.bf16.msra.mxu0 0
        %2082 = vmatprep.subr.bf16.mxu0 0
        %2083 = vmatpush1.bf16.msra.mxu0 0
        %2084 = vmatprep.subr.bf16.mxu0 0
        %2085 = vmatpush1.bf16.msra.mxu0 0
        %2086 = vmatprep.subr.bf16.mxu0 0
        %2087 = vmatpush1.bf16.msra.mxu0 0
        %2088 = vmatprep.subr.bf16.mxu0 0
        %2089 = vmatpush1.bf16.msra.mxu0 0
        %2090 = vmatprep.subr.bf16.mxu0 0
        %2091 = vmatpush1.bf16.msra.mxu0 0
        %2092 = vmatprep.subr.bf16.mxu0 0
        %2093 = vmatpush1.bf16.msra.mxu0 0
        %2094 = vmatprep.subr.bf16.mxu0 0
        %2095 = vmatpush1.bf16.msra.mxu0 0
        %2096 = vmatprep.subr.bf16.mxu0 0
        %2097 = vmatpush1.bf16.msra.mxu0 0
        %2098 = vmatprep.mubr.bf16.mxu0 0
        %2099 = vmatmul.mubr.bf16.gmra.mrb[0].mxu0 %v2061
        %v2100 = vpop.f32.mrb[0].mxu0
        %v2101 = vadd.f32 0.0, %v2100
        %v2102 = vpop.f32.mrb[0].mxu0
        %v2103 = vpop.f32.mrb[0].mxu0
        %v2104 = vadd.f32 0.0, %v2103
        %v2105 = vpop.f32.mrb[0].mxu0
        %2106 = vmatprep.mubr.bf16.mxu0 0
        %2107 = vmatmul.mubr.bf16.gmra.mrb[0].mxu0 %v2064
        %v2108 = vpop.f32.mrb[0].mxu0
        %v2109 = vadd.f32 0.0, %v2108
        %v2110 = vpop.f32.mrb[0].mxu0
        %v2111 = vpop.f32.mrb[0].mxu0
        %v2112 = vadd.f32 0.0, %v2111
        %v2113 = vpop.f32.mrb[0].mxu0
        %2114 = vdwg.mxu0
        %v2115 = vld [vmem:[%s1763] sm:$0xff]
        %v2116 = vld [vmem:[%s1763 + $0x8] sm:$0xff]
        %v2117 = vld [vmem:[%s1763 + $0x10] sm:$0xff]
        %v2118 = vld [vmem:[%s1763 + $0x18] sm:$0xff]
        %v2119 = vmul.f32 %v2115, %v1884
        %v2120 = vmul.f32 %v2116, %v1885
        %v2121 = vmul.f32 %v2117, %v1886
        %v2122 = vmul.f32 %v2118, %v1887
        %v2123 = vpack.c.bf16 %v2120, %v2119
        %v2124 = vpack.c.bf16 %v2122, %v2121
        %2125 = vrot.lane.b32.xlu0 %v1898, 104
        %v2126 = vpop.permute.xlu0 %2125
        %2127 = vrot.lane.b32.xlu0 %v1899, 104
        %v2128 = vpop.permute.xlu0 %2127
        %2129 = vrot.lane.b32.xlu0 %v1900, 104
        %v2130 = vpop.permute.xlu0 %2129
        %2131 = vrot.lane.b32.xlu0 %v1901, 104
        %v2132 = vpop.permute.xlu0 %2131
        %v2138 = vsel %vm1463, %v2123, 0
        %v2141 = vsel %vm1463, %v2124, 0
        %2143 = vmatprep.subr.bf16.mxu0 0
        %2144 = vmatpush1.bf16.msra.mxu0 %v2126
        %2145 = vmatprep.subr.bf16.mxu0 0
        %2146 = vmatpush1.bf16.msra.mxu0 %v2128
        %2147 = vmatprep.subr.bf16.mxu0 0
        %2148 = vmatpush1.bf16.msra.mxu0 %v2130
        %2149 = vmatprep.subr.bf16.mxu0 0
        %2150 = vmatpush1.bf16.msra.mxu0 %v2132
        %2151 = vmatprep.subr.bf16.mxu0 0
        %2152 = vmatpush1.bf16.msra.mxu0 0
        %2153 = vmatprep.subr.bf16.mxu0 0
        %2154 = vmatpush1.bf16.msra.mxu0 0
        %2155 = vmatprep.subr.bf16.mxu0 0
        %2156 = vmatpush1.bf16.msra.mxu0 0
        %2157 = vmatprep.subr.bf16.mxu0 0
        %2158 = vmatpush1.bf16.msra.mxu0 0
        %2159 = vmatprep.subr.bf16.mxu0 0
        %2160 = vmatpush1.bf16.msra.mxu0 0
        %2161 = vmatprep.subr.bf16.mxu0 0
        %2162 = vmatpush1.bf16.msra.mxu0 0
        %2163 = vmatprep.subr.bf16.mxu0 0
        %2164 = vmatpush1.bf16.msra.mxu0 0
        %2165 = vmatprep.subr.bf16.mxu0 0
        %2166 = vmatpush1.bf16.msra.mxu0 0
        %2167 = vmatprep.subr.bf16.mxu0 0
        %2168 = vmatpush1.bf16.msra.mxu0 0
        %2169 = vmatprep.subr.bf16.mxu0 0
        %2170 = vmatpush1.bf16.msra.mxu0 0
        %2171 = vmatprep.subr.bf16.mxu0 0
        %2172 = vmatpush1.bf16.msra.mxu0 0
        %2173 = vmatprep.subr.bf16.mxu0 0
        %2174 = vmatpush1.bf16.msra.mxu0 0
        %2175 = vmatprep.mubr.bf16.mxu0 0
        %2176 = vmatmul.mubr.bf16.gmra.mrb[0].mxu0 %v2138
        %v2177 = vpop.f32.mrb[0].mxu0
        %v2178 = vadd.f32 0.0, %v2177
        %v2179 = vpop.f32.mrb[0].mxu0
        %v2180 = vpop.f32.mrb[0].mxu0
        %v2181 = vadd.f32 0.0, %v2180
        %v2182 = vpop.f32.mrb[0].mxu0
        %2183 = vmatprep.mubr.bf16.mxu0 0
        %2184 = vmatmul.mubr.bf16.gmra.mrb[0].mxu0 %v2141
        %v2185 = vpop.f32.mrb[0].mxu0
        %v2186 = vadd.f32 0.0, %v2185
        %v2187 = vpop.f32.mrb[0].mxu0
        %v2188 = vpop.f32.mrb[0].mxu0
        %v2189 = vadd.f32 0.0, %v2188
        %v2190 = vpop.f32.mrb[0].mxu0
        %2191 = vdwg.mxu0
        %2196 = vrot.lane.b32.xlu0 %v2024, 8
        %v2197 = vpop.permute.xlu0 %2196
        %2198 = vrot.lane.b32.xlu0 %v2027, 8
        %v2199 = vpop.permute.xlu0 %2198
        %2200 = vrot.lane.b32.xlu0 %v2032, 8
        %v2201 = vpop.permute.xlu0 %2200
        %2202 = vrot.lane.b32.xlu0 %v2035, 8
        %v2203 = vpop.permute.xlu0 %2202
        %2212 = vrot.lane.b32.xlu0 %v2101, 16
        %v2213 = vpop.permute.xlu0 %2212
        %2214 = vrot.lane.b32.xlu0 %v2104, 16
        %v2215 = vpop.permute.xlu0 %2214
        %2216 = vrot.lane.b32.xlu0 %v2109, 16
        %v2217 = vpop.permute.xlu0 %2216
        %2218 = vrot.lane.b32.xlu0 %v2112, 16
        %v2219 = vpop.permute.xlu0 %2218
        %2228 = vrot.lane.b32.xlu0 %v2178, 24
        %v2229 = vpop.permute.xlu0 %2228
        %2230 = vrot.lane.b32.xlu0 %v2181, 24
        %v2231 = vpop.permute.xlu0 %2230
        %2232 = vrot.lane.b32.xlu0 %v2186, 24
        %v2233 = vpop.permute.xlu0 %2232
        %2234 = vrot.lane.b32.xlu0 %v2189, 24
        %v2235 = vpop.permute.xlu0 %2234
        %v2240 = vsel %vm1395, %v1943, %v2197
        %v2241 = vsel %vm1395, %v1946, %v2199
        %v2242 = vsel %vm1395, %v1951, %v2201
        %v2243 = vsel %vm1395, %v1954, %v2203
        %vm2244 = vcmask 130048
        %v2245 = vsel %vm2244, %v2240, %v2213
        %v2246 = vsel %vm2244, %v2241, %v2215
        %v2247 = vsel %vm2244, %v2242, %v2217
        %v2248 = vsel %vm2244, %v2243, %v2219
        %vm2249 = vcmask 195584
        %v2250 = vsel %vm2249, %v2245, %v2229
        %v2251 = vsel %vm2249, %v2246, %v2231
        %v2252 = vsel %vm2249, %v2247, %v2233
        %v2253 = vsel %vm2249, %v2248, %v2235
        %v2254 = vpack.c.bf16 %v2251, %v2250
        %v2255 = vpack.c.bf16 %v2253, %v2252
        %v2256 = vld [vmem:[#allocation17] sm:$0xf]
        %v2257 = vld [vmem:[#allocation17 + $0x4] sm:$0xf]
        %v2258 = vld [vmem:[#allocation17 + $0x8] sm:$0xf]
        %v2259 = vld [vmem:[#allocation17 + $0xc] sm:$0xf]
        %s2260 = scalar_lea.vmem [#allocation17], 16
        %v2261 = vld [vmem:[%s2260] sm:$0xf]
        %v2262 = vld [vmem:[%s2260 + $0x4] sm:$0xf]
        %v2263 = vld [vmem:[%s2260 + $0x8] sm:$0xf]
        %v2264 = vld [vmem:[%s2260 + $0xc] sm:$0xf]
        %v2266 = vrot.slane %v2254, 4
        %v2271 = vunpack.c.l.b16 %v2261
        %v2272 = vunpack.c.l.b16 %v2262
        %v2273 = vunpack.c.l.b16 %v2263
        %v2274 = vunpack.c.l.b16 %v2264
        %v2275 = vpack.c.b16 %v2272, %v2271
        %v2276 = vpack.c.b16 %v2274, %v2273
        %v2280 = vsel %vm1138, %v2266, 0
        %2282 = vmatprep.subr.bf16.mxu0 0
        %2283 = vmatpush1.bf16.msra.mxu0 %v2275
        %2284 = vmatprep.subr.bf16.mxu0 0
        %2285 = vmatpush1.bf16.msra.mxu0 %v2276
        %2286 = vmatprep.subr.bf16.mxu0 0
        %2287 = vmatpush1.bf16.msra.mxu0 0
        %2288 = vmatprep.subr.bf16.mxu0 0
        %2289 = vmatpush1.bf16.msra.mxu0 0
        %2290 = vmatprep.subr.bf16.mxu0 0
        %2291 = vmatpush1.bf16.msra.mxu0 0
        %2292 = vmatprep.subr.bf16.mxu0 0
        %2293 = vmatpush1.bf16.msra.mxu0 0
        %2294 = vmatprep.subr.bf16.mxu0 0
        %2295 = vmatpush1.bf16.msra.mxu0 0
        %2296 = vmatprep.subr.bf16.mxu0 0
        %2297 = vmatpush1.bf16.msra.mxu0 0
        %2298 = vmatprep.subr.bf16.mxu0 0
        %2299 = vmatpush1.bf16.msra.mxu0 0
        %2300 = vmatprep.subr.bf16.mxu0 0
        %2301 = vmatpush1.bf16.msra.mxu0 0
        %2302 = vmatprep.subr.bf16.mxu0 0
        %2303 = vmatpush1.bf16.msra.mxu0 0
        %2304 = vmatprep.subr.bf16.mxu0 0
        %2305 = vmatpush1.bf16.msra.mxu0 0
        %2306 = vmatprep.subr.bf16.mxu0 0
        %2307 = vmatpush1.bf16.msra.mxu0 0
        %2308 = vmatprep.subr.bf16.mxu0 0
        %2309 = vmatpush1.bf16.msra.mxu0 0
        %2310 = vmatprep.subr.bf16.mxu0 0
        %2311 = vmatpush1.bf16.msra.mxu0 0
        %2312 = vmatprep.subr.bf16.mxu0 0
        %2313 = vmatpush1.bf16.msra.mxu0 0
        %2314 = vmatprep.mubr.bf16.mxu0 0
        %2315 = vmatmul.mubr.bf16.gmra.mrb[0].mxu0 %v2280
        %v2316 = vpop.f32.mrb[0].mxu0
        %v2317 = vadd.f32 0.0, %v2316
        %v2318 = vpop.f32.mrb[0].mxu0
        %v2319 = vpop.f32.mrb[0].mxu0
        %v2320 = vpop.f32.mrb[0].mxu0
        %2321 = vdwg.mxu0
        %v2326 = vunpack.c.l.b16 %v2256
        %v2327 = vunpack.c.l.b16 %v2257
        %v2328 = vunpack.c.l.b16 %v2258
        %v2329 = vunpack.c.l.b16 %v2259
        %v2330 = vpack.c.b16 %v2327, %v2326
        %v2331 = vpack.c.b16 %v2329, %v2328
        %v2335 = vsel %vm1138, %v2254, 0
        %2337 = vmatprep.subr.bf16.mxu0 0
        %2338 = vmatpush1.bf16.msra.mxu0 %v2330
        %2339 = vmatprep.subr.bf16.mxu0 0
        %2340 = vmatpush1.bf16.msra.mxu0 %v2331
        %2341 = vmatprep.subr.bf16.mxu0 0
        %2342 = vmatpush1.bf16.msra.mxu0 0
        %2343 = vmatprep.subr.bf16.mxu0 0
        %2344 = vmatpush1.bf16.msra.mxu0 0
        %2345 = vmatprep.subr.bf16.mxu0 0
        %2346 = vmatpush1.bf16.msra.mxu0 0
        %2347 = vmatprep.subr.bf16.mxu0 0
        %2348 = vmatpush1.bf16.msra.mxu0 0
        %2349 = vmatprep.subr.bf16.mxu0 0
        %2350 = vmatpush1.bf16.msra.mxu0 0
        %2351 = vmatprep.subr.bf16.mxu0 0
        %2352 = vmatpush1.bf16.msra.mxu0 0
        %2353 = vmatprep.subr.bf16.mxu0 0
        %2354 = vmatpush1.bf16.msra.mxu0 0
        %2355 = vmatprep.subr.bf16.mxu0 0
        %2356 = vmatpush1.bf16.msra.mxu0 0
        %2357 = vmatprep.subr.bf16.mxu0 0
        %2358 = vmatpush1.bf16.msra.mxu0 0
        %2359 = vmatprep.subr.bf16.mxu0 0
        %2360 = vmatpush1.bf16.msra.mxu0 0
        %2361 = vmatprep.subr.bf16.mxu0 0
        %2362 = vmatpush1.bf16.msra.mxu0 0
        %2363 = vmatprep.subr.bf16.mxu0 0
        %2364 = vmatpush1.bf16.msra.mxu0 0
        %2365 = vmatprep.subr.bf16.mxu0 0
        %2366 = vmatpush1.bf16.msra.mxu0 0
        %2367 = vmatprep.subr.bf16.mxu0 0
        %2368 = vmatpush1.bf16.msra.mxu0 0
        %2369 = vmatprep.mubr.bf16.mxu0 0
        %2370 = vmatmul.mubr.bf16.gmra.mrb[0].mxu0 %v2335
        %v2371 = vpop.f32.mrb[0].mxu0
        %v2372 = vadd.f32 %v2317, %v2371
        %v2373 = vpop.f32.mrb[0].mxu0
        %v2374 = vpop.f32.mrb[0].mxu0
        %v2375 = vpop.f32.mrb[0].mxu0
        %2376 = vdwg.mxu0
        %s2377 = scalar_lea.vmem [#allocation17], 32
        %v2378 = vld [vmem:[%s2377] sm:$0xf]
        %v2379 = vld [vmem:[%s2377 + $0x4] sm:$0xf]
        %v2380 = vld [vmem:[%s2377 + $0x8] sm:$0xf]
        %v2381 = vld [vmem:[%s2377 + $0xc] sm:$0xf]
        %v2386 = vunpack.c.l.b16 %v2378
        %v2387 = vunpack.c.l.b16 %v2379
        %v2388 = vunpack.c.l.b16 %v2380
        %v2389 = vunpack.c.l.b16 %v2381
        %v2390 = vpack.c.b16 %v2387, %v2386
        %v2391 = vpack.c.b16 %v2389, %v2388
        %v2395 = vsel %vm1138, %v2255, 0
        %2397 = vmatprep.subr.bf16.mxu0 0
        %2398 = vmatpush1.bf16.msra.mxu0 %v2390
        %2399 = vmatprep.subr.bf16.mxu0 0
        %2400 = vmatpush1.bf16.msra.mxu0 %v2391
        %2401 = vmatprep.subr.bf16.mxu0 0
        %2402 = vmatpush1.bf16.msra.mxu0 0
        %2403 = vmatprep.subr.bf16.mxu0 0
        %2404 = vmatpush1.bf16.msra.mxu0 0
        %2405 = vmatprep.subr.bf16.mxu0 0
        %2406 = vmatpush1.bf16.msra.mxu0 0
        %2407 = vmatprep.subr.bf16.mxu0 0
        %2408 = vmatpush1.bf16.msra.mxu0 0
        %2409 = vmatprep.subr.bf16.mxu0 0
        %2410 = vmatpush1.bf16.msra.mxu0 0
        %2411 = vmatprep.subr.bf16.mxu0 0
        %2412 = vmatpush1.bf16.msra.mxu0 0
        %2413 = vmatprep.subr.bf16.mxu0 0
        %2414 = vmatpush1.bf16.msra.mxu0 0
        %2415 = vmatprep.subr.bf16.mxu0 0
        %2416 = vmatpush1.bf16.msra.mxu0 0
        %2417 = vmatprep.subr.bf16.mxu0 0
        %2418 = vmatpush1.bf16.msra.mxu0 0
        %2419 = vmatprep.subr.bf16.mxu0 0
        %2420 = vmatpush1.bf16.msra.mxu0 0
        %2421 = vmatprep.subr.bf16.mxu0 0
        %2422 = vmatpush1.bf16.msra.mxu0 0
        %2423 = vmatprep.subr.bf16.mxu0 0
        %2424 = vmatpush1.bf16.msra.mxu0 0
        %2425 = vmatprep.subr.bf16.mxu0 0
        %2426 = vmatpush1.bf16.msra.mxu0 0
        %2427 = vmatprep.subr.bf16.mxu0 0
        %2428 = vmatpush1.bf16.msra.mxu0 0
        %2429 = vmatprep.mubr.bf16.mxu0 0
        %2430 = vmatmul.mubr.bf16.gmra.mrb[0].mxu0 %v2395
        %v2431 = vpop.f32.mrb[0].mxu0
        %v2432 = vadd.f32 0.0, %v2431
        %v2433 = vpop.f32.mrb[0].mxu0
        %v2434 = vpop.f32.mrb[0].mxu0
        %v2435 = vpop.f32.mrb[0].mxu0
        %2436 = vdwg.mxu0
        %v2437 = vadd.f32 %v2372, %v2432
        %s2438 = scalar_lea.vmem [#allocation17], 48
        %v2439 = vld [vmem:[%s2438] sm:$0xf]
        %v2440 = vld [vmem:[%s2438 + $0x4] sm:$0xf]
        %v2441 = vld [vmem:[%s2438 + $0x8] sm:$0xf]
        %v2442 = vld [vmem:[%s2438 + $0xc] sm:$0xf]
        %v2444 = vrot.slane %v2255, 4
        %v2449 = vunpack.c.l.b16 %v2439
        %v2450 = vunpack.c.l.b16 %v2440
        %v2451 = vunpack.c.l.b16 %v2441
        %v2452 = vunpack.c.l.b16 %v2442
        %v2453 = vpack.c.b16 %v2450, %v2449
        %v2454 = vpack.c.b16 %v2452, %v2451
        %v2458 = vsel %vm1138, %v2444, 0
        %2460 = vmatprep.subr.bf16.mxu0 0
        %2461 = vmatpush1.bf16.msra.mxu0 %v2453
        %2462 = vmatprep.subr.bf16.mxu0 0
        %2463 = vmatpush1.bf16.msra.mxu0 %v2454
        %2464 = vmatprep.subr.bf16.mxu0 0
        %2465 = vmatpush1.bf16.msra.mxu0 0
        %2466 = vmatprep.subr.bf16.mxu0 0
        %2467 = vmatpush1.bf16.msra.mxu0 0
        %2468 = vmatprep.subr.bf16.mxu0 0
        %2469 = vmatpush1.bf16.msra.mxu0 0
        %2470 = vmatprep.subr.bf16.mxu0 0
        %2471 = vmatpush1.bf16.msra.mxu0 0
        %2472 = vmatprep.subr.bf16.mxu0 0
        %2473 = vmatpush1.bf16.msra.mxu0 0
        %2474 = vmatprep.subr.bf16.mxu0 0
        %2475 = vmatpush1.bf16.msra.mxu0 0
        %2476 = vmatprep.subr.bf16.mxu0 0
        %2477 = vmatpush1.bf16.msra.mxu0 0
        %2478 = vmatprep.subr.bf16.mxu0 0
        %2479 = vmatpush1.bf16.msra.mxu0 0
        %2480 = vmatprep.subr.bf16.mxu0 0
        %2481 = vmatpush1.bf16.msra.mxu0 0
        %2482 = vmatprep.subr.bf16.mxu0 0
        %2483 = vmatpush1.bf16.msra.mxu0 0
        %2484 = vmatprep.subr.bf16.mxu0 0
        %2485 = vmatpush1.bf16.msra.mxu0 0
        %2486 = vmatprep.subr.bf16.mxu0 0
        %2487 = vmatpush1.bf16.msra.mxu0 0
        %2488 = vmatprep.subr.bf16.mxu0 0
        %2489 = vmatpush1.bf16.msra.mxu0 0
        %2490 = vmatprep.subr.bf16.mxu0 0
        %2491 = vmatpush1.bf16.msra.mxu0 0
        %2492 = vmatprep.mubr.bf16.mxu0 0
        %2493 = vmatmul.mubr.bf16.gmra.mrb[0].mxu0 %v2458
        %v2494 = vpop.f32.mrb[0].mxu0
        %v2495 = vadd.f32 0.0, %v2494
        %v2496 = vpop.f32.mrb[0].mxu0
        %v2497 = vpop.f32.mrb[0].mxu0
        %v2498 = vpop.f32.mrb[0].mxu0
        %2499 = vdwg.mxu0
        %v2500 = vadd.f32 %v2437, %v2495
        %v2501 = vld [vmem:[%s10] sm:$0x1]
        %v2503 = vlaneseq
        %v2504 = vshrl.u32 %v2503, 7
        %v2505 = vsub.s32 0, %v2504
        %v2506 = vrot.slane %v2501, %v2505
        %v2508 = vadd.f32 %v2500, %v2506
        %2509 = vst.msk [vmem:[%s554] sm:$0xff] %vm1138, %v2508
        %s2510 = sand.u32 %s303, 1
        %s2511 = scalar_lea.sflag [#allocation8], %s2510
        %s2512 = sand.u32 %s303, 1
        %s2513 = smul.addr %s2512, 8
        %s2514 = scalar_lea.vmem [#allocation18], %s2513
        // Predicated region
        $region97: #{tpu_custom_call.1} parent=63 // pred_check
          %p2515 = pneg %p313
        $region98: #{tpu_custom_call.1} parent=63 // pred_check_branch
          %2517 = sbr.rel (%p2515) target = $region100
        $region99: #{tpu_custom_call.1} parent=63 // pred_region
          %s2519 = ssub.s32 128, 128
          %2520 = vsyncadd %s2511, %s2519
          %s2521 = smul.addr %s37, 2
          %s2522 = sadd.s32 %s38, %s2521
          %s2523 = smul.addr %s2522, 128
          %s2524 = scalar_lea.hbm %s11, %s2523
          %s2526 = sshll.u32 %s2514, 4
          %s2527 = int_to_ptr.vmem [resolvable:$true] %s2526
          %2529 = dma.vmem_to_hbm [thread:$0]  %s2527, 128, %s2524, %s2511
        $region100: #{tpu_custom_call.1} parent=63 // pred_fallthru
          _
      $region64: #{tpu_custom_call.1} parent=5 // pred_fallthru
        _
      %p2530 = scmp.le.s32.totalorder 2, %s28
      // Predicated region
      $region101: #{tpu_custom_call.1} parent=5 // pred_check
        %p2531 = pneg %p2530
      $region102: #{tpu_custom_call.1} parent=5 // pred_check_branch
        %2533 = sbr.rel (%p2531) target = $region104
      $region103: #{tpu_custom_call.1} parent=5 // pred_region
        %s2534 = ssub.s32 %s28, 2
        // Predicated region
        $region105: #{tpu_custom_call.1} parent=103 // pred_check
          %p2535 = pneg %p319
        $region106: #{tpu_custom_call.1} parent=103 // pred_check_branch
          %2537 = sbr.rel (%p2535) target = $region108
        $region107: #{tpu_custom_call.1} parent=103 // pred_region
          %s2538 = sand.u32 %s304, 1
          %s2539 = scalar_lea.sflag [#allocation8], %s2538
          %s2540 = sand.u32 %s304, 1
          %s2541 = smul.addr %s2540, 8
          %s2542 = scalar_lea.vmem [#allocation18], %s2541
          %2543 = dma.done %s2539, 128
        $region108: #{tpu_custom_call.1} parent=103 // pred_fallthru
          _
      $region104: #{tpu_custom_call.1} parent=5 // pred_fallthru
        _
    $region6: #{tpu_custom_call.1} parent=1 // loop_footer
      %s32 = sadd.s32 1, %s28
    $region7: #{tpu_custom_call.1} parent=1 // loop_footer_branch
      %27 = sbr.rel target = $region3
    $region8: #{tpu_custom_call.1} parent=1 // loop_exit
      _
    %2544 = vsyncpa [#allocation7], 1
    %s2545 = scalar_lea.sflag [#allocation7], 1
    %2546 = vsyncpa %s2545, 1
    %2547 = vsyncpa [#allocation10], 1
    %s2548 = scalar_lea.sflag [#allocation10], 1
    %2549 = vsyncpa %s2548, 1
    %2550 = vsyncpa [#allocation13], 1
    %2551 = vsyncpa [#allocation16], 1
    %2552 = vsyncpa [#allocation8], 1
    %s2553 = scalar_lea.sflag [#allocation8], 1
    %2554 = vsyncpa %s2553, 1

</llo_original>
